<compile_context>
chip_gen: v6e
topology: v6e:2x2x1
jax: 0.10.0
libtpu: 0.0.40
codegen_flags: <defaults>
</compile_context>

<pallas_src>
import functools
import math

import jax
import jax.numpy as jnp
from jax.experimental import pallas as pl
from jax.experimental.pallas import tpu as pltpu


# ----------------------------------------------------------------------------
# The fused kernel: GRU stack (time loop inside) + attention + FFN + 2x LN.
# ----------------------------------------------------------------------------
def frm_kernel(x_ref, wih_ref, whh_ref, bih_ref, bhhn_ref,
               wqkv_ref, wo_ref, bo_ref, w1_ref, b1_ref, w2_ref, b2_ref,
               lng_ref, lnb_ref, out_ref, *, L, T, N, H, HP):
    # x_ref    : (T*N, HP)    time-major, lane-padded input rows (row t*N + n)
    # wih_ref  : (L, HP, 3HP) input->hidden, gate blocks [r|z|n] at cols 0/HP/2HP
    # whh_ref  : (L, HP, 3HP) hidden->hidden, same layout
    # bih_ref  : (L, 1, 3HP)  b_ih with b_hh(r,z) folded in
    # bhhn_ref : (L, 1, HP)   b_hh(n) only (gated by r inside the recurrence)
    # wqkv_ref : (HP, 3HP)    [q|k|v] blocks; attention scale folded into q
    # wo/w1/w2 : padded fc_out / FF weights; biases as (1, dim) rows
    # lng/lnb  : (1, HP)      LayerNorm gamma/beta (zero in padded lanes)
    # out_ref  : (N*T, HP)    batch-major, lane-dense output slab
    eps = 1e-6
    inv_h = 1.0 / H

    gamma = lng_ref[...]                                   # hoisted loads
    beta = lnb_ref[...]

    def layer_norm(xv):
        # One-pass stats over the H real columns; padded lanes hold exact 0 so
        # they contribute nothing to either sum, and gamma/beta=0 keeps the
        # padded lanes at 0 on output.
        mu = jnp.sum(xv, axis=-1, keepdims=True) * inv_h
        ex2 = jnp.sum(xv * xv, axis=-1, keepdims=True) * inv_h
        var = ex2 - mu * mu
        return (xv - mu) * jax.lax.rsqrt(var + eps) * gamma + beta

    # ------------------------- GRU stack (time-major) -----------------------
    src = x_ref[...]                                       # (T*N, HP)
    g = None                                               # batch-major output
    for l in range(L):
        # One big MXU GEMM for all timesteps of this layer; biases folded in.
        gx = (jnp.dot(src, wih_ref[l], preferred_element_type=jnp.float32)
              + bih_ref[l])                                # (T*N, 3HP)
        whh = whh_ref[l]                                   # (HP, 3HP), hoisted
        bhh_n = bhhn_ref[l]                                # (1, HP),   hoisted

        h = jnp.zeros((N, HP), jnp.float32)
        hs = []
        for t in range(T):                                 # static unroll
            gxt = gx[t * N:(t + 1) * N, :]                 # contiguous rows
            # Single fused 3HP-wide recurrent matmul per step.
            gh = jnp.dot(h, whh, preferred_element_type=jnp.float32)
            r = jax.nn.sigmoid(gxt[:, :HP] + gh[:, :HP])               # aligned
            z = jax.nn.sigmoid(gxt[:, HP:2 * HP] + gh[:, HP:2 * HP])   # vreg
            n = jnp.tanh(gxt[:, 2 * HP:] + r * (gh[:, 2 * HP:] + bhh_n))
            h = (1.0 - z) * n + z * h
            hs.append(h)

        if l + 1 < L:
            # Stay time-major for the next layer's big input GEMM.
            src = jnp.concatenate(hs, axis=0)              # (T*N, HP)
        else:
            # Single relayout to batch-major after the last layer.
            g = jnp.stack(hs, axis=1).reshape(N * T, HP)   # row = n*T + t

    # ------------------------------ attention -------------------------------
    # Fused Q/K/V projection: one (N*T, HP) x (HP, 3HP) GEMM.  The PyTorch
    # einsum 'nqhd,nkhd->nqk' sums over BOTH heads and head_dim, so it is a
    # full hid-dim dot; the 1/sqrt(head_dim) scale is folded into the Q block.
    qkv = jnp.dot(g, wqkv_ref[...], preferred_element_type=jnp.float32)
    q = qkv[:, :HP].reshape(N, T, HP)
    k = qkv[:, HP:2 * HP].reshape(N, T, HP)
    v = qkv[:, 2 * HP:].reshape(N, T, HP)

    e = jnp.einsum('nqd,nkd->nqk', q, k,
                   preferred_element_type=jnp.float32)     # (N, T, T)
    m = jnp.max(e, axis=-1, keepdims=True)
    p = jnp.exp(e - m)
    a = p * pl.reciprocal(jnp.sum(p, axis=-1, keepdims=True), approx=True)
    ctx = jnp.einsum('nqk,nkd->nqd', a, v,
                     preferred_element_type=jnp.float32).reshape(N * T, HP)

    attn_out = (jnp.dot(ctx, wo_ref[...], preferred_element_type=jnp.float32)
                + bo_ref[...])

    # ------------------------- residual + LN + FFN ---------------------------
    res1 = layer_norm(g + attn_out)
    h1 = jnp.maximum(
        jnp.dot(res1, w1_ref[...], preferred_element_type=jnp.float32)
        + b1_ref[...], 0.0)
    ff = (jnp.dot(h1, w2_ref[...], preferred_element_type=jnp.float32)
          + b2_ref[...])
    out_ref[...] = layer_norm(res1 + ff).astype(out_ref.dtype)


# ----------------------------------------------------------------------------
# Wrapper: one pallas_call; only layout plumbing (transpose/pad/slice) outside.
# ----------------------------------------------------------------------------
def gru_with_graph_attention(x, params):
    """x: (N, T, H) float32 -> (N, T, H) float32."""
    N, T, H = x.shape
    HP = params["wo"].shape[0]
    L = params["wih"].shape[0]

    # Time-major, lane-padded input slab (pure layout plumbing, tiny array).
    x_tm = jnp.transpose(x, (1, 0, 2)).reshape(T * N, H)
    x_p = jnp.pad(x_tm, ((0, 0), (0, HP - H)))

    kernel = functools.partial(frm_kernel, L=L, T=T, N=N, H=H, HP=HP)
    out_p = pl.pallas_call(
        kernel,
        out_shape=jax.ShapeDtypeStruct((N * T, HP), jnp.float32),
        in_specs=[pl.BlockSpec(memory_space=pltpu.MemorySpace.VMEM)] * 14,
        out_specs=pl.BlockSpec(memory_space=pltpu.MemorySpace.VMEM),
    )(x_p, params["wih"], params["whh"], params["bih"], params["bhh_n"],
      params["wqkv"], params["wo"], params["bo"], params["w1"], params["b1"],
      params["w2"], params["b2"], params["ln_g"], params["ln_b"])

    return out_p[:, :H].reshape(N, T, H)


# ----------------------------------------------------------------------------
# Pure-JAX reference (mirrors the PyTorch module literally) for validation.
# ----------------------------------------------------------------------------
def reference_forward(x, raw, num_heads):
    N, T, H = x.shape
    head_dim = H // num_heads

    h_seq = x
    for (w_ih, w_hh, b_ih, b_hh) in raw["gru"]:
        def step(h, x_t):
            gx = x_t @ w_ih.T + b_ih
            gh = h @ w_hh.T + b_hh
            r = jax.nn.sigmoid(gx[:, :H] + gh[:, :H])
            z = jax.nn.sigmoid(gx[:, H:2 * H] + gh[:, H:2 * H])
            n = jnp.tanh(gx[:, 2 * H:] + r * gh[:, 2 * H:])
            h_new = (1.0 - z) * n + z * h
            return h_new, h_new
        _, ys = jax.lax.scan(step, jnp.zeros((N, H), jnp.float32),
                             jnp.transpose(h_seq, (1, 0, 2)))
        h_seq = jnp.transpose(ys, (1, 0, 2))
    gru_out = h_seq

    q = (gru_out @ raw["wq"].T).reshape(N, T, num_heads, head_dim)
    k = (gru_out @ raw["wk"].T).reshape(N, T, num_heads, head_dim)
    v = (gru_out @ raw["wv"].T).reshape(N, T, num_heads, head_dim)
    energy = jnp.einsum("nqhd,nkhd->nqk", q, k)
    attn = jax.nn.softmax(energy / math.sqrt(head_dim), axis=2)
    ctx = jnp.einsum("nqk,nkhd->nqhd", attn, v).reshape(N, T, H)
    attn_out = ctx @ raw["wo"].T + raw["bo"]

    def layer_norm(z):
        mu = jnp.mean(z, axis=-1, keepdims=True)
        var = jnp.mean((z - mu) ** 2, axis=-1, keepdims=True)
        return (z - mu) / jnp.sqrt(var + 1e-6) * raw["ln_g"] + raw["ln_b"]

    out = layer_norm(gru_out + attn_out)
    ff = jnp.maximum(out @ raw["w1"].T + raw["b1"], 0.0) @ raw["w2"].T + raw["b2"]
    return layer_norm(out + ff)


# ----------------------------------------------------------------------------
# Deterministic parameters: raw PyTorch layout + lane-padded kernel layout.
# ----------------------------------------------------------------------------
def make_params(key, hid_dim, num_heads, num_layers, lane=128):
    H = hid_dim
    HP = ((H + lane - 1) // lane) * lane           # lane-padded hidden width
    F = 4 * H
    FP = ((F + lane - 1) // lane) * lane
    scale = 1.0 / math.sqrt(H // num_heads)

    def u(k, shape, s=0.1):
        return jax.random.uniform(k, shape, jnp.float32, -s, s)

    keys = iter(jax.random.split(key, 8 * num_layers + 16))
    raw = {"gru": []}
    for _ in range(num_layers):
        raw["gru"].append((u(next(keys), (3 * H, H)),   # w_ih  [r|z|n] rows
                           u(next(keys), (3 * H, H)),   # w_hh
                           u(next(keys), (3 * H,)),     # b_ih
                           u(next(keys), (3 * H,))))    # b_hh
    raw["wq"] = u(next(keys), (H, H)); raw["wk"] = u(next(keys), (H, H))
    raw["wv"] = u(next(keys), (H, H)); raw["wo"] = u(next(keys), (H, H))
    raw["bo"] = u(next(keys), (H,))
    raw["w1"] = u(next(keys), (F, H)); raw["b1"] = u(next(keys), (F,))
    raw["w2"] = u(next(keys), (H, F)); raw["b2"] = u(next(keys), (H,))
    raw["ln_g"] = 1.0 + u(next(keys), (H,), 0.05)
    raw["ln_b"] = u(next(keys), (H,), 0.05)

    def place(mat, rows, cols):
        out = jnp.zeros((rows, cols), jnp.float32)
        return out.at[:mat.shape[0], :mat.shape[1]].set(mat)

    # GRU weights: fused gate blocks at 128-column strides, zero elsewhere so
    # the padded lanes of h stay exactly 0 through the recurrence.
    wih_l, whh_l, bih_l, bhhn_l = [], [], [], []
    for (w_ih, w_hh, b_ih, b_hh) in raw["gru"]:
        wih_p = jnp.zeros((HP, 3 * HP), jnp.float32)
        whh_p = jnp.zeros((HP, 3 * HP), jnp.float32)
        bih_p = jnp.zeros((1, 3 * HP), jnp.float32)
        for g in range(3):
            wih_p = wih_p.at[:H, g * HP:g * HP + H].set(w_ih[g * H:(g + 1) * H, :].T)
            whh_p = whh_p.at[:H, g * HP:g * HP + H].set(w_hh[g * H:(g + 1) * H, :].T)
        # Fold b_hh(r,z) into b_ih; the n-gate hidden bias stays separate
        # because it is scaled by r inside the recurrence.
        bih_p = bih_p.at[0, 0 * HP:0 * HP + H].set(b_ih[0:H] + b_hh[0:H])
        bih_p = bih_p.at[0, 1 * HP:1 * HP + H].set(b_ih[H:2 * H] + b_hh[H:2 * H])
        bih_p = bih_p.at[0, 2 * HP:2 * HP + H].set(b_ih[2 * H:3 * H])
        bhhn_p = jnp.zeros((1, HP), jnp.float32).at[0, :H].set(b_hh[2 * H:3 * H])
        wih_l.append(wih_p); whh_l.append(whh_p)
        bih_l.append(bih_p); bhhn_l.append(bhhn_p)

    # Fused QKV with the attention scale folded into the Q block.
    wqkv_p = jnp.zeros((HP, 3 * HP), jnp.float32)
    wqkv_p = wqkv_p.at[:H, 0 * HP:0 * HP + H].set(raw["wq"].T * scale)
    wqkv_p = wqkv_p.at[:H, 1 * HP:1 * HP + H].set(raw["wk"].T)
    wqkv_p = wqkv_p.at[:H, 2 * HP:2 * HP + H].set(raw["wv"].T)

    kp = {
        "wih": jnp.stack(wih_l), "whh": jnp.stack(whh_l),
        "bih": jnp.stack(bih_l), "bhh_n": jnp.stack(bhhn_l),
        "wqkv": wqkv_p,
        "wo": place(raw["wo"].T, HP, HP),
        "bo": place(raw["bo"].reshape(1, H), 1, HP),
        "w1": place(raw["w1"].T, HP, FP),
        "b1": place(raw["b1"].reshape(1, F), 1, FP),
        "w2": place(raw["w2"].T, FP, HP),
        "b2": place(raw["b2"].reshape(1, H), 1, HP),
        "ln_g": place(raw["ln_g"].reshape(1, H), 1, HP),
        "ln_b": place(raw["ln_b"].reshape(1, H), 1, HP),
    }
    return raw, kp


if __name__ == "__main__":
    hid_dim, num_heads, num_layers = 32, 4, 2
    N, T = 2, 8

    key = jax.random.PRNGKey(0)
    k_x, k_p = jax.random.split(key)
    x = jax.random.normal(k_x, (N, T, hid_dim), jnp.float32)
    raw, kp = make_params(k_p, hid_dim, num_heads, num_layers)

    fwd = jax.jit(gru_with_graph_attention)
    out = jax.block_until_ready(fwd(x, kp))

    ref = reference_forward(x, raw, num_heads)
    assert out.shape == (N, T, hid_dim)
    assert jnp.allclose(out, ref, atol=5e-3, rtol=5e-3), (
        f"max abs diff {float(jnp.max(jnp.abs(out - ref)))}")

    print("KERNEL_OK")
</pallas_src>

<mosaic_0001>
module attributes {stable_mosaic.version = 11 : i64} {
  func.func @frm_kernel(%arg0: memref<16x128xf32, #tpu.memory_space<vmem>>, %arg1: memref<2x128x384xf32, #tpu.memory_space<vmem>>, %arg2: memref<2x128x384xf32, #tpu.memory_space<vmem>>, %arg3: memref<2x1x384xf32, #tpu.memory_space<vmem>>, %arg4: memref<2x1x128xf32, #tpu.memory_space<vmem>>, %arg5: memref<128x384xf32, #tpu.memory_space<vmem>>, %arg6: memref<128x128xf32, #tpu.memory_space<vmem>>, %arg7: memref<1x128xf32, #tpu.memory_space<vmem>>, %arg8: memref<128x128xf32, #tpu.memory_space<vmem>>, %arg9: memref<1x128xf32, #tpu.memory_space<vmem>>, %arg10: memref<128x128xf32, #tpu.memory_space<vmem>>, %arg11: memref<1x128xf32, #tpu.memory_space<vmem>>, %arg12: memref<1x128xf32, #tpu.memory_space<vmem>>, %arg13: memref<1x128xf32, #tpu.memory_space<vmem>>, %arg14: memref<16x128xf32, #tpu.memory_space<vmem>>) attributes {dimension_semantics = [], scalar_prefetch = 0 : i64, scratch_operands = 0 : i64, tpu.core_type = #tpu.core_type<tc>} {
    %c0 = arith.constant 0 : index
    %c0_0 = arith.constant 0 : index
    %0 = vector.load %arg12[%c0, %c0_0] : memref<1x128xf32, #tpu.memory_space<vmem>>, vector<1x128xf32>
    %c0_1 = arith.constant 0 : index
    %c0_2 = arith.constant 0 : index
    %1 = vector.load %arg13[%c0_1, %c0_2] : memref<1x128xf32, #tpu.memory_space<vmem>>, vector<1x128xf32>
    %c0_3 = arith.constant 0 : index
    %c0_4 = arith.constant 0 : index
    %2 = vector.load %arg0[%c0_3, %c0_4] : memref<16x128xf32, #tpu.memory_space<vmem>>, vector<16x128xf32>
    %c0_5 = arith.constant 0 : index
    %c0_6 = arith.constant 0 : index
    %c0_7 = arith.constant 0 : index
    %3 = vector.load %arg1[%c0_5, %c0_6, %c0_7] : memref<2x128x384xf32, #tpu.memory_space<vmem>>, vector<1x128x384xf32>
    %4 = vector.shape_cast %3 : vector<1x128x384xf32> to vector<128x384xf32>
    %cst = arith.constant dense<0.000000e+00> : vector<16x384xf32>
    %5 = tpu.matmul %2, %4, %cst {dimension_numbers = #tpu.dot_dimension_numbers<[1], [0], [0], [1], [0, 0, 1, 1], [], []>} : vector<16x128xf32>, vector<128x384xf32>, vector<16x384xf32> -> vector<16x384xf32>
    %c0_8 = arith.constant 0 : index
    %c0_9 = arith.constant 0 : index
    %c0_10 = arith.constant 0 : index
    %6 = vector.load %arg3[%c0_8, %c0_9, %c0_10] : memref<2x1x384xf32, #tpu.memory_space<vmem>>, vector<1x1x384xf32>
    %7 = vector.shape_cast %6 : vector<1x1x384xf32> to vector<1x384xf32>
    %8 = vector.broadcast %7 : vector<1x384xf32> to vector<16x384xf32>
    %9 = arith.addf %5, %8 : vector<16x384xf32>
    %c0_11 = arith.constant 0 : index
    %c0_12 = arith.constant 0 : index
    %c0_13 = arith.constant 0 : index
    %10 = vector.load %arg2[%c0_11, %c0_12, %c0_13] : memref<2x128x384xf32, #tpu.memory_space<vmem>>, vector<1x128x384xf32>
    %11 = vector.shape_cast %10 : vector<1x128x384xf32> to vector<128x384xf32>
    %c0_14 = arith.constant 0 : index
    %c0_15 = arith.constant 0 : index
    %c0_16 = arith.constant 0 : index
    %12 = vector.load %arg4[%c0_14, %c0_15, %c0_16] : memref<2x1x128xf32, #tpu.memory_space<vmem>>, vector<1x1x128xf32>
    %13 = vector.shape_cast %12 : vector<1x1x128xf32> to vector<1x128xf32>
    %cst_17 = arith.constant 0.000000e+00 : f32
    %14 = vector.broadcast %cst_17 : f32 to vector<2x128xf32>
    %15 = vector.extract_strided_slice %9 {offsets = [0, 0], sizes = [2, 384], strides = [1, 1]} : vector<16x384xf32> to vector<2x384xf32>
    %cst_18 = arith.constant dense<0.000000e+00> : vector<2x384xf32>
    %16 = tpu.matmul %14, %11, %cst_18 {dimension_numbers = #tpu.dot_dimension_numbers<[1], [0], [0], [1], [0, 0, 1, 1], [], []>} : vector<2x128xf32>, vector<128x384xf32>, vector<2x384xf32> -> vector<2x384xf32>
    %17 = vector.extract_strided_slice %15 {offsets = [0, 0], sizes = [2, 128], strides = [1, 1]} : vector<2x384xf32> to vector<2x128xf32>
    %18 = vector.extract_strided_slice %16 {offsets = [0, 0], sizes = [2, 128], strides = [1, 1]} : vector<2x384xf32> to vector<2x128xf32>
    %19 = arith.addf %17, %18 : vector<2x128xf32>
    %20 = arith.negf %19 : vector<2x128xf32>
    %21 = math.exp %20 : vector<2x128xf32>
    %cst_19 = arith.constant 1.000000e+00 : f32
    %22 = vector.broadcast %cst_19 : f32 to vector<2x128xf32>
    %23 = arith.addf %22, %21 : vector<2x128xf32>
    %24 = arith.divf %22, %23 : vector<2x128xf32>
    %25 = vector.extract_strided_slice %15 {offsets = [0, 128], sizes = [2, 128], strides = [1, 1]} : vector<2x384xf32> to vector<2x128xf32>
    %26 = vector.extract_strided_slice %16 {offsets = [0, 128], sizes = [2, 128], strides = [1, 1]} : vector<2x384xf32> to vector<2x128xf32>
    %27 = arith.addf %25, %26 : vector<2x128xf32>
    %28 = arith.negf %27 : vector<2x128xf32>
    %29 = math.exp %28 : vector<2x128xf32>
    %cst_20 = arith.constant 1.000000e+00 : f32
    %30 = vector.broadcast %cst_20 : f32 to vector<2x128xf32>
    %31 = arith.addf %30, %29 : vector<2x128xf32>
    %32 = arith.divf %30, %31 : vector<2x128xf32>
    %33 = vector.extract_strided_slice %15 {offsets = [0, 256], sizes = [2, 128], strides = [1, 1]} : vector<2x384xf32> to vector<2x128xf32>
    %34 = vector.extract_strided_slice %16 {offsets = [0, 256], sizes = [2, 128], strides = [1, 1]} : vector<2x384xf32> to vector<2x128xf32>
    %35 = vector.broadcast %13 : vector<1x128xf32> to vector<2x128xf32>
    %36 = arith.addf %34, %35 : vector<2x128xf32>
    %37 = arith.mulf %24, %36 : vector<2x128xf32>
    %38 = arith.addf %33, %37 : vector<2x128xf32>
    %39 = math.tanh %38 : vector<2x128xf32>
    %cst_21 = arith.constant 1.000000e+00 : f32
    %40 = vector.broadcast %cst_21 : f32 to vector<2x128xf32>
    %41 = arith.subf %40, %32 : vector<2x128xf32>
    %42 = arith.mulf %41, %39 : vector<2x128xf32>
    %43 = arith.mulf %32, %14 : vector<2x128xf32>
    %44 = arith.addf %42, %43 : vector<2x128xf32>
    %45 = vector.extract_strided_slice %9 {offsets = [2, 0], sizes = [2, 384], strides = [1, 1]} : vector<16x384xf32> to vector<2x384xf32>
    %cst_22 = arith.constant dense<0.000000e+00> : vector<2x384xf32>
    %46 = tpu.matmul %44, %11, %cst_22 {dimension_numbers = #tpu.dot_dimension_numbers<[1], [0], [0], [1], [0, 0, 1, 1], [], []>} : vector<2x128xf32>, vector<128x384xf32>, vector<2x384xf32> -> vector<2x384xf32>
    %47 = vector.extract_strided_slice %45 {offsets = [0, 0], sizes = [2, 128], strides = [1, 1]} : vector<2x384xf32> to vector<2x128xf32>
    %48 = vector.extract_strided_slice %46 {offsets = [0, 0], sizes = [2, 128], strides = [1, 1]} : vector<2x384xf32> to vector<2x128xf32>
    %49 = arith.addf %47, %48 : vector<2x128xf32>
    %50 = arith.negf %49 : vector<2x128xf32>
    %51 = math.exp %50 : vector<2x128xf32>
    %cst_23 = arith.constant 1.000000e+00 : f32
    %52 = vector.broadcast %cst_23 : f32 to vector<2x128xf32>
    %53 = arith.addf %52, %51 : vector<2x128xf32>
    %54 = arith.divf %52, %53 : vector<2x128xf32>
    %55 = vector.extract_strided_slice %45 {offsets = [0, 128], sizes = [2, 128], strides = [1, 1]} : vector<2x384xf32> to vector<2x128xf32>
    %56 = vector.extract_strided_slice %46 {offsets = [0, 128], sizes = [2, 128], strides = [1, 1]} : vector<2x384xf32> to vector<2x128xf32>
    %57 = arith.addf %55, %56 : vector<2x128xf32>
    %58 = arith.negf %57 : vector<2x128xf32>
    %59 = math.exp %58 : vector<2x128xf32>
    %cst_24 = arith.constant 1.000000e+00 : f32
    %60 = vector.broadcast %cst_24 : f32 to vector<2x128xf32>
    %61 = arith.addf %60, %59 : vector<2x128xf32>
    %62 = arith.divf %60, %61 : vector<2x128xf32>
    %63 = vector.extract_strided_slice %45 {offsets = [0, 256], sizes = [2, 128], strides = [1, 1]} : vector<2x384xf32> to vector<2x128xf32>
    %64 = vector.extract_strided_slice %46 {offsets = [0, 256], sizes = [2, 128], strides = [1, 1]} : vector<2x384xf32> to vector<2x128xf32>
    %65 = vector.broadcast %13 : vector<1x128xf32> to vector<2x128xf32>
    %66 = arith.addf %64, %65 : vector<2x128xf32>
    %67 = arith.mulf %54, %66 : vector<2x128xf32>
    %68 = arith.addf %63, %67 : vector<2x128xf32>
    %69 = math.tanh %68 : vector<2x128xf32>
    %cst_25 = arith.constant 1.000000e+00 : f32
    %70 = vector.broadcast %cst_25 : f32 to vector<2x128xf32>
    %71 = arith.subf %70, %62 : vector<2x128xf32>
    %72 = arith.mulf %71, %69 : vector<2x128xf32>
    %73 = arith.mulf %62, %44 : vector<2x128xf32>
    %74 = arith.addf %72, %73 : vector<2x128xf32>
    %75 = vector.extract_strided_slice %9 {offsets = [4, 0], sizes = [2, 384], strides = [1, 1]} : vector<16x384xf32> to vector<2x384xf32>
    %cst_26 = arith.constant dense<0.000000e+00> : vector<2x384xf32>
    %76 = tpu.matmul %74, %11, %cst_26 {dimension_numbers = #tpu.dot_dimension_numbers<[1], [0], [0], [1], [0, 0, 1, 1], [], []>} : vector<2x128xf32>, vector<128x384xf32>, vector<2x384xf32> -> vector<2x384xf32>
    %77 = vector.extract_strided_slice %75 {offsets = [0, 0], sizes = [2, 128], strides = [1, 1]} : vector<2x384xf32> to vector<2x128xf32>
    %78 = vector.extract_strided_slice %76 {offsets = [0, 0], sizes = [2, 128], strides = [1, 1]} : vector<2x384xf32> to vector<2x128xf32>
    %79 = arith.addf %77, %78 : vector<2x128xf32>
    %80 = arith.negf %79 : vector<2x128xf32>
    %81 = math.exp %80 : vector<2x128xf32>
    %cst_27 = arith.constant 1.000000e+00 : f32
    %82 = vector.broadcast %cst_27 : f32 to vector<2x128xf32>
    %83 = arith.addf %82, %81 : vector<2x128xf32>
    %84 = arith.divf %82, %83 : vector<2x128xf32>
    %85 = vector.extract_strided_slice %75 {offsets = [0, 128], sizes = [2, 128], strides = [1, 1]} : vector<2x384xf32> to vector<2x128xf32>
    %86 = vector.extract_strided_slice %76 {offsets = [0, 128], sizes = [2, 128], strides = [1, 1]} : vector<2x384xf32> to vector<2x128xf32>
    %87 = arith.addf %85, %86 : vector<2x128xf32>
    %88 = arith.negf %87 : vector<2x128xf32>
    %89 = math.exp %88 : vector<2x128xf32>
    %cst_28 = arith.constant 1.000000e+00 : f32
    %90 = vector.broadcast %cst_28 : f32 to vector<2x128xf32>
    %91 = arith.addf %90, %89 : vector<2x128xf32>
    %92 = arith.divf %90, %91 : vector<2x128xf32>
    %93 = vector.extract_strided_slice %75 {offsets = [0, 256], sizes = [2, 128], strides = [1, 1]} : vector<2x384xf32> to vector<2x128xf32>
    %94 = vector.extract_strided_slice %76 {offsets = [0, 256], sizes = [2, 128], strides = [1, 1]} : vector<2x384xf32> to vector<2x128xf32>
    %95 = vector.broadcast %13 : vector<1x128xf32> to vector<2x128xf32>
    %96 = arith.addf %94, %95 : vector<2x128xf32>
    %97 = arith.mulf %84, %96 : vector<2x128xf32>
    %98 = arith.addf %93, %97 : vector<2x128xf32>
    %99 = math.tanh %98 : vector<2x128xf32>
    %cst_29 = arith.constant 1.000000e+00 : f32
    %100 = vector.broadcast %cst_29 : f32 to vector<2x128xf32>
    %101 = arith.subf %100, %92 : vector<2x128xf32>
    %102 = arith.mulf %101, %99 : vector<2x128xf32>
    %103 = arith.mulf %92, %74 : vector<2x128xf32>
    %104 = arith.addf %102, %103 : vector<2x128xf32>
    %105 = vector.extract_strided_slice %9 {offsets = [6, 0], sizes = [2, 384], strides = [1, 1]} : vector<16x384xf32> to vector<2x384xf32>
    %cst_30 = arith.constant dense<0.000000e+00> : vector<2x384xf32>
    %106 = tpu.matmul %104, %11, %cst_30 {dimension_numbers = #tpu.dot_dimension_numbers<[1], [0], [0], [1], [0, 0, 1, 1], [], []>} : vector<2x128xf32>, vector<128x384xf32>, vector<2x384xf32> -> vector<2x384xf32>
    %107 = vector.extract_strided_slice %105 {offsets = [0, 0], sizes = [2, 128], strides = [1, 1]} : vector<2x384xf32> to vector<2x128xf32>
    %108 = vector.extract_strided_slice %106 {offsets = [0, 0], sizes = [2, 128], strides = [1, 1]} : vector<2x384xf32> to vector<2x128xf32>
    %109 = arith.addf %107, %108 : vector<2x128xf32>
    %110 = arith.negf %109 : vector<2x128xf32>
    %111 = math.exp %110 : vector<2x128xf32>
    %cst_31 = arith.constant 1.000000e+00 : f32
    %112 = vector.broadcast %cst_31 : f32 to vector<2x128xf32>
    %113 = arith.addf %112, %111 : vector<2x128xf32>
    %114 = arith.divf %112, %113 : vector<2x128xf32>
    %115 = vector.extract_strided_slice %105 {offsets = [0, 128], sizes = [2, 128], strides = [1, 1]} : vector<2x384xf32> to vector<2x128xf32>
    %116 = vector.extract_strided_slice %106 {offsets = [0, 128], sizes = [2, 128], strides = [1, 1]} : vector<2x384xf32> to vector<2x128xf32>
    %117 = arith.addf %115, %116 : vector<2x128xf32>
    %118 = arith.negf %117 : vector<2x128xf32>
    %119 = math.exp %118 : vector<2x128xf32>
    %cst_32 = arith.constant 1.000000e+00 : f32
    %120 = vector.broadcast %cst_32 : f32 to vector<2x128xf32>
    %121 = arith.addf %120, %119 : vector<2x128xf32>
    %122 = arith.divf %120, %121 : vector<2x128xf32>
    %123 = vector.extract_strided_slice %105 {offsets = [0, 256], sizes = [2, 128], strides = [1, 1]} : vector<2x384xf32> to vector<2x128xf32>
    %124 = vector.extract_strided_slice %106 {offsets = [0, 256], sizes = [2, 128], strides = [1, 1]} : vector<2x384xf32> to vector<2x128xf32>
    %125 = vector.broadcast %13 : vector<1x128xf32> to vector<2x128xf32>
    %126 = arith.addf %124, %125 : vector<2x128xf32>
    %127 = arith.mulf %114, %126 : vector<2x128xf32>
    %128 = arith.addf %123, %127 : vector<2x128xf32>
    %129 = math.tanh %128 : vector<2x128xf32>
    %cst_33 = arith.constant 1.000000e+00 : f32
    %130 = vector.broadcast %cst_33 : f32 to vector<2x128xf32>
    %131 = arith.subf %130, %122 : vector<2x128xf32>
    %132 = arith.mulf %131, %129 : vector<2x128xf32>
    %133 = arith.mulf %122, %104 : vector<2x128xf32>
    %134 = arith.addf %132, %133 : vector<2x128xf32>
    %135 = vector.extract_strided_slice %9 {offsets = [8, 0], sizes = [2, 384], strides = [1, 1]} : vector<16x384xf32> to vector<2x384xf32>
    %cst_34 = arith.constant dense<0.000000e+00> : vector<2x384xf32>
    %136 = tpu.matmul %134, %11, %cst_34 {dimension_numbers = #tpu.dot_dimension_numbers<[1], [0], [0], [1], [0, 0, 1, 1], [], []>} : vector<2x128xf32>, vector<128x384xf32>, vector<2x384xf32> -> vector<2x384xf32>
    %137 = vector.extract_strided_slice %135 {offsets = [0, 0], sizes = [2, 128], strides = [1, 1]} : vector<2x384xf32> to vector<2x128xf32>
    %138 = vector.extract_strided_slice %136 {offsets = [0, 0], sizes = [2, 128], strides = [1, 1]} : vector<2x384xf32> to vector<2x128xf32>
    %139 = arith.addf %137, %138 : vector<2x128xf32>
    %140 = arith.negf %139 : vector<2x128xf32>
    %141 = math.exp %140 : vector<2x128xf32>
    %cst_35 = arith.constant 1.000000e+00 : f32
    %142 = vector.broadcast %cst_35 : f32 to vector<2x128xf32>
    %143 = arith.addf %142, %141 : vector<2x128xf32>
    %144 = arith.divf %142, %143 : vector<2x128xf32>
    %145 = vector.extract_strided_slice %135 {offsets = [0, 128], sizes = [2, 128], strides = [1, 1]} : vector<2x384xf32> to vector<2x128xf32>
    %146 = vector.extract_strided_slice %136 {offsets = [0, 128], sizes = [2, 128], strides = [1, 1]} : vector<2x384xf32> to vector<2x128xf32>
    %147 = arith.addf %145, %146 : vector<2x128xf32>
    %148 = arith.negf %147 : vector<2x128xf32>
    %149 = math.exp %148 : vector<2x128xf32>
    %cst_36 = arith.constant 1.000000e+00 : f32
    %150 = vector.broadcast %cst_36 : f32 to vector<2x128xf32>
    %151 = arith.addf %150, %149 : vector<2x128xf32>
    %152 = arith.divf %150, %151 : vector<2x128xf32>
    %153 = vector.extract_strided_slice %135 {offsets = [0, 256], sizes = [2, 128], strides = [1, 1]} : vector<2x384xf32> to vector<2x128xf32>
    %154 = vector.extract_strided_slice %136 {offsets = [0, 256], sizes = [2, 128], strides = [1, 1]} : vector<2x384xf32> to vector<2x128xf32>
    %155 = vector.broadcast %13 : vector<1x128xf32> to vector<2x128xf32>
    %156 = arith.addf %154, %155 : vector<2x128xf32>
    %157 = arith.mulf %144, %156 : vector<2x128xf32>
    %158 = arith.addf %153, %157 : vector<2x128xf32>
    %159 = math.tanh %158 : vector<2x128xf32>
    %cst_37 = arith.constant 1.000000e+00 : f32
    %160 = vector.broadcast %cst_37 : f32 to vector<2x128xf32>
    %161 = arith.subf %160, %152 : vector<2x128xf32>
    %162 = arith.mulf %161, %159 : vector<2x128xf32>
    %163 = arith.mulf %152, %134 : vector<2x128xf32>
    %164 = arith.addf %162, %163 : vector<2x128xf32>
    %165 = vector.extract_strided_slice %9 {offsets = [10, 0], sizes = [2, 384], strides = [1, 1]} : vector<16x384xf32> to vector<2x384xf32>
    %cst_38 = arith.constant dense<0.000000e+00> : vector<2x384xf32>
    %166 = tpu.matmul %164, %11, %cst_38 {dimension_numbers = #tpu.dot_dimension_numbers<[1], [0], [0], [1], [0, 0, 1, 1], [], []>} : vector<2x128xf32>, vector<128x384xf32>, vector<2x384xf32> -> vector<2x384xf32>
    %167 = vector.extract_strided_slice %165 {offsets = [0, 0], sizes = [2, 128], strides = [1, 1]} : vector<2x384xf32> to vector<2x128xf32>
    %168 = vector.extract_strided_slice %166 {offsets = [0, 0], sizes = [2, 128], strides = [1, 1]} : vector<2x384xf32> to vector<2x128xf32>
    %169 = arith.addf %167, %168 : vector<2x128xf32>
    %170 = arith.negf %169 : vector<2x128xf32>
    %171 = math.exp %170 : vector<2x128xf32>
    %cst_39 = arith.constant 1.000000e+00 : f32
    %172 = vector.broadcast %cst_39 : f32 to vector<2x128xf32>
    %173 = arith.addf %172, %171 : vector<2x128xf32>
    %174 = arith.divf %172, %173 : vector<2x128xf32>
    %175 = vector.extract_strided_slice %165 {offsets = [0, 128], sizes = [2, 128], strides = [1, 1]} : vector<2x384xf32> to vector<2x128xf32>
    %176 = vector.extract_strided_slice %166 {offsets = [0, 128], sizes = [2, 128], strides = [1, 1]} : vector<2x384xf32> to vector<2x128xf32>
    %177 = arith.addf %175, %176 : vector<2x128xf32>
    %178 = arith.negf %177 : vector<2x128xf32>
    %179 = math.exp %178 : vector<2x128xf32>
    %cst_40 = arith.constant 1.000000e+00 : f32
    %180 = vector.broadcast %cst_40 : f32 to vector<2x128xf32>
    %181 = arith.addf %180, %179 : vector<2x128xf32>
    %182 = arith.divf %180, %181 : vector<2x128xf32>
    %183 = vector.extract_strided_slice %165 {offsets = [0, 256], sizes = [2, 128], strides = [1, 1]} : vector<2x384xf32> to vector<2x128xf32>
    %184 = vector.extract_strided_slice %166 {offsets = [0, 256], sizes = [2, 128], strides = [1, 1]} : vector<2x384xf32> to vector<2x128xf32>
    %185 = vector.broadcast %13 : vector<1x128xf32> to vector<2x128xf32>
    %186 = arith.addf %184, %185 : vector<2x128xf32>
    %187 = arith.mulf %174, %186 : vector<2x128xf32>
    %188 = arith.addf %183, %187 : vector<2x128xf32>
    %189 = math.tanh %188 : vector<2x128xf32>
    %cst_41 = arith.constant 1.000000e+00 : f32
    %190 = vector.broadcast %cst_41 : f32 to vector<2x128xf32>
    %191 = arith.subf %190, %182 : vector<2x128xf32>
    %192 = arith.mulf %191, %189 : vector<2x128xf32>
    %193 = arith.mulf %182, %164 : vector<2x128xf32>
    %194 = arith.addf %192, %193 : vector<2x128xf32>
    %195 = vector.extract_strided_slice %9 {offsets = [12, 0], sizes = [2, 384], strides = [1, 1]} : vector<16x384xf32> to vector<2x384xf32>
    %cst_42 = arith.constant dense<0.000000e+00> : vector<2x384xf32>
    %196 = tpu.matmul %194, %11, %cst_42 {dimension_numbers = #tpu.dot_dimension_numbers<[1], [0], [0], [1], [0, 0, 1, 1], [], []>} : vector<2x128xf32>, vector<128x384xf32>, vector<2x384xf32> -> vector<2x384xf32>
    %197 = vector.extract_strided_slice %195 {offsets = [0, 0], sizes = [2, 128], strides = [1, 1]} : vector<2x384xf32> to vector<2x128xf32>
    %198 = vector.extract_strided_slice %196 {offsets = [0, 0], sizes = [2, 128], strides = [1, 1]} : vector<2x384xf32> to vector<2x128xf32>
    %199 = arith.addf %197, %198 : vector<2x128xf32>
    %200 = arith.negf %199 : vector<2x128xf32>
    %201 = math.exp %200 : vector<2x128xf32>
    %cst_43 = arith.constant 1.000000e+00 : f32
    %202 = vector.broadcast %cst_43 : f32 to vector<2x128xf32>
    %203 = arith.addf %202, %201 : vector<2x128xf32>
    %204 = arith.divf %202, %203 : vector<2x128xf32>
    %205 = vector.extract_strided_slice %195 {offsets = [0, 128], sizes = [2, 128], strides = [1, 1]} : vector<2x384xf32> to vector<2x128xf32>
    %206 = vector.extract_strided_slice %196 {offsets = [0, 128], sizes = [2, 128], strides = [1, 1]} : vector<2x384xf32> to vector<2x128xf32>
    %207 = arith.addf %205, %206 : vector<2x128xf32>
    %208 = arith.negf %207 : vector<2x128xf32>
    %209 = math.exp %208 : vector<2x128xf32>
    %cst_44 = arith.constant 1.000000e+00 : f32
    %210 = vector.broadcast %cst_44 : f32 to vector<2x128xf32>
    %211 = arith.addf %210, %209 : vector<2x128xf32>
    %212 = arith.divf %210, %211 : vector<2x128xf32>
    %213 = vector.extract_strided_slice %195 {offsets = [0, 256], sizes = [2, 128], strides = [1, 1]} : vector<2x384xf32> to vector<2x128xf32>
    %214 = vector.extract_strided_slice %196 {offsets = [0, 256], sizes = [2, 128], strides = [1, 1]} : vector<2x384xf32> to vector<2x128xf32>
    %215 = vector.broadcast %13 : vector<1x128xf32> to vector<2x128xf32>
    %216 = arith.addf %214, %215 : vector<2x128xf32>
    %217 = arith.mulf %204, %216 : vector<2x128xf32>
    %218 = arith.addf %213, %217 : vector<2x128xf32>
    %219 = math.tanh %218 : vector<2x128xf32>
    %cst_45 = arith.constant 1.000000e+00 : f32
    %220 = vector.broadcast %cst_45 : f32 to vector<2x128xf32>
    %221 = arith.subf %220, %212 : vector<2x128xf32>
    %222 = arith.mulf %221, %219 : vector<2x128xf32>
    %223 = arith.mulf %212, %194 : vector<2x128xf32>
    %224 = arith.addf %222, %223 : vector<2x128xf32>
    %225 = vector.extract_strided_slice %9 {offsets = [14, 0], sizes = [2, 384], strides = [1, 1]} : vector<16x384xf32> to vector<2x384xf32>
    %cst_46 = arith.constant dense<0.000000e+00> : vector<2x384xf32>
    %226 = tpu.matmul %224, %11, %cst_46 {dimension_numbers = #tpu.dot_dimension_numbers<[1], [0], [0], [1], [0, 0, 1, 1], [], []>} : vector<2x128xf32>, vector<128x384xf32>, vector<2x384xf32> -> vector<2x384xf32>
    %227 = vector.extract_strided_slice %225 {offsets = [0, 0], sizes = [2, 128], strides = [1, 1]} : vector<2x384xf32> to vector<2x128xf32>
    %228 = vector.extract_strided_slice %226 {offsets = [0, 0], sizes = [2, 128], strides = [1, 1]} : vector<2x384xf32> to vector<2x128xf32>
    %229 = arith.addf %227, %228 : vector<2x128xf32>
    %230 = arith.negf %229 : vector<2x128xf32>
    %231 = math.exp %230 : vector<2x128xf32>
    %cst_47 = arith.constant 1.000000e+00 : f32
    %232 = vector.broadcast %cst_47 : f32 to vector<2x128xf32>
    %233 = arith.addf %232, %231 : vector<2x128xf32>
    %234 = arith.divf %232, %233 : vector<2x128xf32>
    %235 = vector.extract_strided_slice %225 {offsets = [0, 128], sizes = [2, 128], strides = [1, 1]} : vector<2x384xf32> to vector<2x128xf32>
    %236 = vector.extract_strided_slice %226 {offsets = [0, 128], sizes = [2, 128], strides = [1, 1]} : vector<2x384xf32> to vector<2x128xf32>
    %237 = arith.addf %235, %236 : vector<2x128xf32>
    %238 = arith.negf %237 : vector<2x128xf32>
    %239 = math.exp %238 : vector<2x128xf32>
    %cst_48 = arith.constant 1.000000e+00 : f32
    %240 = vector.broadcast %cst_48 : f32 to vector<2x128xf32>
    %241 = arith.addf %240, %239 : vector<2x128xf32>
    %242 = arith.divf %240, %241 : vector<2x128xf32>
    %243 = vector.extract_strided_slice %225 {offsets = [0, 256], sizes = [2, 128], strides = [1, 1]} : vector<2x384xf32> to vector<2x128xf32>
    %244 = vector.extract_strided_slice %226 {offsets = [0, 256], sizes = [2, 128], strides = [1, 1]} : vector<2x384xf32> to vector<2x128xf32>
    %245 = vector.broadcast %13 : vector<1x128xf32> to vector<2x128xf32>
    %246 = arith.addf %244, %245 : vector<2x128xf32>
    %247 = arith.mulf %234, %246 : vector<2x128xf32>
    %248 = arith.addf %243, %247 : vector<2x128xf32>
    %249 = math.tanh %248 : vector<2x128xf32>
    %cst_49 = arith.constant 1.000000e+00 : f32
    %250 = vector.broadcast %cst_49 : f32 to vector<2x128xf32>
    %251 = arith.subf %250, %242 : vector<2x128xf32>
    %252 = arith.mulf %251, %249 : vector<2x128xf32>
    %253 = arith.mulf %242, %224 : vector<2x128xf32>
    %254 = arith.addf %252, %253 : vector<2x128xf32>
    %255 = tpu.concatenate %44, %74, %104, %134, %164, %194, %224, %254 in 0 : vector<2x128xf32>, vector<2x128xf32>, vector<2x128xf32>, vector<2x128xf32>, vector<2x128xf32>, vector<2x128xf32>, vector<2x128xf32>, vector<2x128xf32> -> vector<16x128xf32>
    %c1 = arith.constant 1 : index
    %c0_50 = arith.constant 0 : index
    %c0_51 = arith.constant 0 : index
    %256 = vector.load %arg1[%c1, %c0_50, %c0_51] : memref<2x128x384xf32, #tpu.memory_space<vmem>>, vector<1x128x384xf32>
    %257 = vector.shape_cast %256 : vector<1x128x384xf32> to vector<128x384xf32>
    %cst_52 = arith.constant dense<0.000000e+00> : vector<16x384xf32>
    %258 = tpu.matmul %255, %257, %cst_52 {dimension_numbers = #tpu.dot_dimension_numbers<[1], [0], [0], [1], [0, 0, 1, 1], [], []>} : vector<16x128xf32>, vector<128x384xf32>, vector<16x384xf32> -> vector<16x384xf32>
    %c1_53 = arith.constant 1 : index
    %c0_54 = arith.constant 0 : index
    %c0_55 = arith.constant 0 : index
    %259 = vector.load %arg3[%c1_53, %c0_54, %c0_55] : memref<2x1x384xf32, #tpu.memory_space<vmem>>, vector<1x1x384xf32>
    %260 = vector.shape_cast %259 : vector<1x1x384xf32> to vector<1x384xf32>
    %261 = vector.broadcast %260 : vector<1x384xf32> to vector<16x384xf32>
    %262 = arith.addf %258, %261 : vector<16x384xf32>
    %c1_56 = arith.constant 1 : index
    %c0_57 = arith.constant 0 : index
    %c0_58 = arith.constant 0 : index
    %263 = vector.load %arg2[%c1_56, %c0_57, %c0_58] : memref<2x128x384xf32, #tpu.memory_space<vmem>>, vector<1x128x384xf32>
    %264 = vector.shape_cast %263 : vector<1x128x384xf32> to vector<128x384xf32>
    %c1_59 = arith.constant 1 : index
    %c0_60 = arith.constant 0 : index
    %c0_61 = arith.constant 0 : index
    %265 = vector.load %arg4[%c1_59, %c0_60, %c0_61] : memref<2x1x128xf32, #tpu.memory_space<vmem>>, vector<1x1x128xf32>
    %266 = vector.shape_cast %265 : vector<1x1x128xf32> to vector<1x128xf32>
    %cst_62 = arith.constant 0.000000e+00 : f32
    %267 = vector.broadcast %cst_62 : f32 to vector<2x128xf32>
    %268 = vector.extract_strided_slice %262 {offsets = [0, 0], sizes = [2, 384], strides = [1, 1]} : vector<16x384xf32> to vector<2x384xf32>
    %cst_63 = arith.constant dense<0.000000e+00> : vector<2x384xf32>
    %269 = tpu.matmul %267, %264, %cst_63 {dimension_numbers = #tpu.dot_dimension_numbers<[1], [0], [0], [1], [0, 0, 1, 1], [], []>} : vector<2x128xf32>, vector<128x384xf32>, vector<2x384xf32> -> vector<2x384xf32>
    %270 = vector.extract_strided_slice %268 {offsets = [0, 0], sizes = [2, 128], strides = [1, 1]} : vector<2x384xf32> to vector<2x128xf32>
    %271 = vector.extract_strided_slice %269 {offsets = [0, 0], sizes = [2, 128], strides = [1, 1]} : vector<2x384xf32> to vector<2x128xf32>
    %272 = arith.addf %270, %271 : vector<2x128xf32>
    %273 = arith.negf %272 : vector<2x128xf32>
    %274 = math.exp %273 : vector<2x128xf32>
    %cst_64 = arith.constant 1.000000e+00 : f32
    %275 = vector.broadcast %cst_64 : f32 to vector<2x128xf32>
    %276 = arith.addf %275, %274 : vector<2x128xf32>
    %277 = arith.divf %275, %276 : vector<2x128xf32>
    %278 = vector.extract_strided_slice %268 {offsets = [0, 128], sizes = [2, 128], strides = [1, 1]} : vector<2x384xf32> to vector<2x128xf32>
    %279 = vector.extract_strided_slice %269 {offsets = [0, 128], sizes = [2, 128], strides = [1, 1]} : vector<2x384xf32> to vector<2x128xf32>
    %280 = arith.addf %278, %279 : vector<2x128xf32>
    %281 = arith.negf %280 : vector<2x128xf32>
    %282 = math.exp %281 : vector<2x128xf32>
    %cst_65 = arith.constant 1.000000e+00 : f32
    %283 = vector.broadcast %cst_65 : f32 to vector<2x128xf32>
    %284 = arith.addf %283, %282 : vector<2x128xf32>
    %285 = arith.divf %283, %284 : vector<2x128xf32>
    %286 = vector.extract_strided_slice %268 {offsets = [0, 256], sizes = [2, 128], strides = [1, 1]} : vector<2x384xf32> to vector<2x128xf32>
    %287 = vector.extract_strided_slice %269 {offsets = [0, 256], sizes = [2, 128], strides = [1, 1]} : vector<2x384xf32> to vector<2x128xf32>
    %288 = vector.broadcast %266 : vector<1x128xf32> to vector<2x128xf32>
    %289 = arith.addf %287, %288 : vector<2x128xf32>
    %290 = arith.mulf %277, %289 : vector<2x128xf32>
    %291 = arith.addf %286, %290 : vector<2x128xf32>
    %292 = math.tanh %291 : vector<2x128xf32>
    %cst_66 = arith.constant 1.000000e+00 : f32
    %293 = vector.broadcast %cst_66 : f32 to vector<2x128xf32>
    %294 = arith.subf %293, %285 : vector<2x128xf32>
    %295 = arith.mulf %294, %292 : vector<2x128xf32>
    %296 = arith.mulf %285, %267 : vector<2x128xf32>
    %297 = arith.addf %295, %296 : vector<2x128xf32>
    %298 = vector.extract_strided_slice %262 {offsets = [2, 0], sizes = [2, 384], strides = [1, 1]} : vector<16x384xf32> to vector<2x384xf32>
    %cst_67 = arith.constant dense<0.000000e+00> : vector<2x384xf32>
    %299 = tpu.matmul %297, %264, %cst_67 {dimension_numbers = #tpu.dot_dimension_numbers<[1], [0], [0], [1], [0, 0, 1, 1], [], []>} : vector<2x128xf32>, vector<128x384xf32>, vector<2x384xf32> -> vector<2x384xf32>
    %300 = vector.extract_strided_slice %298 {offsets = [0, 0], sizes = [2, 128], strides = [1, 1]} : vector<2x384xf32> to vector<2x128xf32>
    %301 = vector.extract_strided_slice %299 {offsets = [0, 0], sizes = [2, 128], strides = [1, 1]} : vector<2x384xf32> to vector<2x128xf32>
    %302 = arith.addf %300, %301 : vector<2x128xf32>
    %303 = arith.negf %302 : vector<2x128xf32>
    %304 = math.exp %303 : vector<2x128xf32>
    %cst_68 = arith.constant 1.000000e+00 : f32
    %305 = vector.broadcast %cst_68 : f32 to vector<2x128xf32>
    %306 = arith.addf %305, %304 : vector<2x128xf32>
    %307 = arith.divf %305, %306 : vector<2x128xf32>
    %308 = vector.extract_strided_slice %298 {offsets = [0, 128], sizes = [2, 128], strides = [1, 1]} : vector<2x384xf32> to vector<2x128xf32>
    %309 = vector.extract_strided_slice %299 {offsets = [0, 128], sizes = [2, 128], strides = [1, 1]} : vector<2x384xf32> to vector<2x128xf32>
    %310 = arith.addf %308, %309 : vector<2x128xf32>
    %311 = arith.negf %310 : vector<2x128xf32>
    %312 = math.exp %311 : vector<2x128xf32>
    %cst_69 = arith.constant 1.000000e+00 : f32
    %313 = vector.broadcast %cst_69 : f32 to vector<2x128xf32>
    %314 = arith.addf %313, %312 : vector<2x128xf32>
    %315 = arith.divf %313, %314 : vector<2x128xf32>
    %316 = vector.extract_strided_slice %298 {offsets = [0, 256], sizes = [2, 128], strides = [1, 1]} : vector<2x384xf32> to vector<2x128xf32>
    %317 = vector.extract_strided_slice %299 {offsets = [0, 256], sizes = [2, 128], strides = [1, 1]} : vector<2x384xf32> to vector<2x128xf32>
    %318 = vector.broadcast %266 : vector<1x128xf32> to vector<2x128xf32>
    %319 = arith.addf %317, %318 : vector<2x128xf32>
    %320 = arith.mulf %307, %319 : vector<2x128xf32>
    %321 = arith.addf %316, %320 : vector<2x128xf32>
    %322 = math.tanh %321 : vector<2x128xf32>
    %cst_70 = arith.constant 1.000000e+00 : f32
    %323 = vector.broadcast %cst_70 : f32 to vector<2x128xf32>
    %324 = arith.subf %323, %315 : vector<2x128xf32>
    %325 = arith.mulf %324, %322 : vector<2x128xf32>
    %326 = arith.mulf %315, %297 : vector<2x128xf32>
    %327 = arith.addf %325, %326 : vector<2x128xf32>
    %328 = vector.extract_strided_slice %262 {offsets = [4, 0], sizes = [2, 384], strides = [1, 1]} : vector<16x384xf32> to vector<2x384xf32>
    %cst_71 = arith.constant dense<0.000000e+00> : vector<2x384xf32>
    %329 = tpu.matmul %327, %264, %cst_71 {dimension_numbers = #tpu.dot_dimension_numbers<[1], [0], [0], [1], [0, 0, 1, 1], [], []>} : vector<2x128xf32>, vector<128x384xf32>, vector<2x384xf32> -> vector<2x384xf32>
    %330 = vector.extract_strided_slice %328 {offsets = [0, 0], sizes = [2, 128], strides = [1, 1]} : vector<2x384xf32> to vector<2x128xf32>
    %331 = vector.extract_strided_slice %329 {offsets = [0, 0], sizes = [2, 128], strides = [1, 1]} : vector<2x384xf32> to vector<2x128xf32>
    %332 = arith.addf %330, %331 : vector<2x128xf32>
    %333 = arith.negf %332 : vector<2x128xf32>
    %334 = math.exp %333 : vector<2x128xf32>
    %cst_72 = arith.constant 1.000000e+00 : f32
    %335 = vector.broadcast %cst_72 : f32 to vector<2x128xf32>
    %336 = arith.addf %335, %334 : vector<2x128xf32>
    %337 = arith.divf %335, %336 : vector<2x128xf32>
    %338 = vector.extract_strided_slice %328 {offsets = [0, 128], sizes = [2, 128], strides = [1, 1]} : vector<2x384xf32> to vector<2x128xf32>
    %339 = vector.extract_strided_slice %329 {offsets = [0, 128], sizes = [2, 128], strides = [1, 1]} : vector<2x384xf32> to vector<2x128xf32>
    %340 = arith.addf %338, %339 : vector<2x128xf32>
    %341 = arith.negf %340 : vector<2x128xf32>
    %342 = math.exp %341 : vector<2x128xf32>
    %cst_73 = arith.constant 1.000000e+00 : f32
    %343 = vector.broadcast %cst_73 : f32 to vector<2x128xf32>
    %344 = arith.addf %343, %342 : vector<2x128xf32>
    %345 = arith.divf %343, %344 : vector<2x128xf32>
    %346 = vector.extract_strided_slice %328 {offsets = [0, 256], sizes = [2, 128], strides = [1, 1]} : vector<2x384xf32> to vector<2x128xf32>
    %347 = vector.extract_strided_slice %329 {offsets = [0, 256], sizes = [2, 128], strides = [1, 1]} : vector<2x384xf32> to vector<2x128xf32>
    %348 = vector.broadcast %266 : vector<1x128xf32> to vector<2x128xf32>
    %349 = arith.addf %347, %348 : vector<2x128xf32>
    %350 = arith.mulf %337, %349 : vector<2x128xf32>
    %351 = arith.addf %346, %350 : vector<2x128xf32>
    %352 = math.tanh %351 : vector<2x128xf32>
    %cst_74 = arith.constant 1.000000e+00 : f32
    %353 = vector.broadcast %cst_74 : f32 to vector<2x128xf32>
    %354 = arith.subf %353, %345 : vector<2x128xf32>
    %355 = arith.mulf %354, %352 : vector<2x128xf32>
    %356 = arith.mulf %345, %327 : vector<2x128xf32>
    %357 = arith.addf %355, %356 : vector<2x128xf32>
    %358 = vector.extract_strided_slice %262 {offsets = [6, 0], sizes = [2, 384], strides = [1, 1]} : vector<16x384xf32> to vector<2x384xf32>
    %cst_75 = arith.constant dense<0.000000e+00> : vector<2x384xf32>
    %359 = tpu.matmul %357, %264, %cst_75 {dimension_numbers = #tpu.dot_dimension_numbers<[1], [0], [0], [1], [0, 0, 1, 1], [], []>} : vector<2x128xf32>, vector<128x384xf32>, vector<2x384xf32> -> vector<2x384xf32>
    %360 = vector.extract_strided_slice %358 {offsets = [0, 0], sizes = [2, 128], strides = [1, 1]} : vector<2x384xf32> to vector<2x128xf32>
    %361 = vector.extract_strided_slice %359 {offsets = [0, 0], sizes = [2, 128], strides = [1, 1]} : vector<2x384xf32> to vector<2x128xf32>
    %362 = arith.addf %360, %361 : vector<2x128xf32>
    %363 = arith.negf %362 : vector<2x128xf32>
    %364 = math.exp %363 : vector<2x128xf32>
    %cst_76 = arith.constant 1.000000e+00 : f32
    %365 = vector.broadcast %cst_76 : f32 to vector<2x128xf32>
    %366 = arith.addf %365, %364 : vector<2x128xf32>
    %367 = arith.divf %365, %366 : vector<2x128xf32>
    %368 = vector.extract_strided_slice %358 {offsets = [0, 128], sizes = [2, 128], strides = [1, 1]} : vector<2x384xf32> to vector<2x128xf32>
    %369 = vector.extract_strided_slice %359 {offsets = [0, 128], sizes = [2, 128], strides = [1, 1]} : vector<2x384xf32> to vector<2x128xf32>
    %370 = arith.addf %368, %369 : vector<2x128xf32>
    %371 = arith.negf %370 : vector<2x128xf32>
    %372 = math.exp %371 : vector<2x128xf32>
    %cst_77 = arith.constant 1.000000e+00 : f32
    %373 = vector.broadcast %cst_77 : f32 to vector<2x128xf32>
    %374 = arith.addf %373, %372 : vector<2x128xf32>
    %375 = arith.divf %373, %374 : vector<2x128xf32>
    %376 = vector.extract_strided_slice %358 {offsets = [0, 256], sizes = [2, 128], strides = [1, 1]} : vector<2x384xf32> to vector<2x128xf32>
    %377 = vector.extract_strided_slice %359 {offsets = [0, 256], sizes = [2, 128], strides = [1, 1]} : vector<2x384xf32> to vector<2x128xf32>
    %378 = vector.broadcast %266 : vector<1x128xf32> to vector<2x128xf32>
    %379 = arith.addf %377, %378 : vector<2x128xf32>
    %380 = arith.mulf %367, %379 : vector<2x128xf32>
    %381 = arith.addf %376, %380 : vector<2x128xf32>
    %382 = math.tanh %381 : vector<2x128xf32>
    %cst_78 = arith.constant 1.000000e+00 : f32
    %383 = vector.broadcast %cst_78 : f32 to vector<2x128xf32>
    %384 = arith.subf %383, %375 : vector<2x128xf32>
    %385 = arith.mulf %384, %382 : vector<2x128xf32>
    %386 = arith.mulf %375, %357 : vector<2x128xf32>
    %387 = arith.addf %385, %386 : vector<2x128xf32>
    %388 = vector.extract_strided_slice %262 {offsets = [8, 0], sizes = [2, 384], strides = [1, 1]} : vector<16x384xf32> to vector<2x384xf32>
    %cst_79 = arith.constant dense<0.000000e+00> : vector<2x384xf32>
    %389 = tpu.matmul %387, %264, %cst_79 {dimension_numbers = #tpu.dot_dimension_numbers<[1], [0], [0], [1], [0, 0, 1, 1], [], []>} : vector<2x128xf32>, vector<128x384xf32>, vector<2x384xf32> -> vector<2x384xf32>
    %390 = vector.extract_strided_slice %388 {offsets = [0, 0], sizes = [2, 128], strides = [1, 1]} : vector<2x384xf32> to vector<2x128xf32>
    %391 = vector.extract_strided_slice %389 {offsets = [0, 0], sizes = [2, 128], strides = [1, 1]} : vector<2x384xf32> to vector<2x128xf32>
    %392 = arith.addf %390, %391 : vector<2x128xf32>
    %393 = arith.negf %392 : vector<2x128xf32>
    %394 = math.exp %393 : vector<2x128xf32>
    %cst_80 = arith.constant 1.000000e+00 : f32
    %395 = vector.broadcast %cst_80 : f32 to vector<2x128xf32>
    %396 = arith.addf %395, %394 : vector<2x128xf32>
    %397 = arith.divf %395, %396 : vector<2x128xf32>
    %398 = vector.extract_strided_slice %388 {offsets = [0, 128], sizes = [2, 128], strides = [1, 1]} : vector<2x384xf32> to vector<2x128xf32>
    %399 = vector.extract_strided_slice %389 {offsets = [0, 128], sizes = [2, 128], strides = [1, 1]} : vector<2x384xf32> to vector<2x128xf32>
    %400 = arith.addf %398, %399 : vector<2x128xf32>
    %401 = arith.negf %400 : vector<2x128xf32>
    %402 = math.exp %401 : vector<2x128xf32>
    %cst_81 = arith.constant 1.000000e+00 : f32
    %403 = vector.broadcast %cst_81 : f32 to vector<2x128xf32>
    %404 = arith.addf %403, %402 : vector<2x128xf32>
    %405 = arith.divf %403, %404 : vector<2x128xf32>
    %406 = vector.extract_strided_slice %388 {offsets = [0, 256], sizes = [2, 128], strides = [1, 1]} : vector<2x384xf32> to vector<2x128xf32>
    %407 = vector.extract_strided_slice %389 {offsets = [0, 256], sizes = [2, 128], strides = [1, 1]} : vector<2x384xf32> to vector<2x128xf32>
    %408 = vector.broadcast %266 : vector<1x128xf32> to vector<2x128xf32>
    %409 = arith.addf %407, %408 : vector<2x128xf32>
    %410 = arith.mulf %397, %409 : vector<2x128xf32>
    %411 = arith.addf %406, %410 : vector<2x128xf32>
    %412 = math.tanh %411 : vector<2x128xf32>
    %cst_82 = arith.constant 1.000000e+00 : f32
    %413 = vector.broadcast %cst_82 : f32 to vector<2x128xf32>
    %414 = arith.subf %413, %405 : vector<2x128xf32>
    %415 = arith.mulf %414, %412 : vector<2x128xf32>
    %416 = arith.mulf %405, %387 : vector<2x128xf32>
    %417 = arith.addf %415, %416 : vector<2x128xf32>
    %418 = vector.extract_strided_slice %262 {offsets = [10, 0], sizes = [2, 384], strides = [1, 1]} : vector<16x384xf32> to vector<2x384xf32>
    %cst_83 = arith.constant dense<0.000000e+00> : vector<2x384xf32>
    %419 = tpu.matmul %417, %264, %cst_83 {dimension_numbers = #tpu.dot_dimension_numbers<[1], [0], [0], [1], [0, 0, 1, 1], [], []>} : vector<2x128xf32>, vector<128x384xf32>, vector<2x384xf32> -> vector<2x384xf32>
    %420 = vector.extract_strided_slice %418 {offsets = [0, 0], sizes = [2, 128], strides = [1, 1]} : vector<2x384xf32> to vector<2x128xf32>
    %421 = vector.extract_strided_slice %419 {offsets = [0, 0], sizes = [2, 128], strides = [1, 1]} : vector<2x384xf32> to vector<2x128xf32>
    %422 = arith.addf %420, %421 : vector<2x128xf32>
    %423 = arith.negf %422 : vector<2x128xf32>
    %424 = math.exp %423 : vector<2x128xf32>
    %cst_84 = arith.constant 1.000000e+00 : f32
    %425 = vector.broadcast %cst_84 : f32 to vector<2x128xf32>
    %426 = arith.addf %425, %424 : vector<2x128xf32>
    %427 = arith.divf %425, %426 : vector<2x128xf32>
    %428 = vector.extract_strided_slice %418 {offsets = [0, 128], sizes = [2, 128], strides = [1, 1]} : vector<2x384xf32> to vector<2x128xf32>
    %429 = vector.extract_strided_slice %419 {offsets = [0, 128], sizes = [2, 128], strides = [1, 1]} : vector<2x384xf32> to vector<2x128xf32>
    %430 = arith.addf %428, %429 : vector<2x128xf32>
    %431 = arith.negf %430 : vector<2x128xf32>
    %432 = math.exp %431 : vector<2x128xf32>
    %cst_85 = arith.constant 1.000000e+00 : f32
    %433 = vector.broadcast %cst_85 : f32 to vector<2x128xf32>
    %434 = arith.addf %433, %432 : vector<2x128xf32>
    %435 = arith.divf %433, %434 : vector<2x128xf32>
    %436 = vector.extract_strided_slice %418 {offsets = [0, 256], sizes = [2, 128], strides = [1, 1]} : vector<2x384xf32> to vector<2x128xf32>
    %437 = vector.extract_strided_slice %419 {offsets = [0, 256], sizes = [2, 128], strides = [1, 1]} : vector<2x384xf32> to vector<2x128xf32>
    %438 = vector.broadcast %266 : vector<1x128xf32> to vector<2x128xf32>
    %439 = arith.addf %437, %438 : vector<2x128xf32>
    %440 = arith.mulf %427, %439 : vector<2x128xf32>
    %441 = arith.addf %436, %440 : vector<2x128xf32>
    %442 = math.tanh %441 : vector<2x128xf32>
    %cst_86 = arith.constant 1.000000e+00 : f32
    %443 = vector.broadcast %cst_86 : f32 to vector<2x128xf32>
    %444 = arith.subf %443, %435 : vector<2x128xf32>
    %445 = arith.mulf %444, %442 : vector<2x128xf32>
    %446 = arith.mulf %435, %417 : vector<2x128xf32>
    %447 = arith.addf %445, %446 : vector<2x128xf32>
    %448 = vector.extract_strided_slice %262 {offsets = [12, 0], sizes = [2, 384], strides = [1, 1]} : vector<16x384xf32> to vector<2x384xf32>
    %cst_87 = arith.constant dense<0.000000e+00> : vector<2x384xf32>
    %449 = tpu.matmul %447, %264, %cst_87 {dimension_numbers = #tpu.dot_dimension_numbers<[1], [0], [0], [1], [0, 0, 1, 1], [], []>} : vector<2x128xf32>, vector<128x384xf32>, vector<2x384xf32> -> vector<2x384xf32>
    %450 = vector.extract_strided_slice %448 {offsets = [0, 0], sizes = [2, 128], strides = [1, 1]} : vector<2x384xf32> to vector<2x128xf32>
    %451 = vector.extract_strided_slice %449 {offsets = [0, 0], sizes = [2, 128], strides = [1, 1]} : vector<2x384xf32> to vector<2x128xf32>
    %452 = arith.addf %450, %451 : vector<2x128xf32>
    %453 = arith.negf %452 : vector<2x128xf32>
    %454 = math.exp %453 : vector<2x128xf32>
    %cst_88 = arith.constant 1.000000e+00 : f32
    %455 = vector.broadcast %cst_88 : f32 to vector<2x128xf32>
    %456 = arith.addf %455, %454 : vector<2x128xf32>
    %457 = arith.divf %455, %456 : vector<2x128xf32>
    %458 = vector.extract_strided_slice %448 {offsets = [0, 128], sizes = [2, 128], strides = [1, 1]} : vector<2x384xf32> to vector<2x128xf32>
    %459 = vector.extract_strided_slice %449 {offsets = [0, 128], sizes = [2, 128], strides = [1, 1]} : vector<2x384xf32> to vector<2x128xf32>
    %460 = arith.addf %458, %459 : vector<2x128xf32>
    %461 = arith.negf %460 : vector<2x128xf32>
    %462 = math.exp %461 : vector<2x128xf32>
    %cst_89 = arith.constant 1.000000e+00 : f32
    %463 = vector.broadcast %cst_89 : f32 to vector<2x128xf32>
    %464 = arith.addf %463, %462 : vector<2x128xf32>
    %465 = arith.divf %463, %464 : vector<2x128xf32>
    %466 = vector.extract_strided_slice %448 {offsets = [0, 256], sizes = [2, 128], strides = [1, 1]} : vector<2x384xf32> to vector<2x128xf32>
    %467 = vector.extract_strided_slice %449 {offsets = [0, 256], sizes = [2, 128], strides = [1, 1]} : vector<2x384xf32> to vector<2x128xf32>
    %468 = vector.broadcast %266 : vector<1x128xf32> to vector<2x128xf32>
    %469 = arith.addf %467, %468 : vector<2x128xf32>
    %470 = arith.mulf %457, %469 : vector<2x128xf32>
    %471 = arith.addf %466, %470 : vector<2x128xf32>
    %472 = math.tanh %471 : vector<2x128xf32>
    %cst_90 = arith.constant 1.000000e+00 : f32
    %473 = vector.broadcast %cst_90 : f32 to vector<2x128xf32>
    %474 = arith.subf %473, %465 : vector<2x128xf32>
    %475 = arith.mulf %474, %472 : vector<2x128xf32>
    %476 = arith.mulf %465, %447 : vector<2x128xf32>
    %477 = arith.addf %475, %476 : vector<2x128xf32>
    %478 = vector.extract_strided_slice %262 {offsets = [14, 0], sizes = [2, 384], strides = [1, 1]} : vector<16x384xf32> to vector<2x384xf32>
    %cst_91 = arith.constant dense<0.000000e+00> : vector<2x384xf32>
    %479 = tpu.matmul %477, %264, %cst_91 {dimension_numbers = #tpu.dot_dimension_numbers<[1], [0], [0], [1], [0, 0, 1, 1], [], []>} : vector<2x128xf32>, vector<128x384xf32>, vector<2x384xf32> -> vector<2x384xf32>
    %480 = vector.extract_strided_slice %478 {offsets = [0, 0], sizes = [2, 128], strides = [1, 1]} : vector<2x384xf32> to vector<2x128xf32>
    %481 = vector.extract_strided_slice %479 {offsets = [0, 0], sizes = [2, 128], strides = [1, 1]} : vector<2x384xf32> to vector<2x128xf32>
    %482 = arith.addf %480, %481 : vector<2x128xf32>
    %483 = arith.negf %482 : vector<2x128xf32>
    %484 = math.exp %483 : vector<2x128xf32>
    %cst_92 = arith.constant 1.000000e+00 : f32
    %485 = vector.broadcast %cst_92 : f32 to vector<2x128xf32>
    %486 = arith.addf %485, %484 : vector<2x128xf32>
    %487 = arith.divf %485, %486 : vector<2x128xf32>
    %488 = vector.extract_strided_slice %478 {offsets = [0, 128], sizes = [2, 128], strides = [1, 1]} : vector<2x384xf32> to vector<2x128xf32>
    %489 = vector.extract_strided_slice %479 {offsets = [0, 128], sizes = [2, 128], strides = [1, 1]} : vector<2x384xf32> to vector<2x128xf32>
    %490 = arith.addf %488, %489 : vector<2x128xf32>
    %491 = arith.negf %490 : vector<2x128xf32>
    %492 = math.exp %491 : vector<2x128xf32>
    %cst_93 = arith.constant 1.000000e+00 : f32
    %493 = vector.broadcast %cst_93 : f32 to vector<2x128xf32>
    %494 = arith.addf %493, %492 : vector<2x128xf32>
    %495 = arith.divf %493, %494 : vector<2x128xf32>
    %496 = vector.extract_strided_slice %478 {offsets = [0, 256], sizes = [2, 128], strides = [1, 1]} : vector<2x384xf32> to vector<2x128xf32>
    %497 = vector.extract_strided_slice %479 {offsets = [0, 256], sizes = [2, 128], strides = [1, 1]} : vector<2x384xf32> to vector<2x128xf32>
    %498 = vector.broadcast %266 : vector<1x128xf32> to vector<2x128xf32>
    %499 = arith.addf %497, %498 : vector<2x128xf32>
    %500 = arith.mulf %487, %499 : vector<2x128xf32>
    %501 = arith.addf %496, %500 : vector<2x128xf32>
    %502 = math.tanh %501 : vector<2x128xf32>
    %cst_94 = arith.constant 1.000000e+00 : f32
    %503 = vector.broadcast %cst_94 : f32 to vector<2x128xf32>
    %504 = arith.subf %503, %495 : vector<2x128xf32>
    %505 = arith.mulf %504, %502 : vector<2x128xf32>
    %506 = arith.mulf %495, %477 : vector<2x128xf32>
    %507 = arith.addf %505, %506 : vector<2x128xf32>
    %508 = vector.shape_cast %297 : vector<2x128xf32> to vector<2x1x128xf32>
    %509 = vector.shape_cast %327 : vector<2x128xf32> to vector<2x1x128xf32>
    %510 = vector.shape_cast %357 : vector<2x128xf32> to vector<2x1x128xf32>
    %511 = vector.shape_cast %387 : vector<2x128xf32> to vector<2x1x128xf32>
    %512 = vector.shape_cast %417 : vector<2x128xf32> to vector<2x1x128xf32>
    %513 = vector.shape_cast %447 : vector<2x128xf32> to vector<2x1x128xf32>
    %514 = vector.shape_cast %477 : vector<2x128xf32> to vector<2x1x128xf32>
    %515 = vector.shape_cast %507 : vector<2x128xf32> to vector<2x1x128xf32>
    %516 = tpu.concatenate %508, %509, %510, %511, %512, %513, %514, %515 in 1 : vector<2x1x128xf32>, vector<2x1x128xf32>, vector<2x1x128xf32>, vector<2x1x128xf32>, vector<2x1x128xf32>, vector<2x1x128xf32>, vector<2x1x128xf32>, vector<2x1x128xf32> -> vector<2x8x128xf32>
    %517 = vector.shape_cast %516 : vector<2x8x128xf32> to vector<16x128xf32>
    %c0_95 = arith.constant 0 : index
    %c0_96 = arith.constant 0 : index
    %518 = vector.load %arg5[%c0_95, %c0_96] : memref<128x384xf32, #tpu.memory_space<vmem>>, vector<128x384xf32>
    %cst_97 = arith.constant dense<0.000000e+00> : vector<16x384xf32>
    %519 = tpu.matmul %517, %518, %cst_97 {dimension_numbers = #tpu.dot_dimension_numbers<[1], [0], [0], [1], [0, 0, 1, 1], [], []>} : vector<16x128xf32>, vector<128x384xf32>, vector<16x384xf32> -> vector<16x384xf32>
    %520 = vector.extract_strided_slice %519 {offsets = [0, 0], sizes = [16, 128], strides = [1, 1]} : vector<16x384xf32> to vector<16x128xf32>
    %521 = vector.shape_cast %520 : vector<16x128xf32> to vector<2x8x128xf32>
    %522 = vector.extract_strided_slice %519 {offsets = [0, 128], sizes = [16, 128], strides = [1, 1]} : vector<16x384xf32> to vector<16x128xf32>
    %523 = vector.shape_cast %522 : vector<16x128xf32> to vector<2x8x128xf32>
    %524 = vector.extract_strided_slice %519 {offsets = [0, 256], sizes = [16, 128], strides = [1, 1]} : vector<16x384xf32> to vector<16x128xf32>
    %525 = vector.shape_cast %524 : vector<16x128xf32> to vector<2x8x128xf32>
    "tpu.trace_start"() <{level = 10 : i32, message = "nqd,nkd->nqk"}> : () -> ()
    %cst_98 = arith.constant dense<0.000000e+00> : vector<2x8x8xf32>
    %526 = tpu.matmul %521, %523, %cst_98 {dimension_numbers = #tpu.dot_dimension_numbers<[2], [2], [1], [1], [0, 0, 0, 1, 1, 1], [0], [0]>} : vector<2x8x128xf32>, vector<2x8x128xf32>, vector<2x8x8xf32> -> vector<2x8x8xf32>
    "tpu.trace_stop"() : () -> ()
    %cst_99 = arith.constant dense<0xFF800000> : vector<2x8xf32>
    %527 = vector.multi_reduction <maximumf>, %526, %cst_99 [2] : vector<2x8x8xf32> to vector<2x8xf32>
    %528 = vector.shape_cast %527 : vector<2x8xf32> to vector<2x8x1xf32>
    %529 = vector.broadcast %528 : vector<2x8x1xf32> to vector<2x8x8xf32>
    %530 = arith.subf %526, %529 : vector<2x8x8xf32>
    %531 = math.exp %530 : vector<2x8x8xf32>
    %cst_100 = arith.constant dense<0.000000e+00> : vector<2x8xf32>
    %532 = vector.multi_reduction <add>, %531, %cst_100 [2] : vector<2x8x8xf32> to vector<2x8xf32>
    %533 = vector.shape_cast %532 : vector<2x8xf32> to vector<2x8x1xf32>
    %534 = tpu.reciprocal %533 {approx = true} : vector<2x8x1xf32> -> vector<2x8x1xf32>
    %535 = vector.broadcast %534 : vector<2x8x1xf32> to vector<2x8x8xf32>
    %536 = arith.mulf %531, %535 : vector<2x8x8xf32>
    "tpu.trace_start"() <{level = 10 : i32, message = "nqk,nkd->nqd"}> : () -> ()
    %cst_101 = arith.constant dense<0.000000e+00> : vector<2x8x128xf32>
    %537 = tpu.matmul %536, %525, %cst_101 {dimension_numbers = #tpu.dot_dimension_numbers<[2], [1], [1], [2], [0, 0, 0, 1, 1, 2], [0], [0]>} : vector<2x8x8xf32>, vector<2x8x128xf32>, vector<2x8x128xf32> -> vector<2x8x128xf32>
    "tpu.trace_stop"() : () -> ()
    %538 = vector.shape_cast %537 : vector<2x8x128xf32> to vector<16x128xf32>
    %c0_102 = arith.constant 0 : index
    %c0_103 = arith.constant 0 : index
    %539 = vector.load %arg6[%c0_102, %c0_103] : memref<128x128xf32, #tpu.memory_space<vmem>>, vector<128x128xf32>
    %cst_104 = arith.constant dense<0.000000e+00> : vector<16x128xf32>
    %540 = tpu.matmul %538, %539, %cst_104 {dimension_numbers = #tpu.dot_dimension_numbers<[1], [0], [0], [1], [0, 0, 1, 1], [], []>} : vector<16x128xf32>, vector<128x128xf32>, vector<16x128xf32> -> vector<16x128xf32>
    %c0_105 = arith.constant 0 : index
    %c0_106 = arith.constant 0 : index
    %541 = vector.load %arg7[%c0_105, %c0_106] : memref<1x128xf32, #tpu.memory_space<vmem>>, vector<1x128xf32>
    %542 = vector.broadcast %541 : vector<1x128xf32> to vector<16x128xf32>
    %543 = arith.addf %540, %542 : vector<16x128xf32>
    %544 = arith.addf %517, %543 : vector<16x128xf32>
    %cst_107 = arith.constant dense<0.000000e+00> : vector<16xf32>
    %545 = vector.multi_reduction <add>, %544, %cst_107 [1] : vector<16x128xf32> to vector<16xf32>
    %546 = vector.shape_cast %545 : vector<16xf32> to vector<16x1xf32>
    %cst_108 = arith.constant 3.125000e-02 : f32
    %547 = vector.broadcast %cst_108 : f32 to vector<16x1xf32>
    %548 = arith.mulf %546, %547 : vector<16x1xf32>
    %549 = arith.mulf %544, %544 : vector<16x128xf32>
    %cst_109 = arith.constant dense<0.000000e+00> : vector<16xf32>
    %550 = vector.multi_reduction <add>, %549, %cst_109 [1] : vector<16x128xf32> to vector<16xf32>
    %551 = vector.shape_cast %550 : vector<16xf32> to vector<16x1xf32>
    %cst_110 = arith.constant 3.125000e-02 : f32
    %552 = vector.broadcast %cst_110 : f32 to vector<16x1xf32>
    %553 = arith.mulf %551, %552 : vector<16x1xf32>
    %554 = arith.mulf %548, %548 : vector<16x1xf32>
    %555 = arith.subf %553, %554 : vector<16x1xf32>
    %556 = vector.broadcast %548 : vector<16x1xf32> to vector<16x128xf32>
    %557 = arith.subf %544, %556 : vector<16x128xf32>
    %cst_111 = arith.constant 9.99999997E-7 : f32
    %558 = vector.broadcast %cst_111 : f32 to vector<16x1xf32>
    %559 = arith.addf %555, %558 : vector<16x1xf32>
    %560 = math.rsqrt %559 : vector<16x1xf32>
    %561 = vector.broadcast %560 : vector<16x1xf32> to vector<16x128xf32>
    %562 = arith.mulf %557, %561 : vector<16x128xf32>
    %563 = vector.broadcast %0 : vector<1x128xf32> to vector<16x128xf32>
    %564 = arith.mulf %562, %563 : vector<16x128xf32>
    %565 = vector.broadcast %1 : vector<1x128xf32> to vector<16x128xf32>
    %566 = arith.addf %564, %565 : vector<16x128xf32>
    %c0_112 = arith.constant 0 : index
    %c0_113 = arith.constant 0 : index
    %567 = vector.load %arg8[%c0_112, %c0_113] : memref<128x128xf32, #tpu.memory_space<vmem>>, vector<128x128xf32>
    %cst_114 = arith.constant dense<0.000000e+00> : vector<16x128xf32>
    %568 = tpu.matmul %566, %567, %cst_114 {dimension_numbers = #tpu.dot_dimension_numbers<[1], [0], [0], [1], [0, 0, 1, 1], [], []>} : vector<16x128xf32>, vector<128x128xf32>, vector<16x128xf32> -> vector<16x128xf32>
    %c0_115 = arith.constant 0 : index
    %c0_116 = arith.constant 0 : index
    %569 = vector.load %arg9[%c0_115, %c0_116] : memref<1x128xf32, #tpu.memory_space<vmem>>, vector<1x128xf32>
    %570 = vector.broadcast %569 : vector<1x128xf32> to vector<16x128xf32>
    %571 = arith.addf %568, %570 : vector<16x128xf32>
    %cst_117 = arith.constant 0.000000e+00 : f32
    %572 = vector.broadcast %cst_117 : f32 to vector<16x128xf32>
    %573 = arith.maximumf %571, %572 : vector<16x128xf32>
    %c0_118 = arith.constant 0 : index
    %c0_119 = arith.constant 0 : index
    %574 = vector.load %arg10[%c0_118, %c0_119] : memref<128x128xf32, #tpu.memory_space<vmem>>, vector<128x128xf32>
    %cst_120 = arith.constant dense<0.000000e+00> : vector<16x128xf32>
    %575 = tpu.matmul %573, %574, %cst_120 {dimension_numbers = #tpu.dot_dimension_numbers<[1], [0], [0], [1], [0, 0, 1, 1], [], []>} : vector<16x128xf32>, vector<128x128xf32>, vector<16x128xf32> -> vector<16x128xf32>
    %c0_121 = arith.constant 0 : index
    %c0_122 = arith.constant 0 : index
    %576 = vector.load %arg11[%c0_121, %c0_122] : memref<1x128xf32, #tpu.memory_space<vmem>>, vector<1x128xf32>
    %577 = vector.broadcast %576 : vector<1x128xf32> to vector<16x128xf32>
    %578 = arith.addf %575, %577 : vector<16x128xf32>
    %579 = arith.addf %566, %578 : vector<16x128xf32>
    %cst_123 = arith.constant dense<0.000000e+00> : vector<16xf32>
    %580 = vector.multi_reduction <add>, %579, %cst_123 [1] : vector<16x128xf32> to vector<16xf32>
    %581 = vector.shape_cast %580 : vector<16xf32> to vector<16x1xf32>
    %cst_124 = arith.constant 3.125000e-02 : f32
    %582 = vector.broadcast %cst_124 : f32 to vector<16x1xf32>
    %583 = arith.mulf %581, %582 : vector<16x1xf32>
    %584 = arith.mulf %579, %579 : vector<16x128xf32>
    %cst_125 = arith.constant dense<0.000000e+00> : vector<16xf32>
    %585 = vector.multi_reduction <add>, %584, %cst_125 [1] : vector<16x128xf32> to vector<16xf32>
    %586 = vector.shape_cast %585 : vector<16xf32> to vector<16x1xf32>
    %cst_126 = arith.constant 3.125000e-02 : f32
    %587 = vector.broadcast %cst_126 : f32 to vector<16x1xf32>
    %588 = arith.mulf %586, %587 : vector<16x1xf32>
    %589 = arith.mulf %583, %583 : vector<16x1xf32>
    %590 = arith.subf %588, %589 : vector<16x1xf32>
    %591 = vector.broadcast %583 : vector<16x1xf32> to vector<16x128xf32>
    %592 = arith.subf %579, %591 : vector<16x128xf32>
    %cst_127 = arith.constant 9.99999997E-7 : f32
    %593 = vector.broadcast %cst_127 : f32 to vector<16x1xf32>
    %594 = arith.addf %590, %593 : vector<16x1xf32>
    %595 = math.rsqrt %594 : vector<16x1xf32>
    %596 = vector.broadcast %595 : vector<16x1xf32> to vector<16x128xf32>
    %597 = arith.mulf %592, %596 : vector<16x128xf32>
    %598 = vector.broadcast %0 : vector<1x128xf32> to vector<16x128xf32>
    %599 = arith.mulf %597, %598 : vector<16x128xf32>
    %600 = vector.broadcast %1 : vector<1x128xf32> to vector<16x128xf32>
    %601 = arith.addf %599, %600 : vector<16x128xf32>
    %c0_128 = arith.constant 0 : index
    %c0_129 = arith.constant 0 : index
    %602 = vector.load %arg14[%c0_128, %c0_129] : memref<16x128xf32, #tpu.memory_space<vmem>>, vector<16x128xf32>
    tpu.vector_store %arg14[%c0_128, %c0_129], %601 {strides = array<i32>} : memref<16x128xf32, #tpu.memory_space<vmem>>, vector<16x128xf32>,
    return
  }
}

</mosaic_0001>

<llo_original>
// kernel: gru_with_graph_attention.1
$region0: #{gru_with_graph_attention.1}
  #allocation0 [shape = 'u32[]', space=smem, size = 0x4, offset = 0x4, fixed_abs, tag = 'smem constant byte address 0x4 - core index']
  #allocation1 [shape = 'u32[144,128]{1,0:T(1,128)}', space=vmem, size = 0x12000, scoped, tag = 'internal scratch']
  %s0 = inlined_call_operand.vmem [shape: f32[16,128], index: 0, kind: input, shape index: {}]
  %s1 = inlined_call_operand.hbm [shape: f32[2,128,384], index: 1, kind: input, shape index: {}]
  %s2 = inlined_call_operand.hbm [shape: f32[2,128,384], index: 2, kind: input, shape index: {}]
  %s3 = inlined_call_operand.vmem [shape: f32[2,1,384], index: 3, kind: input, shape index: {}]
  %s4 = inlined_call_operand.vmem [shape: f32[2,1,128], index: 4, kind: input, shape index: {}]
  %s5 = inlined_call_operand.hbm [shape: f32[128,384], index: 5, kind: input, shape index: {}]
  %s6 = inlined_call_operand.hbm [shape: f32[128,128], index: 6, kind: input, shape index: {}]
  %s7 = inlined_call_operand.vmem [shape: f32[1,128], index: 7, kind: input, shape index: {}]
  %s8 = inlined_call_operand.hbm [shape: f32[128,128], index: 8, kind: input, shape index: {}]
  %s9 = inlined_call_operand.vmem [shape: f32[1,128], index: 9, kind: input, shape index: {}]
  %s10 = inlined_call_operand.hbm [shape: f32[128,128], index: 10, kind: input, shape index: {}]
  %s11 = inlined_call_operand.vmem [shape: f32[1,128], index: 11, kind: input, shape index: {}]
  %s12 = inlined_call_operand.vmem [shape: f32[1,128], index: 12, kind: input, shape index: {}]
  %s13 = inlined_call_operand.vmem [shape: f32[1,128], index: 13, kind: input, shape index: {}]
  %s14 = inlined_call_operand.vmem [shape: f32[16,128], index: 14, kind: output, shape index: {}]
  %s15 = sld [smem:[#allocation0]]
  $region90: #{gru_with_graph_attention.1} parent=0
    _
  %s17 = ssub.s32 1, %s15
  %s18 = scalar_select 0, %s17, %s15
  $region1: #{gru_with_graph_attention.1} parent=0
    #allocation2 [shape = 'u8[393216]{0}', space=vmem, size = 0x60000, scoped, tag = 'input window, operand 1, single buffered']
    #allocation3 [shape = 's32[1]{0}', space=sflag, size = 0x4, scoped, tag = 'scoped memory for gru_with_graph_attention.1']
    #allocation4 [shape = 'u8[393216]{0}', space=vmem, size = 0x60000, scoped, tag = 'input window, operand 2, single buffered']
    #allocation5 [shape = 's32[1]{0}', space=sflag, size = 0x4, scoped, tag = 'scoped memory for gru_with_graph_attention.1']
    #allocation6 [shape = 'u8[196608]{0}', space=vmem, size = 0x30000, scoped, tag = 'input window, operand 5, single buffered']
    #allocation7 [shape = 'u8[65536]{0}', space=vmem, size = 0x10000, scoped, tag = 'input window, operand 6, single buffered']
    #allocation8 [shape = 's32[1]{0}', space=sflag, size = 0x4, scoped, tag = 'scoped memory for gru_with_graph_attention.1']
    #allocation9 [shape = 'u8[65536]{0}', space=vmem, size = 0x10000, scoped, tag = 'input window, operand 8, single buffered']
    #allocation10 [shape = 'u8[65536]{0}', space=vmem, size = 0x10000, scoped, tag = 'input window, operand 10, single buffered']
    #allocation11 [shape = 's32[1]{0}', space=sflag, size = 0x4, scoped, tag = 'scoped memory for gru_with_graph_attention.1']
    %19 = vsyncpa [#allocation3], 0
    %20 = vsyncpa [#allocation5], 0
    %21 = vsyncpa [#allocation8], 0
    %22 = vsyncpa [#allocation11], 0
    // Predicated region
    $region2: #{gru_with_graph_attention.1} parent=1 // pred_check
      _
    $region3: #{gru_with_graph_attention.1} parent=1 // pred_check_branch
      %24 = sbr.rel (0) target = $region5
    $region4: #{gru_with_graph_attention.1} parent=1 // pred_region
      _
    $region5: #{gru_with_graph_attention.1} parent=1 // pred_fallthru
      _
    // Predicated region
    $region6: #{gru_with_graph_attention.1} parent=1 // pred_check
      _
    $region7: #{gru_with_graph_attention.1} parent=1 // pred_check_branch
      %26 = sbr.rel (0) target = $region9
    $region8: #{gru_with_graph_attention.1} parent=1 // pred_region
      %s28 = ssub.s32 12288, 12288
      %29 = vsyncadd [#allocation3], %s28
      %s30 = sshll.u32 [#allocation2], 4
      %s31 = int_to_ptr.vmem [resolvable:$true] %s30
      %36 = dma.hbm_to_vmem [thread:$0]  %s1, 12288, %s31, [#allocation3], 384, 384, 24
    $region9: #{gru_with_graph_attention.1} parent=1 // pred_fallthru
      _
    // Predicated region
    $region10: #{gru_with_graph_attention.1} parent=1 // pred_check
      _
    $region11: #{gru_with_graph_attention.1} parent=1 // pred_check_branch
      %38 = sbr.rel (0) target = $region13
    $region12: #{gru_with_graph_attention.1} parent=1 // pred_region
      %s40 = ssub.s32 12288, 12288
      %41 = vsyncadd [#allocation5], %s40
      %s42 = sshll.u32 [#allocation4], 4
      %s43 = int_to_ptr.vmem [resolvable:$true] %s42
      %48 = dma.hbm_to_vmem [thread:$0]  %s2, 12288, %s43, [#allocation5], 384, 384, 24
    $region13: #{gru_with_graph_attention.1} parent=1 // pred_fallthru
      _
    // Predicated region
    $region14: #{gru_with_graph_attention.1} parent=1 // pred_check
      _
    $region15: #{gru_with_graph_attention.1} parent=1 // pred_check_branch
      %50 = sbr.rel (0) target = $region17
    $region16: #{gru_with_graph_attention.1} parent=1 // pred_region
      _
    $region17: #{gru_with_graph_attention.1} parent=1 // pred_fallthru
      _
    // Predicated region
    $region18: #{gru_with_graph_attention.1} parent=1 // pred_check
      _
    $region19: #{gru_with_graph_attention.1} parent=1 // pred_check_branch
      %52 = sbr.rel (0) target = $region21
    $region20: #{gru_with_graph_attention.1} parent=1 // pred_region
      _
    $region21: #{gru_with_graph_attention.1} parent=1 // pred_fallthru
      _
    // Predicated region
    $region22: #{gru_with_graph_attention.1} parent=1 // pred_check
      _
    $region23: #{gru_with_graph_attention.1} parent=1 // pred_check_branch
      %54 = sbr.rel (0) target = $region25
    $region24: #{gru_with_graph_attention.1} parent=1 // pred_region
      %s56 = ssub.s32 6144, 6144
      %57 = vsyncadd [#allocation5], %s56
      %s58 = sshll.u32 [#allocation6], 4
      %s59 = int_to_ptr.vmem [resolvable:$true] %s58
      %64 = dma.hbm_to_vmem [thread:$0]  %s5, 6144, %s59, [#allocation5], 384, 384, 24
    $region25: #{gru_with_graph_attention.1} parent=1 // pred_fallthru
      _
    // Predicated region
    $region26: #{gru_with_graph_attention.1} parent=1 // pred_check
      _
    $region27: #{gru_with_graph_attention.1} parent=1 // pred_check_branch
      %66 = sbr.rel (0) target = $region29
    $region28: #{gru_with_graph_attention.1} parent=1 // pred_region
      %s68 = ssub.s32 2048, 2048
      %69 = vsyncadd [#allocation8], %s68
      %s70 = sshll.u32 [#allocation7], 4
      %s71 = int_to_ptr.vmem [resolvable:$true] %s70
      %76 = dma.hbm_to_vmem [thread:$0]  %s6, 2048, %s71, [#allocation8], 128, 128, 8
    $region29: #{gru_with_graph_attention.1} parent=1 // pred_fallthru
      _
    // Predicated region
    $region30: #{gru_with_graph_attention.1} parent=1 // pred_check
      _
    $region31: #{gru_with_graph_attention.1} parent=1 // pred_check_branch
      %78 = sbr.rel (0) target = $region33
    $region32: #{gru_with_graph_attention.1} parent=1 // pred_region
      _
    $region33: #{gru_with_graph_attention.1} parent=1 // pred_fallthru
      _
    // Predicated region
    $region34: #{gru_with_graph_attention.1} parent=1 // pred_check
      _
    $region35: #{gru_with_graph_attention.1} parent=1 // pred_check_branch
      %80 = sbr.rel (0) target = $region37
    $region36: #{gru_with_graph_attention.1} parent=1 // pred_region
      %s82 = ssub.s32 2048, 2048
      %83 = vsyncadd [#allocation8], %s82
      %s84 = sshll.u32 [#allocation9], 4
      %s85 = int_to_ptr.vmem [resolvable:$true] %s84
      %90 = dma.hbm_to_vmem [thread:$0]  %s8, 2048, %s85, [#allocation8], 128, 128, 8
    $region37: #{gru_with_graph_attention.1} parent=1 // pred_fallthru
      _
    // Predicated region
    $region38: #{gru_with_graph_attention.1} parent=1 // pred_check
      _
    $region39: #{gru_with_graph_attention.1} parent=1 // pred_check_branch
      %92 = sbr.rel (0) target = $region41
    $region40: #{gru_with_graph_attention.1} parent=1 // pred_region
      _
    $region41: #{gru_with_graph_attention.1} parent=1 // pred_fallthru
      _
    // Predicated region
    $region42: #{gru_with_graph_attention.1} parent=1 // pred_check
      _
    $region43: #{gru_with_graph_attention.1} parent=1 // pred_check_branch
      %94 = sbr.rel (0) target = $region45
    $region44: #{gru_with_graph_attention.1} parent=1 // pred_region
      %s96 = ssub.s32 2048, 2048
      %97 = vsyncadd [#allocation11], %s96
      %s98 = sshll.u32 [#allocation10], 4
      %s99 = int_to_ptr.vmem [resolvable:$true] %s98
      %104 = dma.hbm_to_vmem [thread:$0]  %s10, 2048, %s99, [#allocation11], 128, 128, 8
    $region45: #{gru_with_graph_attention.1} parent=1 // pred_fallthru
      _
    // Predicated region
    $region46: #{gru_with_graph_attention.1} parent=1 // pred_check
      _
    $region47: #{gru_with_graph_attention.1} parent=1 // pred_check_branch
      %106 = sbr.rel (0) target = $region49
    $region48: #{gru_with_graph_attention.1} parent=1 // pred_region
      _
    $region49: #{gru_with_graph_attention.1} parent=1 // pred_fallthru
      _
    // Predicated region
    $region50: #{gru_with_graph_attention.1} parent=1 // pred_check
      _
    $region51: #{gru_with_graph_attention.1} parent=1 // pred_check_branch
      %108 = sbr.rel (0) target = $region53
    $region52: #{gru_with_graph_attention.1} parent=1 // pred_region
      _
    $region53: #{gru_with_graph_attention.1} parent=1 // pred_fallthru
      _
    // Predicated region
    $region54: #{gru_with_graph_attention.1} parent=1 // pred_check
      _
    $region55: #{gru_with_graph_attention.1} parent=1 // pred_check_branch
      %110 = sbr.rel (0) target = $region57
    $region56: #{gru_with_graph_attention.1} parent=1 // pred_region
      _
    $region57: #{gru_with_graph_attention.1} parent=1 // pred_fallthru
      _
    // Predicated region
    $region58: #{gru_with_graph_attention.1} parent=1 // pred_check
      _
    $region59: #{gru_with_graph_attention.1} parent=1 // pred_check_branch
      %112 = sbr.rel (0) target = $region61
    $region60: #{gru_with_graph_attention.1} parent=1 // pred_region
      %113 = dma.done [#allocation3], 12288
    $region61: #{gru_with_graph_attention.1} parent=1 // pred_fallthru
      _
    // Predicated region
    $region62: #{gru_with_graph_attention.1} parent=1 // pred_check
      _
    $region63: #{gru_with_graph_attention.1} parent=1 // pred_check_branch
      %115 = sbr.rel (0) target = $region65
    $region64: #{gru_with_graph_attention.1} parent=1 // pred_region
      %116 = dma.done [#allocation5], 12288
    $region65: #{gru_with_graph_attention.1} parent=1 // pred_fallthru
      _
    // Predicated region
    $region66: #{gru_with_graph_attention.1} parent=1 // pred_check
      _
    $region67: #{gru_with_graph_attention.1} parent=1 // pred_check_branch
      %118 = sbr.rel (0) target = $region69
    $region68: #{gru_with_graph_attention.1} parent=1 // pred_region
      %119 = dma.done [#allocation5], 6144
    $region69: #{gru_with_graph_attention.1} parent=1 // pred_fallthru
      _
    // Predicated region
    $region70: #{gru_with_graph_attention.1} parent=1 // pred_check
      _
    $region71: #{gru_with_graph_attention.1} parent=1 // pred_check_branch
      %121 = sbr.rel (0) target = $region73
    $region72: #{gru_with_graph_attention.1} parent=1 // pred_region
      %122 = dma.done [#allocation8], 2048
    $region73: #{gru_with_graph_attention.1} parent=1 // pred_fallthru
      _
    // Predicated region
    $region74: #{gru_with_graph_attention.1} parent=1 // pred_check
      _
    $region75: #{gru_with_graph_attention.1} parent=1 // pred_check_branch
      %124 = sbr.rel (0) target = $region77
    $region76: #{gru_with_graph_attention.1} parent=1 // pred_region
      %125 = dma.done [#allocation8], 2048
    $region77: #{gru_with_graph_attention.1} parent=1 // pred_fallthru
      _
    // Predicated region
    $region78: #{gru_with_graph_attention.1} parent=1 // pred_check
      _
    $region79: #{gru_with_graph_attention.1} parent=1 // pred_check_branch
      %127 = sbr.rel (0) target = $region81
    $region80: #{gru_with_graph_attention.1} parent=1 // pred_region
      %128 = dma.done [#allocation11], 2048
    $region81: #{gru_with_graph_attention.1} parent=1 // pred_fallthru
      _
    %v129 = vld [vmem:[%s12] sm:$0x1]
    %v130 = vld [vmem:[%s13] sm:$0x1]
    %v131 = vld [vmem:[%s0] sm:$0xff]
    %v132 = vld [vmem:[%s0 + $0x8] sm:$0xff]
    %v133 = vld [vmem:[#allocation2] sm:$0xff]
    %v134 = vld [vmem:[#allocation2 + $0x8] sm:$0xff]
    %v135 = vld [vmem:[#allocation2 + $0x10] sm:$0xff]
    %v136 = vld [vmem:[#allocation2 + $0x18] sm:$0xff]
    %v137 = vld [vmem:[#allocation2 + $0x20] sm:$0xff]
    %v138 = vld [vmem:[#allocation2 + $0x28] sm:$0xff]
    %v139 = vld [vmem:[#allocation2 + $0x30] sm:$0xff]
    %v140 = vld [vmem:[#allocation2 + $0x38] sm:$0xff]
    %v141 = vld [vmem:[#allocation2 + $0x40] sm:$0xff]
    %v142 = vld [vmem:[#allocation2 + $0x48] sm:$0xff]
    %v143 = vld [vmem:[#allocation2 + $0x50] sm:$0xff]
    %v144 = vld [vmem:[#allocation2 + $0x58] sm:$0xff]
    %v145 = vld [vmem:[#allocation2 + $0x60] sm:$0xff]
    %v146 = vld [vmem:[#allocation2 + $0x68] sm:$0xff]
    %v147 = vld [vmem:[#allocation2 + $0x70] sm:$0xff]
    %v148 = vld [vmem:[#allocation2 + $0x78] sm:$0xff]
    %v149 = vld [vmem:[#allocation2 + $0x80] sm:$0xff]
    %v150 = vld [vmem:[#allocation2 + $0x88] sm:$0xff]
    %v151 = vld [vmem:[#allocation2 + $0x90] sm:$0xff]
    %v152 = vld [vmem:[#allocation2 + $0x98] sm:$0xff]
    %v153 = vld [vmem:[#allocation2 + $0xa0] sm:$0xff]
    %v154 = vld [vmem:[#allocation2 + $0xa8] sm:$0xff]
    %v155 = vld [vmem:[#allocation2 + $0xb0] sm:$0xff]
    %v156 = vld [vmem:[#allocation2 + $0xb8] sm:$0xff]
    %v157 = vld [vmem:[#allocation2 + $0xc0] sm:$0xff]
    %v158 = vld [vmem:[#allocation2 + $0xc8] sm:$0xff]
    %v159 = vld [vmem:[#allocation2 + $0xd0] sm:$0xff]
    %v160 = vld [vmem:[#allocation2 + $0xd8] sm:$0xff]
    %v161 = vld [vmem:[#allocation2 + $0xe0] sm:$0xff]
    %v162 = vld [vmem:[#allocation2 + $0xe8] sm:$0xff]
    %v163 = vld [vmem:[#allocation2 + $0xf0] sm:$0xff]
    %v164 = vld [vmem:[#allocation2 + $0xf8] sm:$0xff]
    %v165 = vld [vmem:[#allocation2 + $0x100] sm:$0xff]
    %v166 = vld [vmem:[#allocation2 + $0x108] sm:$0xff]
    %v167 = vld [vmem:[#allocation2 + $0x110] sm:$0xff]
    %v168 = vld [vmem:[#allocation2 + $0x118] sm:$0xff]
    %v169 = vld [vmem:[#allocation2 + $0x120] sm:$0xff]
    %v170 = vld [vmem:[#allocation2 + $0x128] sm:$0xff]
    %v171 = vld [vmem:[#allocation2 + $0x130] sm:$0xff]
    %v172 = vld [vmem:[#allocation2 + $0x138] sm:$0xff]
    %v173 = vld [vmem:[#allocation2 + $0x140] sm:$0xff]
    %v174 = vld [vmem:[#allocation2 + $0x148] sm:$0xff]
    %v175 = vld [vmem:[#allocation2 + $0x150] sm:$0xff]
    %v176 = vld [vmem:[#allocation2 + $0x158] sm:$0xff]
    %v177 = vld [vmem:[#allocation2 + $0x160] sm:$0xff]
    %v178 = vld [vmem:[#allocation2 + $0x168] sm:$0xff]
    %v179 = vld [vmem:[#allocation2 + $0x170] sm:$0xff]
    %v180 = vld [vmem:[#allocation2 + $0x178] sm:$0xff]
    %v181 = vld [vmem:[%s3] sm:$0x7]
    %v183 = vlaneseq
    %v184 = vshrl.u32 %v183, 7
    %v185 = vsub.s32 0, %v184
    %v186 = vrot.slane %v181, %v185
    %v187 = vlaneseq
    %v188 = vshrl.u32 %v187, 7
    %v189 = vsub.s32 1, %v188
    %v190 = vrot.slane %v181, %v189
    %v191 = vlaneseq
    %v192 = vshrl.u32 %v191, 7
    %v193 = vsub.s32 2, %v192
    %v194 = vrot.slane %v181, %v193
    %198 = vmatprep.subr.mxu0 %v179
    %199 = vmatpush1.msra.mxu0 %v178
    %200 = vmatprep.subr.mxu0 %v176
    %201 = vmatpush1.msra.mxu0 %v175
    %202 = vmatprep.subr.mxu0 %v173
    %203 = vmatpush1.msra.mxu0 %v172
    %204 = vmatprep.subr.mxu0 %v170
    %205 = vmatpush1.msra.mxu0 %v169
    %206 = vmatprep.subr.mxu0 %v167
    %207 = vmatpush1.msra.mxu0 %v166
    %208 = vmatprep.subr.mxu0 %v164
    %209 = vmatpush1.msra.mxu0 %v163
    %210 = vmatprep.subr.mxu0 %v161
    %211 = vmatpush1.msra.mxu0 %v160
    %212 = vmatprep.subr.mxu0 %v158
    %213 = vmatpush1.msra.mxu0 %v157
    %214 = vmatprep.subr.mxu0 %v155
    %215 = vmatpush1.msra.mxu0 %v154
    %216 = vmatprep.subr.mxu0 %v152
    %217 = vmatpush1.msra.mxu0 %v151
    %218 = vmatprep.subr.mxu0 %v149
    %219 = vmatpush1.msra.mxu0 %v148
    %220 = vmatprep.subr.mxu0 %v146
    %221 = vmatpush1.msra.mxu0 %v145
    %222 = vmatprep.subr.mxu0 %v143
    %223 = vmatpush1.msra.mxu0 %v142
    %224 = vmatprep.subr.mxu0 %v140
    %225 = vmatpush1.msra.mxu0 %v139
    %226 = vmatprep.subr.mxu0 %v137
    %227 = vmatpush1.msra.mxu0 %v136
    %228 = vmatprep.subr.mxu0 %v134
    %229 = vmatpush1.msra.mxu0 %v133
    %230 = vmatprep.subr.mxu0 0.0
    %231 = vmatpush2.msra.mxu0 0.0
    %232 = vmatprep.subr.mxu0 0.0
    %233 = vmatpush2.msra.mxu0 0.0
    %234 = vmatprep.subr.mxu0 0.0
    %235 = vmatpush2.msra.mxu0 0.0
    %236 = vmatprep.subr.mxu0 0.0
    %237 = vmatpush2.msra.mxu0 0.0
    %238 = vmatprep.subr.mxu0 0.0
    %239 = vmatpush2.msra.mxu0 0.0
    %240 = vmatprep.subr.mxu0 0.0
    %241 = vmatpush2.msra.mxu0 0.0
    %242 = vmatprep.subr.mxu0 0.0
    %243 = vmatpush2.msra.mxu0 0.0
    %244 = vmatprep.subr.mxu0 0.0
    %245 = vmatpush2.msra.mxu0 0.0
    %246 = vmatprep.subr.mxu0 0.0
    %247 = vmatpush2.msra.mxu0 0.0
    %248 = vmatprep.subr.mxu0 0.0
    %249 = vmatpush2.msra.mxu0 0.0
    %250 = vmatprep.subr.mxu0 0.0
    %251 = vmatpush2.msra.mxu0 0.0
    %252 = vmatprep.subr.mxu0 0.0
    %253 = vmatpush2.msra.mxu0 0.0
    %254 = vmatprep.subr.mxu0 0.0
    %255 = vmatpush2.msra.mxu0 0.0
    %256 = vmatprep.subr.mxu0 0.0
    %257 = vmatpush2.msra.mxu0 0.0
    %258 = vmatprep.subr.mxu0 0.0
    %259 = vmatpush2.msra.mxu0 0.0
    %260 = vmatprep.subr.mxu0 0.0
    %261 = vmatpush2.msra.mxu0 0.0
    %262 = vmatprep.mubr.f32.mxu0 0.0
    %263 = vmatmul.mubr.f32.gmra.mxu0 %v131
    %v264 = vpop.f32.mrf.mxu0
    %v265 = vadd.f32 %v186, %v264
    %v266 = vpop.f32.mrf.mxu0
    %v267 = vadd.f32 %v190, %v266
    %268 = vmatprep.mubr.f32.mxu0 0.0
    %269 = vmatmul.mubr.f32.gmra.mxu0 %v132
    %v270 = vpop.f32.mrf.mxu0
    %v271 = vadd.f32 %v186, %v270
    %v272 = vpop.f32.mrf.mxu0
    %v273 = vadd.f32 %v190, %v272
    %274 = vdwg.mxu0
    %275 = vmatprep.subr.mxu0 0.0
    %276 = vmatpush1.msra.mxu0 %v180
    %277 = vmatprep.subr.mxu0 0.0
    %278 = vmatpush1.msra.mxu0 %v177
    %279 = vmatprep.subr.mxu0 0.0
    %280 = vmatpush1.msra.mxu0 %v174
    %281 = vmatprep.subr.mxu0 0.0
    %282 = vmatpush1.msra.mxu0 %v171
    %283 = vmatprep.subr.mxu0 0.0
    %284 = vmatpush1.msra.mxu0 %v168
    %285 = vmatprep.subr.mxu0 0.0
    %286 = vmatpush1.msra.mxu0 %v165
    %287 = vmatprep.subr.mxu0 0.0
    %288 = vmatpush1.msra.mxu0 %v162
    %289 = vmatprep.subr.mxu0 0.0
    %290 = vmatpush1.msra.mxu0 %v159
    %291 = vmatprep.subr.mxu0 0.0
    %292 = vmatpush1.msra.mxu0 %v156
    %293 = vmatprep.subr.mxu0 0.0
    %294 = vmatpush1.msra.mxu0 %v153
    %295 = vmatprep.subr.mxu0 0.0
    %296 = vmatpush1.msra.mxu0 %v150
    %297 = vmatprep.subr.mxu0 0.0
    %298 = vmatpush1.msra.mxu0 %v147
    %299 = vmatprep.subr.mxu0 0.0
    %300 = vmatpush1.msra.mxu0 %v144
    %301 = vmatprep.subr.mxu0 0.0
    %302 = vmatpush1.msra.mxu0 %v141
    %303 = vmatprep.subr.mxu0 0.0
    %304 = vmatpush1.msra.mxu0 %v138
    %305 = vmatprep.subr.mxu0 0.0
    %306 = vmatpush1.msra.mxu0 %v135
    %307 = vmatprep.subr.mxu0 0.0
    %308 = vmatpush2.msra.mxu0 0.0
    %309 = vmatprep.subr.mxu0 0.0
    %310 = vmatpush2.msra.mxu0 0.0
    %311 = vmatprep.subr.mxu0 0.0
    %312 = vmatpush2.msra.mxu0 0.0
    %313 = vmatprep.subr.mxu0 0.0
    %314 = vmatpush2.msra.mxu0 0.0
    %315 = vmatprep.subr.mxu0 0.0
    %316 = vmatpush2.msra.mxu0 0.0
    %317 = vmatprep.subr.mxu0 0.0
    %318 = vmatpush2.msra.mxu0 0.0
    %319 = vmatprep.subr.mxu0 0.0
    %320 = vmatpush2.msra.mxu0 0.0
    %321 = vmatprep.subr.mxu0 0.0
    %322 = vmatpush2.msra.mxu0 0.0
    %323 = vmatprep.subr.mxu0 0.0
    %324 = vmatpush2.msra.mxu0 0.0
    %325 = vmatprep.subr.mxu0 0.0
    %326 = vmatpush2.msra.mxu0 0.0
    %327 = vmatprep.subr.mxu0 0.0
    %328 = vmatpush2.msra.mxu0 0.0
    %329 = vmatprep.subr.mxu0 0.0
    %330 = vmatpush2.msra.mxu0 0.0
    %331 = vmatprep.subr.mxu0 0.0
    %332 = vmatpush2.msra.mxu0 0.0
    %333 = vmatprep.subr.mxu0 0.0
    %334 = vmatpush2.msra.mxu0 0.0
    %335 = vmatprep.subr.mxu0 0.0
    %336 = vmatpush2.msra.mxu0 0.0
    %337 = vmatprep.subr.mxu0 0.0
    %338 = vmatpush2.msra.mxu0 0.0
    %339 = vmatprep.mubr.f32.mxu0 0.0
    %340 = vmatmul.mubr.f32.gmra.mxu0 %v131
    %v341 = vpop.f32.mrf.mxu0
    %v342 = vadd.f32 %v194, %v341
    %v343 = vpop.f32.mrf.mxu0
    %344 = vmatprep.mubr.f32.mxu0 0.0
    %345 = vmatmul.mubr.f32.gmra.mxu0 %v132
    %v346 = vpop.f32.mrf.mxu0
    %v347 = vadd.f32 %v194, %v346
    %v348 = vpop.f32.mrf.mxu0
    %349 = vdwg.mxu0
    %v350 = vld [vmem:[#allocation4] sm:$0xff]
    %v351 = vld [vmem:[#allocation4 + $0x8] sm:$0xff]
    %v352 = vld [vmem:[#allocation4 + $0x10] sm:$0xff]
    %v353 = vld [vmem:[#allocation4 + $0x18] sm:$0xff]
    %v354 = vld [vmem:[#allocation4 + $0x20] sm:$0xff]
    %v355 = vld [vmem:[#allocation4 + $0x28] sm:$0xff]
    %v356 = vld [vmem:[#allocation4 + $0x30] sm:$0xff]
    %v357 = vld [vmem:[#allocation4 + $0x38] sm:$0xff]
    %v358 = vld [vmem:[#allocation4 + $0x40] sm:$0xff]
    %v359 = vld [vmem:[#allocation4 + $0x48] sm:$0xff]
    %v360 = vld [vmem:[#allocation4 + $0x50] sm:$0xff]
    %v361 = vld [vmem:[#allocation4 + $0x58] sm:$0xff]
    %v362 = vld [vmem:[#allocation4 + $0x60] sm:$0xff]
    %v363 = vld [vmem:[#allocation4 + $0x68] sm:$0xff]
    %v364 = vld [vmem:[#allocation4 + $0x70] sm:$0xff]
    %v365 = vld [vmem:[#allocation4 + $0x78] sm:$0xff]
    %v366 = vld [vmem:[#allocation4 + $0x80] sm:$0xff]
    %v367 = vld [vmem:[#allocation4 + $0x88] sm:$0xff]
    %v368 = vld [vmem:[#allocation4 + $0x90] sm:$0xff]
    %v369 = vld [vmem:[#allocation4 + $0x98] sm:$0xff]
    %v370 = vld [vmem:[#allocation4 + $0xa0] sm:$0xff]
    %v371 = vld [vmem:[#allocation4 + $0xa8] sm:$0xff]
    %v372 = vld [vmem:[#allocation4 + $0xb0] sm:$0xff]
    %v373 = vld [vmem:[#allocation4 + $0xb8] sm:$0xff]
    %v374 = vld [vmem:[#allocation4 + $0xc0] sm:$0xff]
    %v375 = vld [vmem:[#allocation4 + $0xc8] sm:$0xff]
    %v376 = vld [vmem:[#allocation4 + $0xd0] sm:$0xff]
    %v377 = vld [vmem:[#allocation4 + $0xd8] sm:$0xff]
    %v378 = vld [vmem:[#allocation4 + $0xe0] sm:$0xff]
    %v379 = vld [vmem:[#allocation4 + $0xe8] sm:$0xff]
    %v380 = vld [vmem:[#allocation4 + $0xf0] sm:$0xff]
    %v381 = vld [vmem:[#allocation4 + $0xf8] sm:$0xff]
    %v382 = vld [vmem:[#allocation4 + $0x100] sm:$0xff]
    %v383 = vld [vmem:[#allocation4 + $0x108] sm:$0xff]
    %v384 = vld [vmem:[#allocation4 + $0x110] sm:$0xff]
    %v385 = vld [vmem:[#allocation4 + $0x118] sm:$0xff]
    %v386 = vld [vmem:[#allocation4 + $0x120] sm:$0xff]
    %v387 = vld [vmem:[#allocation4 + $0x128] sm:$0xff]
    %v388 = vld [vmem:[#allocation4 + $0x130] sm:$0xff]
    %v389 = vld [vmem:[#allocation4 + $0x138] sm:$0xff]
    %v390 = vld [vmem:[#allocation4 + $0x140] sm:$0xff]
    %v391 = vld [vmem:[#allocation4 + $0x148] sm:$0xff]
    %v392 = vld [vmem:[#allocation4 + $0x150] sm:$0xff]
    %v393 = vld [vmem:[#allocation4 + $0x158] sm:$0xff]
    %v394 = vld [vmem:[#allocation4 + $0x160] sm:$0xff]
    %v395 = vld [vmem:[#allocation4 + $0x168] sm:$0xff]
    %v396 = vld [vmem:[#allocation4 + $0x170] sm:$0xff]
    %v397 = vld [vmem:[#allocation4 + $0x178] sm:$0xff]
    %v398 = vld [vmem:[%s4] sm:$0x1]
    %399 = vmatprep.subr.mxu0 %v396
    %400 = vmatpush1.msra.mxu0 %v395
    %401 = vmatprep.subr.mxu0 %v393
    %402 = vmatpush1.msra.mxu0 %v392
    %403 = vmatprep.subr.mxu0 %v390
    %404 = vmatpush1.msra.mxu0 %v389
    %405 = vmatprep.subr.mxu0 %v387
    %406 = vmatpush1.msra.mxu0 %v386
    %407 = vmatprep.subr.mxu0 %v384
    %408 = vmatpush1.msra.mxu0 %v383
    %409 = vmatprep.subr.mxu0 %v381
    %410 = vmatpush1.msra.mxu0 %v380
    %411 = vmatprep.subr.mxu0 %v378
    %412 = vmatpush1.msra.mxu0 %v377
    %413 = vmatprep.subr.mxu0 %v375
    %414 = vmatpush1.msra.mxu0 %v374
    %415 = vmatprep.subr.mxu0 %v372
    %416 = vmatpush1.msra.mxu0 %v371
    %417 = vmatprep.subr.mxu0 %v369
    %418 = vmatpush1.msra.mxu0 %v368
    %419 = vmatprep.subr.mxu0 %v366
    %420 = vmatpush1.msra.mxu0 %v365
    %421 = vmatprep.subr.mxu0 %v363
    %422 = vmatpush1.msra.mxu0 %v362
    %423 = vmatprep.subr.mxu0 %v360
    %424 = vmatpush1.msra.mxu0 %v359
    %425 = vmatprep.subr.mxu0 %v357
    %426 = vmatpush1.msra.mxu0 %v356
    %427 = vmatprep.subr.mxu0 %v354
    %428 = vmatpush1.msra.mxu0 %v353
    %429 = vmatprep.subr.mxu0 %v351
    %430 = vmatpush1.msra.mxu0 %v350
    %431 = vmatprep.subr.mxu0 0.0
    %432 = vmatpush2.msra.mxu0 0.0
    %433 = vmatprep.subr.mxu0 0.0
    %434 = vmatpush2.msra.mxu0 0.0
    %435 = vmatprep.subr.mxu0 0.0
    %436 = vmatpush2.msra.mxu0 0.0
    %437 = vmatprep.subr.mxu0 0.0
    %438 = vmatpush2.msra.mxu0 0.0
    %439 = vmatprep.subr.mxu0 0.0
    %440 = vmatpush2.msra.mxu0 0.0
    %441 = vmatprep.subr.mxu0 0.0
    %442 = vmatpush2.msra.mxu0 0.0
    %443 = vmatprep.subr.mxu0 0.0
    %444 = vmatpush2.msra.mxu0 0.0
    %445 = vmatprep.subr.mxu0 0.0
    %446 = vmatpush2.msra.mxu0 0.0
    %447 = vmatprep.subr.mxu0 0.0
    %448 = vmatpush2.msra.mxu0 0.0
    %449 = vmatprep.subr.mxu0 0.0
    %450 = vmatpush2.msra.mxu0 0.0
    %451 = vmatprep.subr.mxu0 0.0
    %452 = vmatpush2.msra.mxu0 0.0
    %453 = vmatprep.subr.mxu0 0.0
    %454 = vmatpush2.msra.mxu0 0.0
    %455 = vmatprep.subr.mxu0 0.0
    %456 = vmatpush2.msra.mxu0 0.0
    %457 = vmatprep.subr.mxu0 0.0
    %458 = vmatpush2.msra.mxu0 0.0
    %459 = vmatprep.subr.mxu0 0.0
    %460 = vmatpush2.msra.mxu0 0.0
    %461 = vmatprep.subr.mxu0 0.0
    %462 = vmatpush2.msra.mxu0 0.0
    %463 = vmatprep.mubr.f32.mxu0 0.0
    %464 = vmatmul.mubr.f32.gmra.mxu0 0.0
    %v465 = vpop.f32.mrf.mxu0
    %v466 = vadd.f32 0.0, %v465
    %v467 = vpop.f32.mrf.mxu0
    %v468 = vadd.f32 0.0, %v467
    %469 = vdwg.mxu0
    %470 = vmatprep.subr.mxu0 0.0
    %471 = vmatpush1.msra.mxu0 %v397
    %472 = vmatprep.subr.mxu0 0.0
    %473 = vmatpush1.msra.mxu0 %v394
    %474 = vmatprep.subr.mxu0 0.0
    %475 = vmatpush1.msra.mxu0 %v391
    %476 = vmatprep.subr.mxu0 0.0
    %477 = vmatpush1.msra.mxu0 %v388
    %478 = vmatprep.subr.mxu0 0.0
    %479 = vmatpush1.msra.mxu0 %v385
    %480 = vmatprep.subr.mxu0 0.0
    %481 = vmatpush1.msra.mxu0 %v382
    %482 = vmatprep.subr.mxu0 0.0
    %483 = vmatpush1.msra.mxu0 %v379
    %484 = vmatprep.subr.mxu0 0.0
    %485 = vmatpush1.msra.mxu0 %v376
    %486 = vmatprep.subr.mxu0 0.0
    %487 = vmatpush1.msra.mxu0 %v373
    %488 = vmatprep.subr.mxu0 0.0
    %489 = vmatpush1.msra.mxu0 %v370
    %490 = vmatprep.subr.mxu0 0.0
    %491 = vmatpush1.msra.mxu0 %v367
    %492 = vmatprep.subr.mxu0 0.0
    %493 = vmatpush1.msra.mxu0 %v364
    %494 = vmatprep.subr.mxu0 0.0
    %495 = vmatpush1.msra.mxu0 %v361
    %496 = vmatprep.subr.mxu0 0.0
    %497 = vmatpush1.msra.mxu0 %v358
    %498 = vmatprep.subr.mxu0 0.0
    %499 = vmatpush1.msra.mxu0 %v355
    %500 = vmatprep.subr.mxu0 0.0
    %501 = vmatpush1.msra.mxu0 %v352
    %502 = vmatprep.subr.mxu0 0.0
    %503 = vmatpush2.msra.mxu0 0.0
    %504 = vmatprep.subr.mxu0 0.0
    %505 = vmatpush2.msra.mxu0 0.0
    %506 = vmatprep.subr.mxu0 0.0
    %507 = vmatpush2.msra.mxu0 0.0
    %508 = vmatprep.subr.mxu0 0.0
    %509 = vmatpush2.msra.mxu0 0.0
    %510 = vmatprep.subr.mxu0 0.0
    %511 = vmatpush2.msra.mxu0 0.0
    %512 = vmatprep.subr.mxu0 0.0
    %513 = vmatpush2.msra.mxu0 0.0
    %514 = vmatprep.subr.mxu0 0.0
    %515 = vmatpush2.msra.mxu0 0.0
    %516 = vmatprep.subr.mxu0 0.0
    %517 = vmatpush2.msra.mxu0 0.0
    %518 = vmatprep.subr.mxu0 0.0
    %519 = vmatpush2.msra.mxu0 0.0
    %520 = vmatprep.subr.mxu0 0.0
    %521 = vmatpush2.msra.mxu0 0.0
    %522 = vmatprep.subr.mxu0 0.0
    %523 = vmatpush2.msra.mxu0 0.0
    %524 = vmatprep.subr.mxu0 0.0
    %525 = vmatpush2.msra.mxu0 0.0
    %526 = vmatprep.subr.mxu0 0.0
    %527 = vmatpush2.msra.mxu0 0.0
    %528 = vmatprep.subr.mxu0 0.0
    %529 = vmatpush2.msra.mxu0 0.0
    %530 = vmatprep.subr.mxu0 0.0
    %531 = vmatpush2.msra.mxu0 0.0
    %532 = vmatprep.subr.mxu0 0.0
    %533 = vmatpush2.msra.mxu0 0.0
    %534 = vmatprep.mubr.f32.mxu0 0.0
    %535 = vmatmul.mubr.f32.gmra.mxu0 0.0
    %v536 = vpop.f32.mrf.mxu0
    %v537 = vadd.f32 0.0, %v536
    %v538 = vpop.f32.mrf.mxu0
    %539 = vdwg.mxu0
    %v540 = vadd.f32 %v265, %v466
    %v541 = vxor.u32 %v540, 2147483648
    %v542 = vmul.f32 %v541, 1.442695
    %v543 = vpow.pop %v542
    %v544 = vadd.f32 %v543, 1.0
    %v545 = vrcp.pop %v544
    %v546 = vmul.f32 1.0, %v545
    %v547 = vadd.f32 %v267, %v468
    %v548 = vxor.u32 %v547, 2147483648
    %v549 = vmul.f32 %v548, 1.442695
    %v550 = vpow.pop %v549
    %v551 = vadd.f32 %v550, 1.0
    %v552 = vrcp.pop %v551
    %v553 = vmul.f32 1.0, %v552
    %v555 = vlaneseq
    %v556 = vshrl.u32 %v555, 7
    %v557 = vsub.s32 0, %v556
    %v558 = vrot.slane %v398, %v557
    %v560 = vadd.f32 %v537, %v558
    %v561 = vmul.f32 %v546, %v560
    %v562 = vadd.f32 %v342, %v561
    %v563 = vtanh.pop %v562
    %v564 = vsub.f32 1.0, %v553
    %v565 = vmul.f32 %v564, %v563
    %v566 = vmul.f32 %v553, 0.0
    %v567 = vadd.f32 %v565, %v566
    %568 = vmatprep.subr.mxu0 %v396
    %569 = vmatpush1.msra.mxu0 %v395
    %570 = vmatprep.subr.mxu0 %v393
    %571 = vmatpush1.msra.mxu0 %v392
    %572 = vmatprep.subr.mxu0 %v390
    %573 = vmatpush1.msra.mxu0 %v389
    %574 = vmatprep.subr.mxu0 %v387
    %575 = vmatpush1.msra.mxu0 %v386
    %576 = vmatprep.subr.mxu0 %v384
    %577 = vmatpush1.msra.mxu0 %v383
    %578 = vmatprep.subr.mxu0 %v381
    %579 = vmatpush1.msra.mxu0 %v380
    %580 = vmatprep.subr.mxu0 %v378
    %581 = vmatpush1.msra.mxu0 %v377
    %582 = vmatprep.subr.mxu0 %v375
    %583 = vmatpush1.msra.mxu0 %v374
    %584 = vmatprep.subr.mxu0 %v372
    %585 = vmatpush1.msra.mxu0 %v371
    %586 = vmatprep.subr.mxu0 %v369
    %587 = vmatpush1.msra.mxu0 %v368
    %588 = vmatprep.subr.mxu0 %v366
    %589 = vmatpush1.msra.mxu0 %v365
    %590 = vmatprep.subr.mxu0 %v363
    %591 = vmatpush1.msra.mxu0 %v362
    %592 = vmatprep.subr.mxu0 %v360
    %593 = vmatpush1.msra.mxu0 %v359
    %594 = vmatprep.subr.mxu0 %v357
    %595 = vmatpush1.msra.mxu0 %v356
    %596 = vmatprep.subr.mxu0 %v354
    %597 = vmatpush1.msra.mxu0 %v353
    %598 = vmatprep.subr.mxu0 %v351
    %599 = vmatpush1.msra.mxu0 %v350
    %600 = vmatprep.subr.mxu0 0.0
    %601 = vmatpush2.msra.mxu0 0.0
    %602 = vmatprep.subr.mxu0 0.0
    %603 = vmatpush2.msra.mxu0 0.0
    %604 = vmatprep.subr.mxu0 0.0
    %605 = vmatpush2.msra.mxu0 0.0
    %606 = vmatprep.subr.mxu0 0.0
    %607 = vmatpush2.msra.mxu0 0.0
    %608 = vmatprep.subr.mxu0 0.0
    %609 = vmatpush2.msra.mxu0 0.0
    %610 = vmatprep.subr.mxu0 0.0
    %611 = vmatpush2.msra.mxu0 0.0
    %612 = vmatprep.subr.mxu0 0.0
    %613 = vmatpush2.msra.mxu0 0.0
    %614 = vmatprep.subr.mxu0 0.0
    %615 = vmatpush2.msra.mxu0 0.0
    %616 = vmatprep.subr.mxu0 0.0
    %617 = vmatpush2.msra.mxu0 0.0
    %618 = vmatprep.subr.mxu0 0.0
    %619 = vmatpush2.msra.mxu0 0.0
    %620 = vmatprep.subr.mxu0 0.0
    %621 = vmatpush2.msra.mxu0 0.0
    %622 = vmatprep.subr.mxu0 0.0
    %623 = vmatpush2.msra.mxu0 0.0
    %624 = vmatprep.subr.mxu0 0.0
    %625 = vmatpush2.msra.mxu0 0.0
    %626 = vmatprep.subr.mxu0 0.0
    %627 = vmatpush2.msra.mxu0 0.0
    %628 = vmatprep.subr.mxu0 0.0
    %629 = vmatpush2.msra.mxu0 0.0
    %630 = vmatprep.subr.mxu0 0.0
    %631 = vmatpush2.msra.mxu0 0.0
    %632 = vmatprep.mubr.f32.mxu0 0.0
    %633 = vmatmul.mubr.f32.gmra.mxu0 %v567
    %v634 = vpop.f32.mrf.mxu0
    %v635 = vadd.f32 0.0, %v634
    %v636 = vpop.f32.mrf.mxu0
    %v637 = vadd.f32 0.0, %v636
    %638 = vdwg.mxu0
    %639 = vmatprep.subr.mxu0 0.0
    %640 = vmatpush1.msra.mxu0 %v397
    %641 = vmatprep.subr.mxu0 0.0
    %642 = vmatpush1.msra.mxu0 %v394
    %643 = vmatprep.subr.mxu0 0.0
    %644 = vmatpush1.msra.mxu0 %v391
    %645 = vmatprep.subr.mxu0 0.0
    %646 = vmatpush1.msra.mxu0 %v388
    %647 = vmatprep.subr.mxu0 0.0
    %648 = vmatpush1.msra.mxu0 %v385
    %649 = vmatprep.subr.mxu0 0.0
    %650 = vmatpush1.msra.mxu0 %v382
    %651 = vmatprep.subr.mxu0 0.0
    %652 = vmatpush1.msra.mxu0 %v379
    %653 = vmatprep.subr.mxu0 0.0
    %654 = vmatpush1.msra.mxu0 %v376
    %655 = vmatprep.subr.mxu0 0.0
    %656 = vmatpush1.msra.mxu0 %v373
    %657 = vmatprep.subr.mxu0 0.0
    %658 = vmatpush1.msra.mxu0 %v370
    %659 = vmatprep.subr.mxu0 0.0
    %660 = vmatpush1.msra.mxu0 %v367
    %661 = vmatprep.subr.mxu0 0.0
    %662 = vmatpush1.msra.mxu0 %v364
    %663 = vmatprep.subr.mxu0 0.0
    %664 = vmatpush1.msra.mxu0 %v361
    %665 = vmatprep.subr.mxu0 0.0
    %666 = vmatpush1.msra.mxu0 %v358
    %667 = vmatprep.subr.mxu0 0.0
    %668 = vmatpush1.msra.mxu0 %v355
    %669 = vmatprep.subr.mxu0 0.0
    %670 = vmatpush1.msra.mxu0 %v352
    %671 = vmatprep.subr.mxu0 0.0
    %672 = vmatpush2.msra.mxu0 0.0
    %673 = vmatprep.subr.mxu0 0.0
    %674 = vmatpush2.msra.mxu0 0.0
    %675 = vmatprep.subr.mxu0 0.0
    %676 = vmatpush2.msra.mxu0 0.0
    %677 = vmatprep.subr.mxu0 0.0
    %678 = vmatpush2.msra.mxu0 0.0
    %679 = vmatprep.subr.mxu0 0.0
    %680 = vmatpush2.msra.mxu0 0.0
    %681 = vmatprep.subr.mxu0 0.0
    %682 = vmatpush2.msra.mxu0 0.0
    %683 = vmatprep.subr.mxu0 0.0
    %684 = vmatpush2.msra.mxu0 0.0
    %685 = vmatprep.subr.mxu0 0.0
    %686 = vmatpush2.msra.mxu0 0.0
    %687 = vmatprep.subr.mxu0 0.0
    %688 = vmatpush2.msra.mxu0 0.0
    %689 = vmatprep.subr.mxu0 0.0
    %690 = vmatpush2.msra.mxu0 0.0
    %691 = vmatprep.subr.mxu0 0.0
    %692 = vmatpush2.msra.mxu0 0.0
    %693 = vmatprep.subr.mxu0 0.0
    %694 = vmatpush2.msra.mxu0 0.0
    %695 = vmatprep.subr.mxu0 0.0
    %696 = vmatpush2.msra.mxu0 0.0
    %697 = vmatprep.subr.mxu0 0.0
    %698 = vmatpush2.msra.mxu0 0.0
    %699 = vmatprep.subr.mxu0 0.0
    %700 = vmatpush2.msra.mxu0 0.0
    %701 = vmatprep.subr.mxu0 0.0
    %702 = vmatpush2.msra.mxu0 0.0
    %703 = vmatprep.mubr.f32.mxu0 0.0
    %704 = vmatmul.mubr.f32.gmra.mxu0 %v567
    %v705 = vpop.f32.mrf.mxu0
    %v706 = vadd.f32 0.0, %v705
    %v707 = vpop.f32.mrf.mxu0
    %708 = vdwg.mxu0
    %v710 = vrot.slane %v635, 6
    %v712 = vadd.f32 %v265, %v710
    %v713 = vxor.u32 %v712, 2147483648
    %v714 = vmul.f32 %v713, 1.442695
    %v715 = vpow.pop %v714
    %v716 = vadd.f32 %v715, 1.0
    %v717 = vrcp.pop %v716
    %v718 = vmul.f32 1.0, %v717
    %v720 = vrot.slane %v637, 6
    %v722 = vadd.f32 %v267, %v720
    %v723 = vxor.u32 %v722, 2147483648
    %v724 = vmul.f32 %v723, 1.442695
    %v725 = vpow.pop %v724
    %v726 = vadd.f32 %v725, 1.0
    %v727 = vrcp.pop %v726
    %v728 = vmul.f32 1.0, %v727
    %v729 = vadd.f32 %v706, %v558
    %v731 = vrot.slane %v729, 6
    %v733 = vmul.f32 %v718, %v731
    %v734 = vadd.f32 %v342, %v733
    %v735 = vtanh.pop %v734
    %v736 = vsub.f32 1.0, %v728
    %v737 = vmul.f32 %v736, %v735
    %v739 = vrot.slane %v567, 6
    %v741 = vmul.f32 %v728, %v739
    %v742 = vadd.f32 %v737, %v741
    %v744 = vrot.slane %v742, 2
    %746 = vmatprep.subr.mxu0 %v396
    %747 = vmatpush1.msra.mxu0 %v395
    %748 = vmatprep.subr.mxu0 %v393
    %749 = vmatpush1.msra.mxu0 %v392
    %750 = vmatprep.subr.mxu0 %v390
    %751 = vmatpush1.msra.mxu0 %v389
    %752 = vmatprep.subr.mxu0 %v387
    %753 = vmatpush1.msra.mxu0 %v386
    %754 = vmatprep.subr.mxu0 %v384
    %755 = vmatpush1.msra.mxu0 %v383
    %756 = vmatprep.subr.mxu0 %v381
    %757 = vmatpush1.msra.mxu0 %v380
    %758 = vmatprep.subr.mxu0 %v378
    %759 = vmatpush1.msra.mxu0 %v377
    %760 = vmatprep.subr.mxu0 %v375
    %761 = vmatpush1.msra.mxu0 %v374
    %762 = vmatprep.subr.mxu0 %v372
    %763 = vmatpush1.msra.mxu0 %v371
    %764 = vmatprep.subr.mxu0 %v369
    %765 = vmatpush1.msra.mxu0 %v368
    %766 = vmatprep.subr.mxu0 %v366
    %767 = vmatpush1.msra.mxu0 %v365
    %768 = vmatprep.subr.mxu0 %v363
    %769 = vmatpush1.msra.mxu0 %v362
    %770 = vmatprep.subr.mxu0 %v360
    %771 = vmatpush1.msra.mxu0 %v359
    %772 = vmatprep.subr.mxu0 %v357
    %773 = vmatpush1.msra.mxu0 %v356
    %774 = vmatprep.subr.mxu0 %v354
    %775 = vmatpush1.msra.mxu0 %v353
    %776 = vmatprep.subr.mxu0 %v351
    %777 = vmatpush1.msra.mxu0 %v350
    %778 = vmatprep.subr.mxu0 0.0
    %779 = vmatpush2.msra.mxu0 0.0
    %780 = vmatprep.subr.mxu0 0.0
    %781 = vmatpush2.msra.mxu0 0.0
    %782 = vmatprep.subr.mxu0 0.0
    %783 = vmatpush2.msra.mxu0 0.0
    %784 = vmatprep.subr.mxu0 0.0
    %785 = vmatpush2.msra.mxu0 0.0
    %786 = vmatprep.subr.mxu0 0.0
    %787 = vmatpush2.msra.mxu0 0.0
    %788 = vmatprep.subr.mxu0 0.0
    %789 = vmatpush2.msra.mxu0 0.0
    %790 = vmatprep.subr.mxu0 0.0
    %791 = vmatpush2.msra.mxu0 0.0
    %792 = vmatprep.subr.mxu0 0.0
    %793 = vmatpush2.msra.mxu0 0.0
    %794 = vmatprep.subr.mxu0 0.0
    %795 = vmatpush2.msra.mxu0 0.0
    %796 = vmatprep.subr.mxu0 0.0
    %797 = vmatpush2.msra.mxu0 0.0
    %798 = vmatprep.subr.mxu0 0.0
    %799 = vmatpush2.msra.mxu0 0.0
    %800 = vmatprep.subr.mxu0 0.0
    %801 = vmatpush2.msra.mxu0 0.0
    %802 = vmatprep.subr.mxu0 0.0
    %803 = vmatpush2.msra.mxu0 0.0
    %804 = vmatprep.subr.mxu0 0.0
    %805 = vmatpush2.msra.mxu0 0.0
    %806 = vmatprep.subr.mxu0 0.0
    %807 = vmatpush2.msra.mxu0 0.0
    %808 = vmatprep.subr.mxu0 0.0
    %809 = vmatpush2.msra.mxu0 0.0
    %810 = vmatprep.mubr.f32.mxu0 0.0
    %811 = vmatmul.mubr.f32.gmra.mxu0 %v744
    %v812 = vpop.f32.mrf.mxu0
    %v813 = vadd.f32 0.0, %v812
    %v814 = vpop.f32.mrf.mxu0
    %v815 = vadd.f32 0.0, %v814
    %816 = vdwg.mxu0
    %817 = vmatprep.subr.mxu0 0.0
    %818 = vmatpush1.msra.mxu0 %v397
    %819 = vmatprep.subr.mxu0 0.0
    %820 = vmatpush1.msra.mxu0 %v394
    %821 = vmatprep.subr.mxu0 0.0
    %822 = vmatpush1.msra.mxu0 %v391
    %823 = vmatprep.subr.mxu0 0.0
    %824 = vmatpush1.msra.mxu0 %v388
    %825 = vmatprep.subr.mxu0 0.0
    %826 = vmatpush1.msra.mxu0 %v385
    %827 = vmatprep.subr.mxu0 0.0
    %828 = vmatpush1.msra.mxu0 %v382
    %829 = vmatprep.subr.mxu0 0.0
    %830 = vmatpush1.msra.mxu0 %v379
    %831 = vmatprep.subr.mxu0 0.0
    %832 = vmatpush1.msra.mxu0 %v376
    %833 = vmatprep.subr.mxu0 0.0
    %834 = vmatpush1.msra.mxu0 %v373
    %835 = vmatprep.subr.mxu0 0.0
    %836 = vmatpush1.msra.mxu0 %v370
    %837 = vmatprep.subr.mxu0 0.0
    %838 = vmatpush1.msra.mxu0 %v367
    %839 = vmatprep.subr.mxu0 0.0
    %840 = vmatpush1.msra.mxu0 %v364
    %841 = vmatprep.subr.mxu0 0.0
    %842 = vmatpush1.msra.mxu0 %v361
    %843 = vmatprep.subr.mxu0 0.0
    %844 = vmatpush1.msra.mxu0 %v358
    %845 = vmatprep.subr.mxu0 0.0
    %846 = vmatpush1.msra.mxu0 %v355
    %847 = vmatprep.subr.mxu0 0.0
    %848 = vmatpush1.msra.mxu0 %v352
    %849 = vmatprep.subr.mxu0 0.0
    %850 = vmatpush2.msra.mxu0 0.0
    %851 = vmatprep.subr.mxu0 0.0
    %852 = vmatpush2.msra.mxu0 0.0
    %853 = vmatprep.subr.mxu0 0.0
    %854 = vmatpush2.msra.mxu0 0.0
    %855 = vmatprep.subr.mxu0 0.0
    %856 = vmatpush2.msra.mxu0 0.0
    %857 = vmatprep.subr.mxu0 0.0
    %858 = vmatpush2.msra.mxu0 0.0
    %859 = vmatprep.subr.mxu0 0.0
    %860 = vmatpush2.msra.mxu0 0.0
    %861 = vmatprep.subr.mxu0 0.0
    %862 = vmatpush2.msra.mxu0 0.0
    %863 = vmatprep.subr.mxu0 0.0
    %864 = vmatpush2.msra.mxu0 0.0
    %865 = vmatprep.subr.mxu0 0.0
    %866 = vmatpush2.msra.mxu0 0.0
    %867 = vmatprep.subr.mxu0 0.0
    %868 = vmatpush2.msra.mxu0 0.0
    %869 = vmatprep.subr.mxu0 0.0
    %870 = vmatpush2.msra.mxu0 0.0
    %871 = vmatprep.subr.mxu0 0.0
    %872 = vmatpush2.msra.mxu0 0.0
    %873 = vmatprep.subr.mxu0 0.0
    %874 = vmatpush2.msra.mxu0 0.0
    %875 = vmatprep.subr.mxu0 0.0
    %876 = vmatpush2.msra.mxu0 0.0
    %877 = vmatprep.subr.mxu0 0.0
    %878 = vmatpush2.msra.mxu0 0.0
    %879 = vmatprep.subr.mxu0 0.0
    %880 = vmatpush2.msra.mxu0 0.0
    %881 = vmatprep.mubr.f32.mxu0 0.0
    %882 = vmatmul.mubr.f32.gmra.mxu0 %v744
    %v883 = vpop.f32.mrf.mxu0
    %v884 = vadd.f32 0.0, %v883
    %v885 = vpop.f32.mrf.mxu0
    %886 = vdwg.mxu0
    %v888 = vrot.slane %v813, 4
    %v890 = vadd.f32 %v265, %v888
    %v891 = vxor.u32 %v890, 2147483648
    %v892 = vmul.f32 %v891, 1.442695
    %v893 = vpow.pop %v892
    %v894 = vadd.f32 %v893, 1.0
    %v895 = vrcp.pop %v894
    %v896 = vmul.f32 1.0, %v895
    %v898 = vrot.slane %v815, 4
    %v900 = vadd.f32 %v267, %v898
    %v901 = vxor.u32 %v900, 2147483648
    %v902 = vmul.f32 %v901, 1.442695
    %v903 = vpow.pop %v902
    %v904 = vadd.f32 %v903, 1.0
    %v905 = vrcp.pop %v904
    %v906 = vmul.f32 1.0, %v905
    %v907 = vadd.f32 %v884, %v558
    %v909 = vrot.slane %v907, 4
    %v911 = vmul.f32 %v896, %v909
    %v912 = vadd.f32 %v342, %v911
    %v913 = vtanh.pop %v912
    %v914 = vsub.f32 1.0, %v906
    %v915 = vmul.f32 %v914, %v913
    %v916 = vrot.slane %v742, 6
    %v918 = vmul.f32 %v906, %v916
    %v919 = vadd.f32 %v915, %v918
    %v921 = vrot.slane %v919, 4
    %923 = vmatprep.subr.mxu0 %v396
    %924 = vmatpush1.msra.mxu0 %v395
    %925 = vmatprep.subr.mxu0 %v393
    %926 = vmatpush1.msra.mxu0 %v392
    %927 = vmatprep.subr.mxu0 %v390
    %928 = vmatpush1.msra.mxu0 %v389
    %929 = vmatprep.subr.mxu0 %v387
    %930 = vmatpush1.msra.mxu0 %v386
    %931 = vmatprep.subr.mxu0 %v384
    %932 = vmatpush1.msra.mxu0 %v383
    %933 = vmatprep.subr.mxu0 %v381
    %934 = vmatpush1.msra.mxu0 %v380
    %935 = vmatprep.subr.mxu0 %v378
    %936 = vmatpush1.msra.mxu0 %v377
    %937 = vmatprep.subr.mxu0 %v375
    %938 = vmatpush1.msra.mxu0 %v374
    %939 = vmatprep.subr.mxu0 %v372
    %940 = vmatpush1.msra.mxu0 %v371
    %941 = vmatprep.subr.mxu0 %v369
    %942 = vmatpush1.msra.mxu0 %v368
    %943 = vmatprep.subr.mxu0 %v366
    %944 = vmatpush1.msra.mxu0 %v365
    %945 = vmatprep.subr.mxu0 %v363
    %946 = vmatpush1.msra.mxu0 %v362
    %947 = vmatprep.subr.mxu0 %v360
    %948 = vmatpush1.msra.mxu0 %v359
    %949 = vmatprep.subr.mxu0 %v357
    %950 = vmatpush1.msra.mxu0 %v356
    %951 = vmatprep.subr.mxu0 %v354
    %952 = vmatpush1.msra.mxu0 %v353
    %953 = vmatprep.subr.mxu0 %v351
    %954 = vmatpush1.msra.mxu0 %v350
    %955 = vmatprep.subr.mxu0 0.0
    %956 = vmatpush2.msra.mxu0 0.0
    %957 = vmatprep.subr.mxu0 0.0
    %958 = vmatpush2.msra.mxu0 0.0
    %959 = vmatprep.subr.mxu0 0.0
    %960 = vmatpush2.msra.mxu0 0.0
    %961 = vmatprep.subr.mxu0 0.0
    %962 = vmatpush2.msra.mxu0 0.0
    %963 = vmatprep.subr.mxu0 0.0
    %964 = vmatpush2.msra.mxu0 0.0
    %965 = vmatprep.subr.mxu0 0.0
    %966 = vmatpush2.msra.mxu0 0.0
    %967 = vmatprep.subr.mxu0 0.0
    %968 = vmatpush2.msra.mxu0 0.0
    %969 = vmatprep.subr.mxu0 0.0
    %970 = vmatpush2.msra.mxu0 0.0
    %971 = vmatprep.subr.mxu0 0.0
    %972 = vmatpush2.msra.mxu0 0.0
    %973 = vmatprep.subr.mxu0 0.0
    %974 = vmatpush2.msra.mxu0 0.0
    %975 = vmatprep.subr.mxu0 0.0
    %976 = vmatpush2.msra.mxu0 0.0
    %977 = vmatprep.subr.mxu0 0.0
    %978 = vmatpush2.msra.mxu0 0.0
    %979 = vmatprep.subr.mxu0 0.0
    %980 = vmatpush2.msra.mxu0 0.0
    %981 = vmatprep.subr.mxu0 0.0
    %982 = vmatpush2.msra.mxu0 0.0
    %983 = vmatprep.subr.mxu0 0.0
    %984 = vmatpush2.msra.mxu0 0.0
    %985 = vmatprep.subr.mxu0 0.0
    %986 = vmatpush2.msra.mxu0 0.0
    %987 = vmatprep.mubr.f32.mxu0 0.0
    %988 = vmatmul.mubr.f32.gmra.mxu0 %v921
    %v989 = vpop.f32.mrf.mxu0
    %v990 = vadd.f32 0.0, %v989
    %v991 = vpop.f32.mrf.mxu0
    %v992 = vadd.f32 0.0, %v991
    %993 = vdwg.mxu0
    %994 = vmatprep.subr.mxu0 0.0
    %995 = vmatpush1.msra.mxu0 %v397
    %996 = vmatprep.subr.mxu0 0.0
    %997 = vmatpush1.msra.mxu0 %v394
    %998 = vmatprep.subr.mxu0 0.0
    %999 = vmatpush1.msra.mxu0 %v391
    %1000 = vmatprep.subr.mxu0 0.0
    %1001 = vmatpush1.msra.mxu0 %v388
    %1002 = vmatprep.subr.mxu0 0.0
    %1003 = vmatpush1.msra.mxu0 %v385
    %1004 = vmatprep.subr.mxu0 0.0
    %1005 = vmatpush1.msra.mxu0 %v382
    %1006 = vmatprep.subr.mxu0 0.0
    %1007 = vmatpush1.msra.mxu0 %v379
    %1008 = vmatprep.subr.mxu0 0.0
    %1009 = vmatpush1.msra.mxu0 %v376
    %1010 = vmatprep.subr.mxu0 0.0
    %1011 = vmatpush1.msra.mxu0 %v373
    %1012 = vmatprep.subr.mxu0 0.0
    %1013 = vmatpush1.msra.mxu0 %v370
    %1014 = vmatprep.subr.mxu0 0.0
    %1015 = vmatpush1.msra.mxu0 %v367
    %1016 = vmatprep.subr.mxu0 0.0
    %1017 = vmatpush1.msra.mxu0 %v364
    %1018 = vmatprep.subr.mxu0 0.0
    %1019 = vmatpush1.msra.mxu0 %v361
    %1020 = vmatprep.subr.mxu0 0.0
    %1021 = vmatpush1.msra.mxu0 %v358
    %1022 = vmatprep.subr.mxu0 0.0
    %1023 = vmatpush1.msra.mxu0 %v355
    %1024 = vmatprep.subr.mxu0 0.0
    %1025 = vmatpush1.msra.mxu0 %v352
    %1026 = vmatprep.subr.mxu0 0.0
    %1027 = vmatpush2.msra.mxu0 0.0
    %1028 = vmatprep.subr.mxu0 0.0
    %1029 = vmatpush2.msra.mxu0 0.0
    %1030 = vmatprep.subr.mxu0 0.0
    %1031 = vmatpush2.msra.mxu0 0.0
    %1032 = vmatprep.subr.mxu0 0.0
    %1033 = vmatpush2.msra.mxu0 0.0
    %1034 = vmatprep.subr.mxu0 0.0
    %1035 = vmatpush2.msra.mxu0 0.0
    %1036 = vmatprep.subr.mxu0 0.0
    %1037 = vmatpush2.msra.mxu0 0.0
    %1038 = vmatprep.subr.mxu0 0.0
    %1039 = vmatpush2.msra.mxu0 0.0
    %1040 = vmatprep.subr.mxu0 0.0
    %1041 = vmatpush2.msra.mxu0 0.0
    %1042 = vmatprep.subr.mxu0 0.0
    %1043 = vmatpush2.msra.mxu0 0.0
    %1044 = vmatprep.subr.mxu0 0.0
    %1045 = vmatpush2.msra.mxu0 0.0
    %1046 = vmatprep.subr.mxu0 0.0
    %1047 = vmatpush2.msra.mxu0 0.0
    %1048 = vmatprep.subr.mxu0 0.0
    %1049 = vmatpush2.msra.mxu0 0.0
    %1050 = vmatprep.subr.mxu0 0.0
    %1051 = vmatpush2.msra.mxu0 0.0
    %1052 = vmatprep.subr.mxu0 0.0
    %1053 = vmatpush2.msra.mxu0 0.0
    %1054 = vmatprep.subr.mxu0 0.0
    %1055 = vmatpush2.msra.mxu0 0.0
    %1056 = vmatprep.subr.mxu0 0.0
    %1057 = vmatpush2.msra.mxu0 0.0
    %1058 = vmatprep.mubr.f32.mxu0 0.0
    %1059 = vmatmul.mubr.f32.gmra.mxu0 %v921
    %v1060 = vpop.f32.mrf.mxu0
    %v1061 = vadd.f32 0.0, %v1060
    %v1062 = vpop.f32.mrf.mxu0
    %1063 = vdwg.mxu0
    %v1065 = vrot.slane %v990, 2
    %v1067 = vadd.f32 %v265, %v1065
    %v1068 = vxor.u32 %v1067, 2147483648
    %v1069 = vmul.f32 %v1068, 1.442695
    %v1070 = vpow.pop %v1069
    %v1071 = vadd.f32 %v1070, 1.0
    %v1072 = vrcp.pop %v1071
    %v1073 = vmul.f32 1.0, %v1072
    %v1075 = vrot.slane %v992, 2
    %v1077 = vadd.f32 %v267, %v1075
    %v1078 = vxor.u32 %v1077, 2147483648
    %v1079 = vmul.f32 %v1078, 1.442695
    %v1080 = vpow.pop %v1079
    %v1081 = vadd.f32 %v1080, 1.0
    %v1082 = vrcp.pop %v1081
    %v1083 = vmul.f32 1.0, %v1082
    %v1084 = vadd.f32 %v1061, %v558
    %v1086 = vrot.slane %v1084, 2
    %v1088 = vmul.f32 %v1073, %v1086
    %v1089 = vadd.f32 %v342, %v1088
    %v1090 = vtanh.pop %v1089
    %v1091 = vsub.f32 1.0, %v1083
    %v1092 = vmul.f32 %v1091, %v1090
    %v1093 = vrot.slane %v919, 6
    %v1095 = vmul.f32 %v1083, %v1093
    %v1096 = vadd.f32 %v1092, %v1095
    %v1098 = vrot.slane %v1096, 6
    %1100 = vmatprep.subr.mxu0 %v396
    %1101 = vmatpush1.msra.mxu0 %v395
    %1102 = vmatprep.subr.mxu0 %v393
    %1103 = vmatpush1.msra.mxu0 %v392
    %1104 = vmatprep.subr.mxu0 %v390
    %1105 = vmatpush1.msra.mxu0 %v389
    %1106 = vmatprep.subr.mxu0 %v387
    %1107 = vmatpush1.msra.mxu0 %v386
    %1108 = vmatprep.subr.mxu0 %v384
    %1109 = vmatpush1.msra.mxu0 %v383
    %1110 = vmatprep.subr.mxu0 %v381
    %1111 = vmatpush1.msra.mxu0 %v380
    %1112 = vmatprep.subr.mxu0 %v378
    %1113 = vmatpush1.msra.mxu0 %v377
    %1114 = vmatprep.subr.mxu0 %v375
    %1115 = vmatpush1.msra.mxu0 %v374
    %1116 = vmatprep.subr.mxu0 %v372
    %1117 = vmatpush1.msra.mxu0 %v371
    %1118 = vmatprep.subr.mxu0 %v369
    %1119 = vmatpush1.msra.mxu0 %v368
    %1120 = vmatprep.subr.mxu0 %v366
    %1121 = vmatpush1.msra.mxu0 %v365
    %1122 = vmatprep.subr.mxu0 %v363
    %1123 = vmatpush1.msra.mxu0 %v362
    %1124 = vmatprep.subr.mxu0 %v360
    %1125 = vmatpush1.msra.mxu0 %v359
    %1126 = vmatprep.subr.mxu0 %v357
    %1127 = vmatpush1.msra.mxu0 %v356
    %1128 = vmatprep.subr.mxu0 %v354
    %1129 = vmatpush1.msra.mxu0 %v353
    %1130 = vmatprep.subr.mxu0 %v351
    %1131 = vmatpush1.msra.mxu0 %v350
    %1132 = vmatprep.subr.mxu0 0.0
    %1133 = vmatpush2.msra.mxu0 0.0
    %1134 = vmatprep.subr.mxu0 0.0
    %1135 = vmatpush2.msra.mxu0 0.0
    %1136 = vmatprep.subr.mxu0 0.0
    %1137 = vmatpush2.msra.mxu0 0.0
    %1138 = vmatprep.subr.mxu0 0.0
    %1139 = vmatpush2.msra.mxu0 0.0
    %1140 = vmatprep.subr.mxu0 0.0
    %1141 = vmatpush2.msra.mxu0 0.0
    %1142 = vmatprep.subr.mxu0 0.0
    %1143 = vmatpush2.msra.mxu0 0.0
    %1144 = vmatprep.subr.mxu0 0.0
    %1145 = vmatpush2.msra.mxu0 0.0
    %1146 = vmatprep.subr.mxu0 0.0
    %1147 = vmatpush2.msra.mxu0 0.0
    %1148 = vmatprep.subr.mxu0 0.0
    %1149 = vmatpush2.msra.mxu0 0.0
    %1150 = vmatprep.subr.mxu0 0.0
    %1151 = vmatpush2.msra.mxu0 0.0
    %1152 = vmatprep.subr.mxu0 0.0
    %1153 = vmatpush2.msra.mxu0 0.0
    %1154 = vmatprep.subr.mxu0 0.0
    %1155 = vmatpush2.msra.mxu0 0.0
    %1156 = vmatprep.subr.mxu0 0.0
    %1157 = vmatpush2.msra.mxu0 0.0
    %1158 = vmatprep.subr.mxu0 0.0
    %1159 = vmatpush2.msra.mxu0 0.0
    %1160 = vmatprep.subr.mxu0 0.0
    %1161 = vmatpush2.msra.mxu0 0.0
    %1162 = vmatprep.subr.mxu0 0.0
    %1163 = vmatpush2.msra.mxu0 0.0
    %1164 = vmatprep.mubr.f32.mxu0 0.0
    %1165 = vmatmul.mubr.f32.gmra.mxu0 %v1098
    %v1166 = vpop.f32.mrf.mxu0
    %v1167 = vadd.f32 0.0, %v1166
    %v1168 = vpop.f32.mrf.mxu0
    %v1169 = vadd.f32 0.0, %v1168
    %1170 = vdwg.mxu0
    %1171 = vmatprep.subr.mxu0 0.0
    %1172 = vmatpush1.msra.mxu0 %v397
    %1173 = vmatprep.subr.mxu0 0.0
    %1174 = vmatpush1.msra.mxu0 %v394
    %1175 = vmatprep.subr.mxu0 0.0
    %1176 = vmatpush1.msra.mxu0 %v391
    %1177 = vmatprep.subr.mxu0 0.0
    %1178 = vmatpush1.msra.mxu0 %v388
    %1179 = vmatprep.subr.mxu0 0.0
    %1180 = vmatpush1.msra.mxu0 %v385
    %1181 = vmatprep.subr.mxu0 0.0
    %1182 = vmatpush1.msra.mxu0 %v382
    %1183 = vmatprep.subr.mxu0 0.0
    %1184 = vmatpush1.msra.mxu0 %v379
    %1185 = vmatprep.subr.mxu0 0.0
    %1186 = vmatpush1.msra.mxu0 %v376
    %1187 = vmatprep.subr.mxu0 0.0
    %1188 = vmatpush1.msra.mxu0 %v373
    %1189 = vmatprep.subr.mxu0 0.0
    %1190 = vmatpush1.msra.mxu0 %v370
    %1191 = vmatprep.subr.mxu0 0.0
    %1192 = vmatpush1.msra.mxu0 %v367
    %1193 = vmatprep.subr.mxu0 0.0
    %1194 = vmatpush1.msra.mxu0 %v364
    %1195 = vmatprep.subr.mxu0 0.0
    %1196 = vmatpush1.msra.mxu0 %v361
    %1197 = vmatprep.subr.mxu0 0.0
    %1198 = vmatpush1.msra.mxu0 %v358
    %1199 = vmatprep.subr.mxu0 0.0
    %1200 = vmatpush1.msra.mxu0 %v355
    %1201 = vmatprep.subr.mxu0 0.0
    %1202 = vmatpush1.msra.mxu0 %v352
    %1203 = vmatprep.subr.mxu0 0.0
    %1204 = vmatpush2.msra.mxu0 0.0
    %1205 = vmatprep.subr.mxu0 0.0
    %1206 = vmatpush2.msra.mxu0 0.0
    %1207 = vmatprep.subr.mxu0 0.0
    %1208 = vmatpush2.msra.mxu0 0.0
    %1209 = vmatprep.subr.mxu0 0.0
    %1210 = vmatpush2.msra.mxu0 0.0
    %1211 = vmatprep.subr.mxu0 0.0
    %1212 = vmatpush2.msra.mxu0 0.0
    %1213 = vmatprep.subr.mxu0 0.0
    %1214 = vmatpush2.msra.mxu0 0.0
    %1215 = vmatprep.subr.mxu0 0.0
    %1216 = vmatpush2.msra.mxu0 0.0
    %1217 = vmatprep.subr.mxu0 0.0
    %1218 = vmatpush2.msra.mxu0 0.0
    %1219 = vmatprep.subr.mxu0 0.0
    %1220 = vmatpush2.msra.mxu0 0.0
    %1221 = vmatprep.subr.mxu0 0.0
    %1222 = vmatpush2.msra.mxu0 0.0
    %1223 = vmatprep.subr.mxu0 0.0
    %1224 = vmatpush2.msra.mxu0 0.0
    %1225 = vmatprep.subr.mxu0 0.0
    %1226 = vmatpush2.msra.mxu0 0.0
    %1227 = vmatprep.subr.mxu0 0.0
    %1228 = vmatpush2.msra.mxu0 0.0
    %1229 = vmatprep.subr.mxu0 0.0
    %1230 = vmatpush2.msra.mxu0 0.0
    %1231 = vmatprep.subr.mxu0 0.0
    %1232 = vmatpush2.msra.mxu0 0.0
    %1233 = vmatprep.subr.mxu0 0.0
    %1234 = vmatpush2.msra.mxu0 0.0
    %1235 = vmatprep.mubr.f32.mxu0 0.0
    %1236 = vmatmul.mubr.f32.gmra.mxu0 %v1098
    %v1237 = vpop.f32.mrf.mxu0
    %v1238 = vadd.f32 0.0, %v1237
    %v1239 = vpop.f32.mrf.mxu0
    %1240 = vdwg.mxu0
    %v1241 = vadd.f32 %v271, %v1167
    %v1242 = vxor.u32 %v1241, 2147483648
    %v1243 = vmul.f32 %v1242, 1.442695
    %v1244 = vpow.pop %v1243
    %v1245 = vadd.f32 %v1244, 1.0
    %v1246 = vrcp.pop %v1245
    %v1247 = vmul.f32 1.0, %v1246
    %v1248 = vadd.f32 %v273, %v1169
    %v1249 = vxor.u32 %v1248, 2147483648
    %v1250 = vmul.f32 %v1249, 1.442695
    %v1251 = vpow.pop %v1250
    %v1252 = vadd.f32 %v1251, 1.0
    %v1253 = vrcp.pop %v1252
    %v1254 = vmul.f32 1.0, %v1253
    %v1255 = vadd.f32 %v1238, %v558
    %v1256 = vmul.f32 %v1247, %v1255
    %v1257 = vadd.f32 %v347, %v1256
    %v1258 = vtanh.pop %v1257
    %v1259 = vsub.f32 1.0, %v1254
    %v1260 = vmul.f32 %v1259, %v1258
    %v1261 = vmul.f32 %v1254, %v1098
    %v1262 = vadd.f32 %v1260, %v1261
    %1263 = vmatprep.subr.mxu0 %v396
    %1264 = vmatpush1.msra.mxu0 %v395
    %1265 = vmatprep.subr.mxu0 %v393
    %1266 = vmatpush1.msra.mxu0 %v392
    %1267 = vmatprep.subr.mxu0 %v390
    %1268 = vmatpush1.msra.mxu0 %v389
    %1269 = vmatprep.subr.mxu0 %v387
    %1270 = vmatpush1.msra.mxu0 %v386
    %1271 = vmatprep.subr.mxu0 %v384
    %1272 = vmatpush1.msra.mxu0 %v383
    %1273 = vmatprep.subr.mxu0 %v381
    %1274 = vmatpush1.msra.mxu0 %v380
    %1275 = vmatprep.subr.mxu0 %v378
    %1276 = vmatpush1.msra.mxu0 %v377
    %1277 = vmatprep.subr.mxu0 %v375
    %1278 = vmatpush1.msra.mxu0 %v374
    %1279 = vmatprep.subr.mxu0 %v372
    %1280 = vmatpush1.msra.mxu0 %v371
    %1281 = vmatprep.subr.mxu0 %v369
    %1282 = vmatpush1.msra.mxu0 %v368
    %1283 = vmatprep.subr.mxu0 %v366
    %1284 = vmatpush1.msra.mxu0 %v365
    %1285 = vmatprep.subr.mxu0 %v363
    %1286 = vmatpush1.msra.mxu0 %v362
    %1287 = vmatprep.subr.mxu0 %v360
    %1288 = vmatpush1.msra.mxu0 %v359
    %1289 = vmatprep.subr.mxu0 %v357
    %1290 = vmatpush1.msra.mxu0 %v356
    %1291 = vmatprep.subr.mxu0 %v354
    %1292 = vmatpush1.msra.mxu0 %v353
    %1293 = vmatprep.subr.mxu0 %v351
    %1294 = vmatpush1.msra.mxu0 %v350
    %1295 = vmatprep.subr.mxu0 0.0
    %1296 = vmatpush2.msra.mxu0 0.0
    %1297 = vmatprep.subr.mxu0 0.0
    %1298 = vmatpush2.msra.mxu0 0.0
    %1299 = vmatprep.subr.mxu0 0.0
    %1300 = vmatpush2.msra.mxu0 0.0
    %1301 = vmatprep.subr.mxu0 0.0
    %1302 = vmatpush2.msra.mxu0 0.0
    %1303 = vmatprep.subr.mxu0 0.0
    %1304 = vmatpush2.msra.mxu0 0.0
    %1305 = vmatprep.subr.mxu0 0.0
    %1306 = vmatpush2.msra.mxu0 0.0
    %1307 = vmatprep.subr.mxu0 0.0
    %1308 = vmatpush2.msra.mxu0 0.0
    %1309 = vmatprep.subr.mxu0 0.0
    %1310 = vmatpush2.msra.mxu0 0.0
    %1311 = vmatprep.subr.mxu0 0.0
    %1312 = vmatpush2.msra.mxu0 0.0
    %1313 = vmatprep.subr.mxu0 0.0
    %1314 = vmatpush2.msra.mxu0 0.0
    %1315 = vmatprep.subr.mxu0 0.0
    %1316 = vmatpush2.msra.mxu0 0.0
    %1317 = vmatprep.subr.mxu0 0.0
    %1318 = vmatpush2.msra.mxu0 0.0
    %1319 = vmatprep.subr.mxu0 0.0
    %1320 = vmatpush2.msra.mxu0 0.0
    %1321 = vmatprep.subr.mxu0 0.0
    %1322 = vmatpush2.msra.mxu0 0.0
    %1323 = vmatprep.subr.mxu0 0.0
    %1324 = vmatpush2.msra.mxu0 0.0
    %1325 = vmatprep.subr.mxu0 0.0
    %1326 = vmatpush2.msra.mxu0 0.0
    %1327 = vmatprep.mubr.f32.mxu0 0.0
    %1328 = vmatmul.mubr.f32.gmra.mxu0 %v1262
    %v1329 = vpop.f32.mrf.mxu0
    %v1330 = vadd.f32 0.0, %v1329
    %v1331 = vpop.f32.mrf.mxu0
    %v1332 = vadd.f32 0.0, %v1331
    %1333 = vdwg.mxu0
    %1334 = vmatprep.subr.mxu0 0.0
    %1335 = vmatpush1.msra.mxu0 %v397
    %1336 = vmatprep.subr.mxu0 0.0
    %1337 = vmatpush1.msra.mxu0 %v394
    %1338 = vmatprep.subr.mxu0 0.0
    %1339 = vmatpush1.msra.mxu0 %v391
    %1340 = vmatprep.subr.mxu0 0.0
    %1341 = vmatpush1.msra.mxu0 %v388
    %1342 = vmatprep.subr.mxu0 0.0
    %1343 = vmatpush1.msra.mxu0 %v385
    %1344 = vmatprep.subr.mxu0 0.0
    %1345 = vmatpush1.msra.mxu0 %v382
    %1346 = vmatprep.subr.mxu0 0.0
    %1347 = vmatpush1.msra.mxu0 %v379
    %1348 = vmatprep.subr.mxu0 0.0
    %1349 = vmatpush1.msra.mxu0 %v376
    %1350 = vmatprep.subr.mxu0 0.0
    %1351 = vmatpush1.msra.mxu0 %v373
    %1352 = vmatprep.subr.mxu0 0.0
    %1353 = vmatpush1.msra.mxu0 %v370
    %1354 = vmatprep.subr.mxu0 0.0
    %1355 = vmatpush1.msra.mxu0 %v367
    %1356 = vmatprep.subr.mxu0 0.0
    %1357 = vmatpush1.msra.mxu0 %v364
    %1358 = vmatprep.subr.mxu0 0.0
    %1359 = vmatpush1.msra.mxu0 %v361
    %1360 = vmatprep.subr.mxu0 0.0
    %1361 = vmatpush1.msra.mxu0 %v358
    %1362 = vmatprep.subr.mxu0 0.0
    %1363 = vmatpush1.msra.mxu0 %v355
    %1364 = vmatprep.subr.mxu0 0.0
    %1365 = vmatpush1.msra.mxu0 %v352
    %1366 = vmatprep.subr.mxu0 0.0
    %1367 = vmatpush2.msra.mxu0 0.0
    %1368 = vmatprep.subr.mxu0 0.0
    %1369 = vmatpush2.msra.mxu0 0.0
    %1370 = vmatprep.subr.mxu0 0.0
    %1371 = vmatpush2.msra.mxu0 0.0
    %1372 = vmatprep.subr.mxu0 0.0
    %1373 = vmatpush2.msra.mxu0 0.0
    %1374 = vmatprep.subr.mxu0 0.0
    %1375 = vmatpush2.msra.mxu0 0.0
    %1376 = vmatprep.subr.mxu0 0.0
    %1377 = vmatpush2.msra.mxu0 0.0
    %1378 = vmatprep.subr.mxu0 0.0
    %1379 = vmatpush2.msra.mxu0 0.0
    %1380 = vmatprep.subr.mxu0 0.0
    %1381 = vmatpush2.msra.mxu0 0.0
    %1382 = vmatprep.subr.mxu0 0.0
    %1383 = vmatpush2.msra.mxu0 0.0
    %1384 = vmatprep.subr.mxu0 0.0
    %1385 = vmatpush2.msra.mxu0 0.0
    %1386 = vmatprep.subr.mxu0 0.0
    %1387 = vmatpush2.msra.mxu0 0.0
    %1388 = vmatprep.subr.mxu0 0.0
    %1389 = vmatpush2.msra.mxu0 0.0
    %1390 = vmatprep.subr.mxu0 0.0
    %1391 = vmatpush2.msra.mxu0 0.0
    %1392 = vmatprep.subr.mxu0 0.0
    %1393 = vmatpush2.msra.mxu0 0.0
    %1394 = vmatprep.subr.mxu0 0.0
    %1395 = vmatpush2.msra.mxu0 0.0
    %1396 = vmatprep.subr.mxu0 0.0
    %1397 = vmatpush2.msra.mxu0 0.0
    %1398 = vmatprep.mubr.f32.mxu0 0.0
    %1399 = vmatmul.mubr.f32.gmra.mxu0 %v1262
    %v1400 = vpop.f32.mrf.mxu0
    %v1401 = vadd.f32 0.0, %v1400
    %v1402 = vpop.f32.mrf.mxu0
    %1403 = vdwg.mxu0
    %v1405 = vrot.slane %v1330, 6
    %v1407 = vadd.f32 %v271, %v1405
    %v1408 = vxor.u32 %v1407, 2147483648
    %v1409 = vmul.f32 %v1408, 1.442695
    %v1410 = vpow.pop %v1409
    %v1411 = vadd.f32 %v1410, 1.0
    %v1412 = vrcp.pop %v1411
    %v1413 = vmul.f32 1.0, %v1412
    %v1415 = vrot.slane %v1332, 6
    %v1417 = vadd.f32 %v273, %v1415
    %v1418 = vxor.u32 %v1417, 2147483648
    %v1419 = vmul.f32 %v1418, 1.442695
    %v1420 = vpow.pop %v1419
    %v1421 = vadd.f32 %v1420, 1.0
    %v1422 = vrcp.pop %v1421
    %v1423 = vmul.f32 1.0, %v1422
    %v1424 = vadd.f32 %v1401, %v558
    %v1426 = vrot.slane %v1424, 6
    %v1428 = vmul.f32 %v1413, %v1426
    %v1429 = vadd.f32 %v347, %v1428
    %v1430 = vtanh.pop %v1429
    %v1431 = vsub.f32 1.0, %v1423
    %v1432 = vmul.f32 %v1431, %v1430
    %v1434 = vrot.slane %v1262, 6
    %v1436 = vmul.f32 %v1423, %v1434
    %v1437 = vadd.f32 %v1432, %v1436
    %v1439 = vrot.slane %v1437, 2
    %1441 = vmatprep.subr.mxu0 %v396
    %1442 = vmatpush1.msra.mxu0 %v395
    %1443 = vmatprep.subr.mxu0 %v393
    %1444 = vmatpush1.msra.mxu0 %v392
    %1445 = vmatprep.subr.mxu0 %v390
    %1446 = vmatpush1.msra.mxu0 %v389
    %1447 = vmatprep.subr.mxu0 %v387
    %1448 = vmatpush1.msra.mxu0 %v386
    %1449 = vmatprep.subr.mxu0 %v384
    %1450 = vmatpush1.msra.mxu0 %v383
    %1451 = vmatprep.subr.mxu0 %v381
    %1452 = vmatpush1.msra.mxu0 %v380
    %1453 = vmatprep.subr.mxu0 %v378
    %1454 = vmatpush1.msra.mxu0 %v377
    %1455 = vmatprep.subr.mxu0 %v375
    %1456 = vmatpush1.msra.mxu0 %v374
    %1457 = vmatprep.subr.mxu0 %v372
    %1458 = vmatpush1.msra.mxu0 %v371
    %1459 = vmatprep.subr.mxu0 %v369
    %1460 = vmatpush1.msra.mxu0 %v368
    %1461 = vmatprep.subr.mxu0 %v366
    %1462 = vmatpush1.msra.mxu0 %v365
    %1463 = vmatprep.subr.mxu0 %v363
    %1464 = vmatpush1.msra.mxu0 %v362
    %1465 = vmatprep.subr.mxu0 %v360
    %1466 = vmatpush1.msra.mxu0 %v359
    %1467 = vmatprep.subr.mxu0 %v357
    %1468 = vmatpush1.msra.mxu0 %v356
    %1469 = vmatprep.subr.mxu0 %v354
    %1470 = vmatpush1.msra.mxu0 %v353
    %1471 = vmatprep.subr.mxu0 %v351
    %1472 = vmatpush1.msra.mxu0 %v350
    %1473 = vmatprep.subr.mxu0 0.0
    %1474 = vmatpush2.msra.mxu0 0.0
    %1475 = vmatprep.subr.mxu0 0.0
    %1476 = vmatpush2.msra.mxu0 0.0
    %1477 = vmatprep.subr.mxu0 0.0
    %1478 = vmatpush2.msra.mxu0 0.0
    %1479 = vmatprep.subr.mxu0 0.0
    %1480 = vmatpush2.msra.mxu0 0.0
    %1481 = vmatprep.subr.mxu0 0.0
    %1482 = vmatpush2.msra.mxu0 0.0
    %1483 = vmatprep.subr.mxu0 0.0
    %1484 = vmatpush2.msra.mxu0 0.0
    %1485 = vmatprep.subr.mxu0 0.0
    %1486 = vmatpush2.msra.mxu0 0.0
    %1487 = vmatprep.subr.mxu0 0.0
    %1488 = vmatpush2.msra.mxu0 0.0
    %1489 = vmatprep.subr.mxu0 0.0
    %1490 = vmatpush2.msra.mxu0 0.0
    %1491 = vmatprep.subr.mxu0 0.0
    %1492 = vmatpush2.msra.mxu0 0.0
    %1493 = vmatprep.subr.mxu0 0.0
    %1494 = vmatpush2.msra.mxu0 0.0
    %1495 = vmatprep.subr.mxu0 0.0
    %1496 = vmatpush2.msra.mxu0 0.0
    %1497 = vmatprep.subr.mxu0 0.0
    %1498 = vmatpush2.msra.mxu0 0.0
    %1499 = vmatprep.subr.mxu0 0.0
    %1500 = vmatpush2.msra.mxu0 0.0
    %1501 = vmatprep.subr.mxu0 0.0
    %1502 = vmatpush2.msra.mxu0 0.0
    %1503 = vmatprep.subr.mxu0 0.0
    %1504 = vmatpush2.msra.mxu0 0.0
    %1505 = vmatprep.mubr.f32.mxu0 0.0
    %1506 = vmatmul.mubr.f32.gmra.mxu0 %v1439
    %v1507 = vpop.f32.mrf.mxu0
    %v1508 = vadd.f32 0.0, %v1507
    %v1509 = vpop.f32.mrf.mxu0
    %v1510 = vadd.f32 0.0, %v1509
    %1511 = vdwg.mxu0
    %1512 = vmatprep.subr.mxu0 0.0
    %1513 = vmatpush1.msra.mxu0 %v397
    %1514 = vmatprep.subr.mxu0 0.0
    %1515 = vmatpush1.msra.mxu0 %v394
    %1516 = vmatprep.subr.mxu0 0.0
    %1517 = vmatpush1.msra.mxu0 %v391
    %1518 = vmatprep.subr.mxu0 0.0
    %1519 = vmatpush1.msra.mxu0 %v388
    %1520 = vmatprep.subr.mxu0 0.0
    %1521 = vmatpush1.msra.mxu0 %v385
    %1522 = vmatprep.subr.mxu0 0.0
    %1523 = vmatpush1.msra.mxu0 %v382
    %1524 = vmatprep.subr.mxu0 0.0
    %1525 = vmatpush1.msra.mxu0 %v379
    %1526 = vmatprep.subr.mxu0 0.0
    %1527 = vmatpush1.msra.mxu0 %v376
    %1528 = vmatprep.subr.mxu0 0.0
    %1529 = vmatpush1.msra.mxu0 %v373
    %1530 = vmatprep.subr.mxu0 0.0
    %1531 = vmatpush1.msra.mxu0 %v370
    %1532 = vmatprep.subr.mxu0 0.0
    %1533 = vmatpush1.msra.mxu0 %v367
    %1534 = vmatprep.subr.mxu0 0.0
    %1535 = vmatpush1.msra.mxu0 %v364
    %1536 = vmatprep.subr.mxu0 0.0
    %1537 = vmatpush1.msra.mxu0 %v361
    %1538 = vmatprep.subr.mxu0 0.0
    %1539 = vmatpush1.msra.mxu0 %v358
    %1540 = vmatprep.subr.mxu0 0.0
    %1541 = vmatpush1.msra.mxu0 %v355
    %1542 = vmatprep.subr.mxu0 0.0
    %1543 = vmatpush1.msra.mxu0 %v352
    %1544 = vmatprep.subr.mxu0 0.0
    %1545 = vmatpush2.msra.mxu0 0.0
    %1546 = vmatprep.subr.mxu0 0.0
    %1547 = vmatpush2.msra.mxu0 0.0
    %1548 = vmatprep.subr.mxu0 0.0
    %1549 = vmatpush2.msra.mxu0 0.0
    %1550 = vmatprep.subr.mxu0 0.0
    %1551 = vmatpush2.msra.mxu0 0.0
    %1552 = vmatprep.subr.mxu0 0.0
    %1553 = vmatpush2.msra.mxu0 0.0
    %1554 = vmatprep.subr.mxu0 0.0
    %1555 = vmatpush2.msra.mxu0 0.0
    %1556 = vmatprep.subr.mxu0 0.0
    %1557 = vmatpush2.msra.mxu0 0.0
    %1558 = vmatprep.subr.mxu0 0.0
    %1559 = vmatpush2.msra.mxu0 0.0
    %1560 = vmatprep.subr.mxu0 0.0
    %1561 = vmatpush2.msra.mxu0 0.0
    %1562 = vmatprep.subr.mxu0 0.0
    %1563 = vmatpush2.msra.mxu0 0.0
    %1564 = vmatprep.subr.mxu0 0.0
    %1565 = vmatpush2.msra.mxu0 0.0
    %1566 = vmatprep.subr.mxu0 0.0
    %1567 = vmatpush2.msra.mxu0 0.0
    %1568 = vmatprep.subr.mxu0 0.0
    %1569 = vmatpush2.msra.mxu0 0.0
    %1570 = vmatprep.subr.mxu0 0.0
    %1571 = vmatpush2.msra.mxu0 0.0
    %1572 = vmatprep.subr.mxu0 0.0
    %1573 = vmatpush2.msra.mxu0 0.0
    %1574 = vmatprep.subr.mxu0 0.0
    %1575 = vmatpush2.msra.mxu0 0.0
    %1576 = vmatprep.mubr.f32.mxu0 0.0
    %1577 = vmatmul.mubr.f32.gmra.mxu0 %v1439
    %v1578 = vpop.f32.mrf.mxu0
    %v1579 = vadd.f32 0.0, %v1578
    %v1580 = vpop.f32.mrf.mxu0
    %1581 = vdwg.mxu0
    %v1583 = vrot.slane %v1508, 4
    %v1585 = vadd.f32 %v271, %v1583
    %v1586 = vxor.u32 %v1585, 2147483648
    %v1587 = vmul.f32 %v1586, 1.442695
    %v1588 = vpow.pop %v1587
    %v1589 = vadd.f32 %v1588, 1.0
    %v1590 = vrcp.pop %v1589
    %v1591 = vmul.f32 1.0, %v1590
    %v1593 = vrot.slane %v1510, 4
    %v1595 = vadd.f32 %v273, %v1593
    %v1596 = vxor.u32 %v1595, 2147483648
    %v1597 = vmul.f32 %v1596, 1.442695
    %v1598 = vpow.pop %v1597
    %v1599 = vadd.f32 %v1598, 1.0
    %v1600 = vrcp.pop %v1599
    %v1601 = vmul.f32 1.0, %v1600
    %v1602 = vadd.f32 %v1579, %v558
    %v1604 = vrot.slane %v1602, 4
    %v1606 = vmul.f32 %v1591, %v1604
    %v1607 = vadd.f32 %v347, %v1606
    %v1608 = vtanh.pop %v1607
    %v1609 = vsub.f32 1.0, %v1601
    %v1610 = vmul.f32 %v1609, %v1608
    %v1611 = vrot.slane %v1437, 6
    %v1613 = vmul.f32 %v1601, %v1611
    %v1614 = vadd.f32 %v1610, %v1613
    %v1616 = vrot.slane %v1614, 4
    %1618 = vmatprep.subr.mxu0 %v396
    %1619 = vmatpush1.msra.mxu0 %v395
    %1620 = vmatprep.subr.mxu0 %v393
    %1621 = vmatpush1.msra.mxu0 %v392
    %1622 = vmatprep.subr.mxu0 %v390
    %1623 = vmatpush1.msra.mxu0 %v389
    %1624 = vmatprep.subr.mxu0 %v387
    %1625 = vmatpush1.msra.mxu0 %v386
    %1626 = vmatprep.subr.mxu0 %v384
    %1627 = vmatpush1.msra.mxu0 %v383
    %1628 = vmatprep.subr.mxu0 %v381
    %1629 = vmatpush1.msra.mxu0 %v380
    %1630 = vmatprep.subr.mxu0 %v378
    %1631 = vmatpush1.msra.mxu0 %v377
    %1632 = vmatprep.subr.mxu0 %v375
    %1633 = vmatpush1.msra.mxu0 %v374
    %1634 = vmatprep.subr.mxu0 %v372
    %1635 = vmatpush1.msra.mxu0 %v371
    %1636 = vmatprep.subr.mxu0 %v369
    %1637 = vmatpush1.msra.mxu0 %v368
    %1638 = vmatprep.subr.mxu0 %v366
    %1639 = vmatpush1.msra.mxu0 %v365
    %1640 = vmatprep.subr.mxu0 %v363
    %1641 = vmatpush1.msra.mxu0 %v362
    %1642 = vmatprep.subr.mxu0 %v360
    %1643 = vmatpush1.msra.mxu0 %v359
    %1644 = vmatprep.subr.mxu0 %v357
    %1645 = vmatpush1.msra.mxu0 %v356
    %1646 = vmatprep.subr.mxu0 %v354
    %1647 = vmatpush1.msra.mxu0 %v353
    %1648 = vmatprep.subr.mxu0 %v351
    %1649 = vmatpush1.msra.mxu0 %v350
    %1650 = vmatprep.subr.mxu0 0.0
    %1651 = vmatpush2.msra.mxu0 0.0
    %1652 = vmatprep.subr.mxu0 0.0
    %1653 = vmatpush2.msra.mxu0 0.0
    %1654 = vmatprep.subr.mxu0 0.0
    %1655 = vmatpush2.msra.mxu0 0.0
    %1656 = vmatprep.subr.mxu0 0.0
    %1657 = vmatpush2.msra.mxu0 0.0
    %1658 = vmatprep.subr.mxu0 0.0
    %1659 = vmatpush2.msra.mxu0 0.0
    %1660 = vmatprep.subr.mxu0 0.0
    %1661 = vmatpush2.msra.mxu0 0.0
    %1662 = vmatprep.subr.mxu0 0.0
    %1663 = vmatpush2.msra.mxu0 0.0
    %1664 = vmatprep.subr.mxu0 0.0
    %1665 = vmatpush2.msra.mxu0 0.0
    %1666 = vmatprep.subr.mxu0 0.0
    %1667 = vmatpush2.msra.mxu0 0.0
    %1668 = vmatprep.subr.mxu0 0.0
    %1669 = vmatpush2.msra.mxu0 0.0
    %1670 = vmatprep.subr.mxu0 0.0
    %1671 = vmatpush2.msra.mxu0 0.0
    %1672 = vmatprep.subr.mxu0 0.0
    %1673 = vmatpush2.msra.mxu0 0.0
    %1674 = vmatprep.subr.mxu0 0.0
    %1675 = vmatpush2.msra.mxu0 0.0
    %1676 = vmatprep.subr.mxu0 0.0
    %1677 = vmatpush2.msra.mxu0 0.0
    %1678 = vmatprep.subr.mxu0 0.0
    %1679 = vmatpush2.msra.mxu0 0.0
    %1680 = vmatprep.subr.mxu0 0.0
    %1681 = vmatpush2.msra.mxu0 0.0
    %1682 = vmatprep.mubr.f32.mxu0 0.0
    %1683 = vmatmul.mubr.f32.gmra.mxu0 %v1616
    %v1684 = vpop.f32.mrf.mxu0
    %v1685 = vadd.f32 0.0, %v1684
    %v1686 = vpop.f32.mrf.mxu0
    %v1687 = vadd.f32 0.0, %v1686
    %1688 = vdwg.mxu0
    %1689 = vmatprep.subr.mxu0 0.0
    %1690 = vmatpush1.msra.mxu0 %v397
    %1691 = vmatprep.subr.mxu0 0.0
    %1692 = vmatpush1.msra.mxu0 %v394
    %1693 = vmatprep.subr.mxu0 0.0
    %1694 = vmatpush1.msra.mxu0 %v391
    %1695 = vmatprep.subr.mxu0 0.0
    %1696 = vmatpush1.msra.mxu0 %v388
    %1697 = vmatprep.subr.mxu0 0.0
    %1698 = vmatpush1.msra.mxu0 %v385
    %1699 = vmatprep.subr.mxu0 0.0
    %1700 = vmatpush1.msra.mxu0 %v382
    %1701 = vmatprep.subr.mxu0 0.0
    %1702 = vmatpush1.msra.mxu0 %v379
    %1703 = vmatprep.subr.mxu0 0.0
    %1704 = vmatpush1.msra.mxu0 %v376
    %1705 = vmatprep.subr.mxu0 0.0
    %1706 = vmatpush1.msra.mxu0 %v373
    %1707 = vmatprep.subr.mxu0 0.0
    %1708 = vmatpush1.msra.mxu0 %v370
    %1709 = vmatprep.subr.mxu0 0.0
    %1710 = vmatpush1.msra.mxu0 %v367
    %1711 = vmatprep.subr.mxu0 0.0
    %1712 = vmatpush1.msra.mxu0 %v364
    %1713 = vmatprep.subr.mxu0 0.0
    %1714 = vmatpush1.msra.mxu0 %v361
    %1715 = vmatprep.subr.mxu0 0.0
    %1716 = vmatpush1.msra.mxu0 %v358
    %1717 = vmatprep.subr.mxu0 0.0
    %1718 = vmatpush1.msra.mxu0 %v355
    %1719 = vmatprep.subr.mxu0 0.0
    %1720 = vmatpush1.msra.mxu0 %v352
    %1721 = vmatprep.subr.mxu0 0.0
    %1722 = vmatpush2.msra.mxu0 0.0
    %1723 = vmatprep.subr.mxu0 0.0
    %1724 = vmatpush2.msra.mxu0 0.0
    %1725 = vmatprep.subr.mxu0 0.0
    %1726 = vmatpush2.msra.mxu0 0.0
    %1727 = vmatprep.subr.mxu0 0.0
    %1728 = vmatpush2.msra.mxu0 0.0
    %1729 = vmatprep.subr.mxu0 0.0
    %1730 = vmatpush2.msra.mxu0 0.0
    %1731 = vmatprep.subr.mxu0 0.0
    %1732 = vmatpush2.msra.mxu0 0.0
    %1733 = vmatprep.subr.mxu0 0.0
    %1734 = vmatpush2.msra.mxu0 0.0
    %1735 = vmatprep.subr.mxu0 0.0
    %1736 = vmatpush2.msra.mxu0 0.0
    %1737 = vmatprep.subr.mxu0 0.0
    %1738 = vmatpush2.msra.mxu0 0.0
    %1739 = vmatprep.subr.mxu0 0.0
    %1740 = vmatpush2.msra.mxu0 0.0
    %1741 = vmatprep.subr.mxu0 0.0
    %1742 = vmatpush2.msra.mxu0 0.0
    %1743 = vmatprep.subr.mxu0 0.0
    %1744 = vmatpush2.msra.mxu0 0.0
    %1745 = vmatprep.subr.mxu0 0.0
    %1746 = vmatpush2.msra.mxu0 0.0
    %1747 = vmatprep.subr.mxu0 0.0
    %1748 = vmatpush2.msra.mxu0 0.0
    %1749 = vmatprep.subr.mxu0 0.0
    %1750 = vmatpush2.msra.mxu0 0.0
    %1751 = vmatprep.subr.mxu0 0.0
    %1752 = vmatpush2.msra.mxu0 0.0
    %1753 = vmatprep.mubr.f32.mxu0 0.0
    %1754 = vmatmul.mubr.f32.gmra.mxu0 %v1616
    %v1755 = vpop.f32.mrf.mxu0
    %v1756 = vadd.f32 0.0, %v1755
    %v1757 = vpop.f32.mrf.mxu0
    %1758 = vdwg.mxu0
    %v1760 = vrot.slane %v1685, 2
    %v1762 = vadd.f32 %v271, %v1760
    %v1763 = vxor.u32 %v1762, 2147483648
    %v1764 = vmul.f32 %v1763, 1.442695
    %v1765 = vpow.pop %v1764
    %v1766 = vadd.f32 %v1765, 1.0
    %v1767 = vrcp.pop %v1766
    %v1768 = vmul.f32 1.0, %v1767
    %v1770 = vrot.slane %v1687, 2
    %v1772 = vadd.f32 %v273, %v1770
    %v1773 = vxor.u32 %v1772, 2147483648
    %v1774 = vmul.f32 %v1773, 1.442695
    %v1775 = vpow.pop %v1774
    %v1776 = vadd.f32 %v1775, 1.0
    %v1777 = vrcp.pop %v1776
    %v1778 = vmul.f32 1.0, %v1777
    %v1779 = vadd.f32 %v1756, %v558
    %v1781 = vrot.slane %v1779, 2
    %v1783 = vmul.f32 %v1768, %v1781
    %v1784 = vadd.f32 %v347, %v1783
    %v1785 = vtanh.pop %v1784
    %v1786 = vsub.f32 1.0, %v1778
    %v1787 = vmul.f32 %v1786, %v1785
    %v1788 = vrot.slane %v1614, 6
    %v1790 = vmul.f32 %v1778, %v1788
    %v1791 = vadd.f32 %v1787, %v1790
    %vm1792 = vcmask 1041408
    %v1793 = vsel %vm1792, %v567, %v742
    %vm1794 = vcmask 1043456
    %v1795 = vsel %vm1794, %v1793, %v919
    %vm1796 = vcmask 1045504
    %v1797 = vsel %vm1796, %v1795, %v1096
    %v1798 = vsel %vm1792, %v1262, %v1437
    %v1799 = vsel %vm1794, %v1798, %v1614
    %v1800 = vsel %vm1796, %v1799, %v1791
    %s1801 = scalar_lea.vmem [#allocation2], 384
    %v1802 = vld [vmem:[%s1801] sm:$0xff]
    %v1803 = vld [vmem:[%s1801 + $0x8] sm:$0xff]
    %v1804 = vld [vmem:[%s1801 + $0x10] sm:$0xff]
    %v1805 = vld [vmem:[%s1801 + $0x18] sm:$0xff]
    %v1806 = vld [vmem:[%s1801 + $0x20] sm:$0xff]
    %v1807 = vld [vmem:[%s1801 + $0x28] sm:$0xff]
    %v1808 = vld [vmem:[%s1801 + $0x30] sm:$0xff]
    %v1809 = vld [vmem:[%s1801 + $0x38] sm:$0xff]
    %v1810 = vld [vmem:[%s1801 + $0x40] sm:$0xff]
    %v1811 = vld [vmem:[%s1801 + $0x48] sm:$0xff]
    %v1812 = vld [vmem:[%s1801 + $0x50] sm:$0xff]
    %v1813 = vld [vmem:[%s1801 + $0x58] sm:$0xff]
    %v1814 = vld [vmem:[%s1801 + $0x60] sm:$0xff]
    %v1815 = vld [vmem:[%s1801 + $0x68] sm:$0xff]
    %v1816 = vld [vmem:[%s1801 + $0x70] sm:$0xff]
    %v1817 = vld [vmem:[%s1801 + $0x78] sm:$0xff]
    %v1818 = vld [vmem:[%s1801 + $0x80] sm:$0xff]
    %v1819 = vld [vmem:[%s1801 + $0x88] sm:$0xff]
    %v1820 = vld [vmem:[%s1801 + $0x90] sm:$0xff]
    %v1821 = vld [vmem:[%s1801 + $0x98] sm:$0xff]
    %v1822 = vld [vmem:[%s1801 + $0xa0] sm:$0xff]
    %v1823 = vld [vmem:[%s1801 + $0xa8] sm:$0xff]
    %v1824 = vld [vmem:[%s1801 + $0xb0] sm:$0xff]
    %v1825 = vld [vmem:[%s1801 + $0xb8] sm:$0xff]
    %v1826 = vld [vmem:[%s1801 + $0xc0] sm:$0xff]
    %v1827 = vld [vmem:[%s1801 + $0xc8] sm:$0xff]
    %v1828 = vld [vmem:[%s1801 + $0xd0] sm:$0xff]
    %v1829 = vld [vmem:[%s1801 + $0xd8] sm:$0xff]
    %v1830 = vld [vmem:[%s1801 + $0xe0] sm:$0xff]
    %v1831 = vld [vmem:[%s1801 + $0xe8] sm:$0xff]
    %v1832 = vld [vmem:[%s1801 + $0xf0] sm:$0xff]
    %v1833 = vld [vmem:[%s1801 + $0xf8] sm:$0xff]
    %v1834 = vld [vmem:[%s1801 + $0x100] sm:$0xff]
    %v1835 = vld [vmem:[%s1801 + $0x108] sm:$0xff]
    %v1836 = vld [vmem:[%s1801 + $0x110] sm:$0xff]
    %v1837 = vld [vmem:[%s1801 + $0x118] sm:$0xff]
    %v1838 = vld [vmem:[%s1801 + $0x120] sm:$0xff]
    %v1839 = vld [vmem:[%s1801 + $0x128] sm:$0xff]
    %v1840 = vld [vmem:[%s1801 + $0x130] sm:$0xff]
    %v1841 = vld [vmem:[%s1801 + $0x138] sm:$0xff]
    %v1842 = vld [vmem:[%s1801 + $0x140] sm:$0xff]
    %v1843 = vld [vmem:[%s1801 + $0x148] sm:$0xff]
    %v1844 = vld [vmem:[%s1801 + $0x150] sm:$0xff]
    %v1845 = vld [vmem:[%s1801 + $0x158] sm:$0xff]
    %v1846 = vld [vmem:[%s1801 + $0x160] sm:$0xff]
    %v1847 = vld [vmem:[%s1801 + $0x168] sm:$0xff]
    %v1848 = vld [vmem:[%s1801 + $0x170] sm:$0xff]
    %v1849 = vld [vmem:[%s1801 + $0x178] sm:$0xff]
    %s1850 = scalar_lea.vmem %s3, 3
    %v1851 = vld [vmem:[%s1850] sm:$0x7]
    %v1853 = vlaneseq
    %v1854 = vshrl.u32 %v1853, 7
    %v1855 = vsub.s32 0, %v1854
    %v1856 = vrot.slane %v1851, %v1855
    %v1857 = vlaneseq
    %v1858 = vshrl.u32 %v1857, 7
    %v1859 = vsub.s32 1, %v1858
    %v1860 = vrot.slane %v1851, %v1859
    %v1861 = vlaneseq
    %v1862 = vshrl.u32 %v1861, 7
    %v1863 = vsub.s32 2, %v1862
    %v1864 = vrot.slane %v1851, %v1863
    %1868 = vmatprep.subr.mxu0 %v1848
    %1869 = vmatpush1.msra.mxu0 %v1847
    %1870 = vmatprep.subr.mxu0 %v1845
    %1871 = vmatpush1.msra.mxu0 %v1844
    %1872 = vmatprep.subr.mxu0 %v1842
    %1873 = vmatpush1.msra.mxu0 %v1841
    %1874 = vmatprep.subr.mxu0 %v1839
    %1875 = vmatpush1.msra.mxu0 %v1838
    %1876 = vmatprep.subr.mxu0 %v1836
    %1877 = vmatpush1.msra.mxu0 %v1835
    %1878 = vmatprep.subr.mxu0 %v1833
    %1879 = vmatpush1.msra.mxu0 %v1832
    %1880 = vmatprep.subr.mxu0 %v1830
    %1881 = vmatpush1.msra.mxu0 %v1829
    %1882 = vmatprep.subr.mxu0 %v1827
    %1883 = vmatpush1.msra.mxu0 %v1826
    %1884 = vmatprep.subr.mxu0 %v1824
    %1885 = vmatpush1.msra.mxu0 %v1823
    %1886 = vmatprep.subr.mxu0 %v1821
    %1887 = vmatpush1.msra.mxu0 %v1820
    %1888 = vmatprep.subr.mxu0 %v1818
    %1889 = vmatpush1.msra.mxu0 %v1817
    %1890 = vmatprep.subr.mxu0 %v1815
    %1891 = vmatpush1.msra.mxu0 %v1814
    %1892 = vmatprep.subr.mxu0 %v1812
    %1893 = vmatpush1.msra.mxu0 %v1811
    %1894 = vmatprep.subr.mxu0 %v1809
    %1895 = vmatpush1.msra.mxu0 %v1808
    %1896 = vmatprep.subr.mxu0 %v1806
    %1897 = vmatpush1.msra.mxu0 %v1805
    %1898 = vmatprep.subr.mxu0 %v1803
    %1899 = vmatpush1.msra.mxu0 %v1802
    %1900 = vmatprep.subr.mxu0 0.0
    %1901 = vmatpush2.msra.mxu0 0.0
    %1902 = vmatprep.subr.mxu0 0.0
    %1903 = vmatpush2.msra.mxu0 0.0
    %1904 = vmatprep.subr.mxu0 0.0
    %1905 = vmatpush2.msra.mxu0 0.0
    %1906 = vmatprep.subr.mxu0 0.0
    %1907 = vmatpush2.msra.mxu0 0.0
    %1908 = vmatprep.subr.mxu0 0.0
    %1909 = vmatpush2.msra.mxu0 0.0
    %1910 = vmatprep.subr.mxu0 0.0
    %1911 = vmatpush2.msra.mxu0 0.0
    %1912 = vmatprep.subr.mxu0 0.0
    %1913 = vmatpush2.msra.mxu0 0.0
    %1914 = vmatprep.subr.mxu0 0.0
    %1915 = vmatpush2.msra.mxu0 0.0
    %1916 = vmatprep.subr.mxu0 0.0
    %1917 = vmatpush2.msra.mxu0 0.0
    %1918 = vmatprep.subr.mxu0 0.0
    %1919 = vmatpush2.msra.mxu0 0.0
    %1920 = vmatprep.subr.mxu0 0.0
    %1921 = vmatpush2.msra.mxu0 0.0
    %1922 = vmatprep.subr.mxu0 0.0
    %1923 = vmatpush2.msra.mxu0 0.0
    %1924 = vmatprep.subr.mxu0 0.0
    %1925 = vmatpush2.msra.mxu0 0.0
    %1926 = vmatprep.subr.mxu0 0.0
    %1927 = vmatpush2.msra.mxu0 0.0
    %1928 = vmatprep.subr.mxu0 0.0
    %1929 = vmatpush2.msra.mxu0 0.0
    %1930 = vmatprep.subr.mxu0 0.0
    %1931 = vmatpush2.msra.mxu0 0.0
    %1932 = vmatprep.mubr.f32.mxu0 0.0
    %1933 = vmatmul.mubr.f32.gmra.mxu0 %v1797
    %v1934 = vpop.f32.mrf.mxu0
    %v1935 = vadd.f32 %v1856, %v1934
    %v1936 = vpop.f32.mrf.mxu0
    %v1937 = vadd.f32 %v1860, %v1936
    %1938 = vmatprep.mubr.f32.mxu0 0.0
    %1939 = vmatmul.mubr.f32.gmra.mxu0 %v1800
    %v1940 = vpop.f32.mrf.mxu0
    %v1941 = vadd.f32 %v1856, %v1940
    %v1942 = vpop.f32.mrf.mxu0
    %v1943 = vadd.f32 %v1860, %v1942
    %1944 = vdwg.mxu0
    %1945 = vmatprep.subr.mxu0 0.0
    %1946 = vmatpush1.msra.mxu0 %v1849
    %1947 = vmatprep.subr.mxu0 0.0
    %1948 = vmatpush1.msra.mxu0 %v1846
    %1949 = vmatprep.subr.mxu0 0.0
    %1950 = vmatpush1.msra.mxu0 %v1843
    %1951 = vmatprep.subr.mxu0 0.0
    %1952 = vmatpush1.msra.mxu0 %v1840
    %1953 = vmatprep.subr.mxu0 0.0
    %1954 = vmatpush1.msra.mxu0 %v1837
    %1955 = vmatprep.subr.mxu0 0.0
    %1956 = vmatpush1.msra.mxu0 %v1834
    %1957 = vmatprep.subr.mxu0 0.0
    %1958 = vmatpush1.msra.mxu0 %v1831
    %1959 = vmatprep.subr.mxu0 0.0
    %1960 = vmatpush1.msra.mxu0 %v1828
    %1961 = vmatprep.subr.mxu0 0.0
    %1962 = vmatpush1.msra.mxu0 %v1825
    %1963 = vmatprep.subr.mxu0 0.0
    %1964 = vmatpush1.msra.mxu0 %v1822
    %1965 = vmatprep.subr.mxu0 0.0
    %1966 = vmatpush1.msra.mxu0 %v1819
    %1967 = vmatprep.subr.mxu0 0.0
    %1968 = vmatpush1.msra.mxu0 %v1816
    %1969 = vmatprep.subr.mxu0 0.0
    %1970 = vmatpush1.msra.mxu0 %v1813
    %1971 = vmatprep.subr.mxu0 0.0
    %1972 = vmatpush1.msra.mxu0 %v1810
    %1973 = vmatprep.subr.mxu0 0.0
    %1974 = vmatpush1.msra.mxu0 %v1807
    %1975 = vmatprep.subr.mxu0 0.0
    %1976 = vmatpush1.msra.mxu0 %v1804
    %1977 = vmatprep.subr.mxu0 0.0
    %1978 = vmatpush2.msra.mxu0 0.0
    %1979 = vmatprep.subr.mxu0 0.0
    %1980 = vmatpush2.msra.mxu0 0.0
    %1981 = vmatprep.subr.mxu0 0.0
    %1982 = vmatpush2.msra.mxu0 0.0
    %1983 = vmatprep.subr.mxu0 0.0
    %1984 = vmatpush2.msra.mxu0 0.0
    %1985 = vmatprep.subr.mxu0 0.0
    %1986 = vmatpush2.msra.mxu0 0.0
    %1987 = vmatprep.subr.mxu0 0.0
    %1988 = vmatpush2.msra.mxu0 0.0
    %1989 = vmatprep.subr.mxu0 0.0
    %1990 = vmatpush2.msra.mxu0 0.0
    %1991 = vmatprep.subr.mxu0 0.0
    %1992 = vmatpush2.msra.mxu0 0.0
    %1993 = vmatprep.subr.mxu0 0.0
    %1994 = vmatpush2.msra.mxu0 0.0
    %1995 = vmatprep.subr.mxu0 0.0
    %1996 = vmatpush2.msra.mxu0 0.0
    %1997 = vmatprep.subr.mxu0 0.0
    %1998 = vmatpush2.msra.mxu0 0.0
    %1999 = vmatprep.subr.mxu0 0.0
    %2000 = vmatpush2.msra.mxu0 0.0
    %2001 = vmatprep.subr.mxu0 0.0
    %2002 = vmatpush2.msra.mxu0 0.0
    %2003 = vmatprep.subr.mxu0 0.0
    %2004 = vmatpush2.msra.mxu0 0.0
    %2005 = vmatprep.subr.mxu0 0.0
    %2006 = vmatpush2.msra.mxu0 0.0
    %2007 = vmatprep.subr.mxu0 0.0
    %2008 = vmatpush2.msra.mxu0 0.0
    %2009 = vmatprep.mubr.f32.mxu0 0.0
    %2010 = vmatmul.mubr.f32.gmra.mxu0 %v1797
    %v2011 = vpop.f32.mrf.mxu0
    %v2012 = vadd.f32 %v1864, %v2011
    %v2013 = vpop.f32.mrf.mxu0
    %2014 = vmatprep.mubr.f32.mxu0 0.0
    %2015 = vmatmul.mubr.f32.gmra.mxu0 %v1800
    %v2016 = vpop.f32.mrf.mxu0
    %v2017 = vadd.f32 %v1864, %v2016
    %v2018 = vpop.f32.mrf.mxu0
    %2019 = vdwg.mxu0
    %s2020 = scalar_lea.vmem [#allocation4], 384
    %v2021 = vld [vmem:[%s2020] sm:$0xff]
    %v2022 = vld [vmem:[%s2020 + $0x8] sm:$0xff]
    %v2023 = vld [vmem:[%s2020 + $0x10] sm:$0xff]
    %v2024 = vld [vmem:[%s2020 + $0x18] sm:$0xff]
    %v2025 = vld [vmem:[%s2020 + $0x20] sm:$0xff]
    %v2026 = vld [vmem:[%s2020 + $0x28] sm:$0xff]
    %v2027 = vld [vmem:[%s2020 + $0x30] sm:$0xff]
    %v2028 = vld [vmem:[%s2020 + $0x38] sm:$0xff]
    %v2029 = vld [vmem:[%s2020 + $0x40] sm:$0xff]
    %v2030 = vld [vmem:[%s2020 + $0x48] sm:$0xff]
    %v2031 = vld [vmem:[%s2020 + $0x50] sm:$0xff]
    %v2032 = vld [vmem:[%s2020 + $0x58] sm:$0xff]
    %v2033 = vld [vmem:[%s2020 + $0x60] sm:$0xff]
    %v2034 = vld [vmem:[%s2020 + $0x68] sm:$0xff]
    %v2035 = vld [vmem:[%s2020 + $0x70] sm:$0xff]
    %v2036 = vld [vmem:[%s2020 + $0x78] sm:$0xff]
    %v2037 = vld [vmem:[%s2020 + $0x80] sm:$0xff]
    %v2038 = vld [vmem:[%s2020 + $0x88] sm:$0xff]
    %v2039 = vld [vmem:[%s2020 + $0x90] sm:$0xff]
    %v2040 = vld [vmem:[%s2020 + $0x98] sm:$0xff]
    %v2041 = vld [vmem:[%s2020 + $0xa0] sm:$0xff]
    %v2042 = vld [vmem:[%s2020 + $0xa8] sm:$0xff]
    %v2043 = vld [vmem:[%s2020 + $0xb0] sm:$0xff]
    %v2044 = vld [vmem:[%s2020 + $0xb8] sm:$0xff]
    %v2045 = vld [vmem:[%s2020 + $0xc0] sm:$0xff]
    %v2046 = vld [vmem:[%s2020 + $0xc8] sm:$0xff]
    %v2047 = vld [vmem:[%s2020 + $0xd0] sm:$0xff]
    %v2048 = vld [vmem:[%s2020 + $0xd8] sm:$0xff]
    %v2049 = vld [vmem:[%s2020 + $0xe0] sm:$0xff]
    %v2050 = vld [vmem:[%s2020 + $0xe8] sm:$0xff]
    %v2051 = vld [vmem:[%s2020 + $0xf0] sm:$0xff]
    %v2052 = vld [vmem:[%s2020 + $0xf8] sm:$0xff]
    %v2053 = vld [vmem:[%s2020 + $0x100] sm:$0xff]
    %v2054 = vld [vmem:[%s2020 + $0x108] sm:$0xff]
    %v2055 = vld [vmem:[%s2020 + $0x110] sm:$0xff]
    %v2056 = vld [vmem:[%s2020 + $0x118] sm:$0xff]
    %v2057 = vld [vmem:[%s2020 + $0x120] sm:$0xff]
    %v2058 = vld [vmem:[%s2020 + $0x128] sm:$0xff]
    %v2059 = vld [vmem:[%s2020 + $0x130] sm:$0xff]
    %v2060 = vld [vmem:[%s2020 + $0x138] sm:$0xff]
    %v2061 = vld [vmem:[%s2020 + $0x140] sm:$0xff]
    %v2062 = vld [vmem:[%s2020 + $0x148] sm:$0xff]
    %v2063 = vld [vmem:[%s2020 + $0x150] sm:$0xff]
    %v2064 = vld [vmem:[%s2020 + $0x158] sm:$0xff]
    %v2065 = vld [vmem:[%s2020 + $0x160] sm:$0xff]
    %v2066 = vld [vmem:[%s2020 + $0x168] sm:$0xff]
    %v2067 = vld [vmem:[%s2020 + $0x170] sm:$0xff]
    %v2068 = vld [vmem:[%s2020 + $0x178] sm:$0xff]
    %s2069 = scalar_lea.vmem %s4, 1
    %v2070 = vld [vmem:[%s2069] sm:$0x1]
    %2071 = vmatprep.subr.mxu0 %v2067
    %2072 = vmatpush1.msra.mxu0 %v2066
    %2073 = vmatprep.subr.mxu0 %v2064
    %2074 = vmatpush1.msra.mxu0 %v2063
    %2075 = vmatprep.subr.mxu0 %v2061
    %2076 = vmatpush1.msra.mxu0 %v2060
    %2077 = vmatprep.subr.mxu0 %v2058
    %2078 = vmatpush1.msra.mxu0 %v2057
    %2079 = vmatprep.subr.mxu0 %v2055
    %2080 = vmatpush1.msra.mxu0 %v2054
    %2081 = vmatprep.subr.mxu0 %v2052
    %2082 = vmatpush1.msra.mxu0 %v2051
    %2083 = vmatprep.subr.mxu0 %v2049
    %2084 = vmatpush1.msra.mxu0 %v2048
    %2085 = vmatprep.subr.mxu0 %v2046
    %2086 = vmatpush1.msra.mxu0 %v2045
    %2087 = vmatprep.subr.mxu0 %v2043
    %2088 = vmatpush1.msra.mxu0 %v2042
    %2089 = vmatprep.subr.mxu0 %v2040
    %2090 = vmatpush1.msra.mxu0 %v2039
    %2091 = vmatprep.subr.mxu0 %v2037
    %2092 = vmatpush1.msra.mxu0 %v2036
    %2093 = vmatprep.subr.mxu0 %v2034
    %2094 = vmatpush1.msra.mxu0 %v2033
    %2095 = vmatprep.subr.mxu0 %v2031
    %2096 = vmatpush1.msra.mxu0 %v2030
    %2097 = vmatprep.subr.mxu0 %v2028
    %2098 = vmatpush1.msra.mxu0 %v2027
    %2099 = vmatprep.subr.mxu0 %v2025
    %2100 = vmatpush1.msra.mxu0 %v2024
    %2101 = vmatprep.subr.mxu0 %v2022
    %2102 = vmatpush1.msra.mxu0 %v2021
    %2103 = vmatprep.subr.mxu0 0.0
    %2104 = vmatpush2.msra.mxu0 0.0
    %2105 = vmatprep.subr.mxu0 0.0
    %2106 = vmatpush2.msra.mxu0 0.0
    %2107 = vmatprep.subr.mxu0 0.0
    %2108 = vmatpush2.msra.mxu0 0.0
    %2109 = vmatprep.subr.mxu0 0.0
    %2110 = vmatpush2.msra.mxu0 0.0
    %2111 = vmatprep.subr.mxu0 0.0
    %2112 = vmatpush2.msra.mxu0 0.0
    %2113 = vmatprep.subr.mxu0 0.0
    %2114 = vmatpush2.msra.mxu0 0.0
    %2115 = vmatprep.subr.mxu0 0.0
    %2116 = vmatpush2.msra.mxu0 0.0
    %2117 = vmatprep.subr.mxu0 0.0
    %2118 = vmatpush2.msra.mxu0 0.0
    %2119 = vmatprep.subr.mxu0 0.0
    %2120 = vmatpush2.msra.mxu0 0.0
    %2121 = vmatprep.subr.mxu0 0.0
    %2122 = vmatpush2.msra.mxu0 0.0
    %2123 = vmatprep.subr.mxu0 0.0
    %2124 = vmatpush2.msra.mxu0 0.0
    %2125 = vmatprep.subr.mxu0 0.0
    %2126 = vmatpush2.msra.mxu0 0.0
    %2127 = vmatprep.subr.mxu0 0.0
    %2128 = vmatpush2.msra.mxu0 0.0
    %2129 = vmatprep.subr.mxu0 0.0
    %2130 = vmatpush2.msra.mxu0 0.0
    %2131 = vmatprep.subr.mxu0 0.0
    %2132 = vmatpush2.msra.mxu0 0.0
    %2133 = vmatprep.subr.mxu0 0.0
    %2134 = vmatpush2.msra.mxu0 0.0
    %2135 = vmatprep.mubr.f32.mxu0 0.0
    %2136 = vmatmul.mubr.f32.gmra.mxu0 0.0
    %v2137 = vpop.f32.mrf.mxu0
    %v2138 = vadd.f32 0.0, %v2137
    %v2139 = vpop.f32.mrf.mxu0
    %v2140 = vadd.f32 0.0, %v2139
    %2141 = vdwg.mxu0
    %2142 = vmatprep.subr.mxu0 0.0
    %2143 = vmatpush1.msra.mxu0 %v2068
    %2144 = vmatprep.subr.mxu0 0.0
    %2145 = vmatpush1.msra.mxu0 %v2065
    %2146 = vmatprep.subr.mxu0 0.0
    %2147 = vmatpush1.msra.mxu0 %v2062
    %2148 = vmatprep.subr.mxu0 0.0
    %2149 = vmatpush1.msra.mxu0 %v2059
    %2150 = vmatprep.subr.mxu0 0.0
    %2151 = vmatpush1.msra.mxu0 %v2056
    %2152 = vmatprep.subr.mxu0 0.0
    %2153 = vmatpush1.msra.mxu0 %v2053
    %2154 = vmatprep.subr.mxu0 0.0
    %2155 = vmatpush1.msra.mxu0 %v2050
    %2156 = vmatprep.subr.mxu0 0.0
    %2157 = vmatpush1.msra.mxu0 %v2047
    %2158 = vmatprep.subr.mxu0 0.0
    %2159 = vmatpush1.msra.mxu0 %v2044
    %2160 = vmatprep.subr.mxu0 0.0
    %2161 = vmatpush1.msra.mxu0 %v2041
    %2162 = vmatprep.subr.mxu0 0.0
    %2163 = vmatpush1.msra.mxu0 %v2038
    %2164 = vmatprep.subr.mxu0 0.0
    %2165 = vmatpush1.msra.mxu0 %v2035
    %2166 = vmatprep.subr.mxu0 0.0
    %2167 = vmatpush1.msra.mxu0 %v2032
    %2168 = vmatprep.subr.mxu0 0.0
    %2169 = vmatpush1.msra.mxu0 %v2029
    %2170 = vmatprep.subr.mxu0 0.0
    %2171 = vmatpush1.msra.mxu0 %v2026
    %2172 = vmatprep.subr.mxu0 0.0
    %2173 = vmatpush1.msra.mxu0 %v2023
    %2174 = vmatprep.subr.mxu0 0.0
    %2175 = vmatpush2.msra.mxu0 0.0
    %2176 = vmatprep.subr.mxu0 0.0
    %2177 = vmatpush2.msra.mxu0 0.0
    %2178 = vmatprep.subr.mxu0 0.0
    %2179 = vmatpush2.msra.mxu0 0.0
    %2180 = vmatprep.subr.mxu0 0.0
    %2181 = vmatpush2.msra.mxu0 0.0
    %2182 = vmatprep.subr.mxu0 0.0
    %2183 = vmatpush2.msra.mxu0 0.0
    %2184 = vmatprep.subr.mxu0 0.0
    %2185 = vmatpush2.msra.mxu0 0.0
    %2186 = vmatprep.subr.mxu0 0.0
    %2187 = vmatpush2.msra.mxu0 0.0
    %2188 = vmatprep.subr.mxu0 0.0
    %2189 = vmatpush2.msra.mxu0 0.0
    %2190 = vmatprep.subr.mxu0 0.0
    %2191 = vmatpush2.msra.mxu0 0.0
    %2192 = vmatprep.subr.mxu0 0.0
    %2193 = vmatpush2.msra.mxu0 0.0
    %2194 = vmatprep.subr.mxu0 0.0
    %2195 = vmatpush2.msra.mxu0 0.0
    %2196 = vmatprep.subr.mxu0 0.0
    %2197 = vmatpush2.msra.mxu0 0.0
    %2198 = vmatprep.subr.mxu0 0.0
    %2199 = vmatpush2.msra.mxu0 0.0
    %2200 = vmatprep.subr.mxu0 0.0
    %2201 = vmatpush2.msra.mxu0 0.0
    %2202 = vmatprep.subr.mxu0 0.0
    %2203 = vmatpush2.msra.mxu0 0.0
    %2204 = vmatprep.subr.mxu0 0.0
    %2205 = vmatpush2.msra.mxu0 0.0
    %2206 = vmatprep.mubr.f32.mxu0 0.0
    %2207 = vmatmul.mubr.f32.gmra.mxu0 0.0
    %v2208 = vpop.f32.mrf.mxu0
    %v2209 = vadd.f32 0.0, %v2208
    %v2210 = vpop.f32.mrf.mxu0
    %2211 = vdwg.mxu0
    %v2212 = vadd.f32 %v1935, %v2138
    %v2213 = vxor.u32 %v2212, 2147483648
    %v2214 = vmul.f32 %v2213, 1.442695
    %v2215 = vpow.pop %v2214
    %v2216 = vadd.f32 %v2215, 1.0
    %v2217 = vrcp.pop %v2216
    %v2218 = vmul.f32 1.0, %v2217
    %v2219 = vadd.f32 %v1937, %v2140
    %v2220 = vxor.u32 %v2219, 2147483648
    %v2221 = vmul.f32 %v2220, 1.442695
    %v2222 = vpow.pop %v2221
    %v2223 = vadd.f32 %v2222, 1.0
    %v2224 = vrcp.pop %v2223
    %v2225 = vmul.f32 1.0, %v2224
    %v2227 = vlaneseq
    %v2228 = vshrl.u32 %v2227, 7
    %v2229 = vsub.s32 0, %v2228
    %v2230 = vrot.slane %v2070, %v2229
    %v2232 = vadd.f32 %v2209, %v2230
    %v2233 = vmul.f32 %v2218, %v2232
    %v2234 = vadd.f32 %v2012, %v2233
    %v2235 = vtanh.pop %v2234
    %v2236 = vsub.f32 1.0, %v2225
    %v2237 = vmul.f32 %v2236, %v2235
    %v2238 = vmul.f32 %v2225, 0.0
    %v2239 = vadd.f32 %v2237, %v2238
    %2240 = vmatprep.subr.mxu0 %v2067
    %2241 = vmatpush1.msra.mxu0 %v2066
    %2242 = vmatprep.subr.mxu0 %v2064
    %2243 = vmatpush1.msra.mxu0 %v2063
    %2244 = vmatprep.subr.mxu0 %v2061
    %2245 = vmatpush1.msra.mxu0 %v2060
    %2246 = vmatprep.subr.mxu0 %v2058
    %2247 = vmatpush1.msra.mxu0 %v2057
    %2248 = vmatprep.subr.mxu0 %v2055
    %2249 = vmatpush1.msra.mxu0 %v2054
    %2250 = vmatprep.subr.mxu0 %v2052
    %2251 = vmatpush1.msra.mxu0 %v2051
    %2252 = vmatprep.subr.mxu0 %v2049
    %2253 = vmatpush1.msra.mxu0 %v2048
    %2254 = vmatprep.subr.mxu0 %v2046
    %2255 = vmatpush1.msra.mxu0 %v2045
    %2256 = vmatprep.subr.mxu0 %v2043
    %2257 = vmatpush1.msra.mxu0 %v2042
    %2258 = vmatprep.subr.mxu0 %v2040
    %2259 = vmatpush1.msra.mxu0 %v2039
    %2260 = vmatprep.subr.mxu0 %v2037
    %2261 = vmatpush1.msra.mxu0 %v2036
    %2262 = vmatprep.subr.mxu0 %v2034
    %2263 = vmatpush1.msra.mxu0 %v2033
    %2264 = vmatprep.subr.mxu0 %v2031
    %2265 = vmatpush1.msra.mxu0 %v2030
    %2266 = vmatprep.subr.mxu0 %v2028
    %2267 = vmatpush1.msra.mxu0 %v2027
    %2268 = vmatprep.subr.mxu0 %v2025
    %2269 = vmatpush1.msra.mxu0 %v2024
    %2270 = vmatprep.subr.mxu0 %v2022
    %2271 = vmatpush1.msra.mxu0 %v2021
    %2272 = vmatprep.subr.mxu0 0.0
    %2273 = vmatpush2.msra.mxu0 0.0
    %2274 = vmatprep.subr.mxu0 0.0
    %2275 = vmatpush2.msra.mxu0 0.0
    %2276 = vmatprep.subr.mxu0 0.0
    %2277 = vmatpush2.msra.mxu0 0.0
    %2278 = vmatprep.subr.mxu0 0.0
    %2279 = vmatpush2.msra.mxu0 0.0
    %2280 = vmatprep.subr.mxu0 0.0
    %2281 = vmatpush2.msra.mxu0 0.0
    %2282 = vmatprep.subr.mxu0 0.0
    %2283 = vmatpush2.msra.mxu0 0.0
    %2284 = vmatprep.subr.mxu0 0.0
    %2285 = vmatpush2.msra.mxu0 0.0
    %2286 = vmatprep.subr.mxu0 0.0
    %2287 = vmatpush2.msra.mxu0 0.0
    %2288 = vmatprep.subr.mxu0 0.0
    %2289 = vmatpush2.msra.mxu0 0.0
    %2290 = vmatprep.subr.mxu0 0.0
    %2291 = vmatpush2.msra.mxu0 0.0
    %2292 = vmatprep.subr.mxu0 0.0
    %2293 = vmatpush2.msra.mxu0 0.0
    %2294 = vmatprep.subr.mxu0 0.0
    %2295 = vmatpush2.msra.mxu0 0.0
    %2296 = vmatprep.subr.mxu0 0.0
    %2297 = vmatpush2.msra.mxu0 0.0
    %2298 = vmatprep.subr.mxu0 0.0
    %2299 = vmatpush2.msra.mxu0 0.0
    %2300 = vmatprep.subr.mxu0 0.0
    %2301 = vmatpush2.msra.mxu0 0.0
    %2302 = vmatprep.subr.mxu0 0.0
    %2303 = vmatpush2.msra.mxu0 0.0
    %2304 = vmatprep.mubr.f32.mxu0 0.0
    %2305 = vmatmul.mubr.f32.gmra.mxu0 %v2239
    %v2306 = vpop.f32.mrf.mxu0
    %v2307 = vadd.f32 0.0, %v2306
    %v2308 = vpop.f32.mrf.mxu0
    %v2309 = vadd.f32 0.0, %v2308
    %2310 = vdwg.mxu0
    %2311 = vmatprep.subr.mxu0 0.0
    %2312 = vmatpush1.msra.mxu0 %v2068
    %2313 = vmatprep.subr.mxu0 0.0
    %2314 = vmatpush1.msra.mxu0 %v2065
    %2315 = vmatprep.subr.mxu0 0.0
    %2316 = vmatpush1.msra.mxu0 %v2062
    %2317 = vmatprep.subr.mxu0 0.0
    %2318 = vmatpush1.msra.mxu0 %v2059
    %2319 = vmatprep.subr.mxu0 0.0
    %2320 = vmatpush1.msra.mxu0 %v2056
    %2321 = vmatprep.subr.mxu0 0.0
    %2322 = vmatpush1.msra.mxu0 %v2053
    %2323 = vmatprep.subr.mxu0 0.0
    %2324 = vmatpush1.msra.mxu0 %v2050
    %2325 = vmatprep.subr.mxu0 0.0
    %2326 = vmatpush1.msra.mxu0 %v2047
    %2327 = vmatprep.subr.mxu0 0.0
    %2328 = vmatpush1.msra.mxu0 %v2044
    %2329 = vmatprep.subr.mxu0 0.0
    %2330 = vmatpush1.msra.mxu0 %v2041
    %2331 = vmatprep.subr.mxu0 0.0
    %2332 = vmatpush1.msra.mxu0 %v2038
    %2333 = vmatprep.subr.mxu0 0.0
    %2334 = vmatpush1.msra.mxu0 %v2035
    %2335 = vmatprep.subr.mxu0 0.0
    %2336 = vmatpush1.msra.mxu0 %v2032
    %2337 = vmatprep.subr.mxu0 0.0
    %2338 = vmatpush1.msra.mxu0 %v2029
    %2339 = vmatprep.subr.mxu0 0.0
    %2340 = vmatpush1.msra.mxu0 %v2026
    %2341 = vmatprep.subr.mxu0 0.0
    %2342 = vmatpush1.msra.mxu0 %v2023
    %2343 = vmatprep.subr.mxu0 0.0
    %2344 = vmatpush2.msra.mxu0 0.0
    %2345 = vmatprep.subr.mxu0 0.0
    %2346 = vmatpush2.msra.mxu0 0.0
    %2347 = vmatprep.subr.mxu0 0.0
    %2348 = vmatpush2.msra.mxu0 0.0
    %2349 = vmatprep.subr.mxu0 0.0
    %2350 = vmatpush2.msra.mxu0 0.0
    %2351 = vmatprep.subr.mxu0 0.0
    %2352 = vmatpush2.msra.mxu0 0.0
    %2353 = vmatprep.subr.mxu0 0.0
    %2354 = vmatpush2.msra.mxu0 0.0
    %2355 = vmatprep.subr.mxu0 0.0
    %2356 = vmatpush2.msra.mxu0 0.0
    %2357 = vmatprep.subr.mxu0 0.0
    %2358 = vmatpush2.msra.mxu0 0.0
    %2359 = vmatprep.subr.mxu0 0.0
    %2360 = vmatpush2.msra.mxu0 0.0
    %2361 = vmatprep.subr.mxu0 0.0
    %2362 = vmatpush2.msra.mxu0 0.0
    %2363 = vmatprep.subr.mxu0 0.0
    %2364 = vmatpush2.msra.mxu0 0.0
    %2365 = vmatprep.subr.mxu0 0.0
    %2366 = vmatpush2.msra.mxu0 0.0
    %2367 = vmatprep.subr.mxu0 0.0
    %2368 = vmatpush2.msra.mxu0 0.0
    %2369 = vmatprep.subr.mxu0 0.0
    %2370 = vmatpush2.msra.mxu0 0.0
    %2371 = vmatprep.subr.mxu0 0.0
    %2372 = vmatpush2.msra.mxu0 0.0
    %2373 = vmatprep.subr.mxu0 0.0
    %2374 = vmatpush2.msra.mxu0 0.0
    %2375 = vmatprep.mubr.f32.mxu0 0.0
    %2376 = vmatmul.mubr.f32.gmra.mxu0 %v2239
    %v2377 = vpop.f32.mrf.mxu0
    %v2378 = vadd.f32 0.0, %v2377
    %v2379 = vpop.f32.mrf.mxu0
    %2380 = vdwg.mxu0
    %v2382 = vrot.slane %v2307, 6
    %v2384 = vadd.f32 %v1935, %v2382
    %v2385 = vxor.u32 %v2384, 2147483648
    %v2386 = vmul.f32 %v2385, 1.442695
    %v2387 = vpow.pop %v2386
    %v2388 = vadd.f32 %v2387, 1.0
    %v2389 = vrcp.pop %v2388
    %v2390 = vmul.f32 1.0, %v2389
    %v2392 = vrot.slane %v2309, 6
    %v2394 = vadd.f32 %v1937, %v2392
    %v2395 = vxor.u32 %v2394, 2147483648
    %v2396 = vmul.f32 %v2395, 1.442695
    %v2397 = vpow.pop %v2396
    %v2398 = vadd.f32 %v2397, 1.0
    %v2399 = vrcp.pop %v2398
    %v2400 = vmul.f32 1.0, %v2399
    %v2401 = vadd.f32 %v2378, %v2230
    %v2403 = vrot.slane %v2401, 6
    %v2405 = vmul.f32 %v2390, %v2403
    %v2406 = vadd.f32 %v2012, %v2405
    %v2407 = vtanh.pop %v2406
    %v2408 = vsub.f32 1.0, %v2400
    %v2409 = vmul.f32 %v2408, %v2407
    %v2411 = vrot.slane %v2239, 6
    %v2413 = vmul.f32 %v2400, %v2411
    %v2414 = vadd.f32 %v2409, %v2413
    %v2416 = vrot.slane %v2414, 2
    %2418 = vmatprep.subr.mxu0 %v2067
    %2419 = vmatpush1.msra.mxu0 %v2066
    %2420 = vmatprep.subr.mxu0 %v2064
    %2421 = vmatpush1.msra.mxu0 %v2063
    %2422 = vmatprep.subr.mxu0 %v2061
    %2423 = vmatpush1.msra.mxu0 %v2060
    %2424 = vmatprep.subr.mxu0 %v2058
    %2425 = vmatpush1.msra.mxu0 %v2057
    %2426 = vmatprep.subr.mxu0 %v2055
    %2427 = vmatpush1.msra.mxu0 %v2054
    %2428 = vmatprep.subr.mxu0 %v2052
    %2429 = vmatpush1.msra.mxu0 %v2051
    %2430 = vmatprep.subr.mxu0 %v2049
    %2431 = vmatpush1.msra.mxu0 %v2048
    %2432 = vmatprep.subr.mxu0 %v2046
    %2433 = vmatpush1.msra.mxu0 %v2045
    %2434 = vmatprep.subr.mxu0 %v2043
    %2435 = vmatpush1.msra.mxu0 %v2042
    %2436 = vmatprep.subr.mxu0 %v2040
    %2437 = vmatpush1.msra.mxu0 %v2039
    %2438 = vmatprep.subr.mxu0 %v2037
    %2439 = vmatpush1.msra.mxu0 %v2036
    %2440 = vmatprep.subr.mxu0 %v2034
    %2441 = vmatpush1.msra.mxu0 %v2033
    %2442 = vmatprep.subr.mxu0 %v2031
    %2443 = vmatpush1.msra.mxu0 %v2030
    %2444 = vmatprep.subr.mxu0 %v2028
    %2445 = vmatpush1.msra.mxu0 %v2027
    %2446 = vmatprep.subr.mxu0 %v2025
    %2447 = vmatpush1.msra.mxu0 %v2024
    %2448 = vmatprep.subr.mxu0 %v2022
    %2449 = vmatpush1.msra.mxu0 %v2021
    %2450 = vmatprep.subr.mxu0 0.0
    %2451 = vmatpush2.msra.mxu0 0.0
    %2452 = vmatprep.subr.mxu0 0.0
    %2453 = vmatpush2.msra.mxu0 0.0
    %2454 = vmatprep.subr.mxu0 0.0
    %2455 = vmatpush2.msra.mxu0 0.0
    %2456 = vmatprep.subr.mxu0 0.0
    %2457 = vmatpush2.msra.mxu0 0.0
    %2458 = vmatprep.subr.mxu0 0.0
    %2459 = vmatpush2.msra.mxu0 0.0
    %2460 = vmatprep.subr.mxu0 0.0
    %2461 = vmatpush2.msra.mxu0 0.0
    %2462 = vmatprep.subr.mxu0 0.0
    %2463 = vmatpush2.msra.mxu0 0.0
    %2464 = vmatprep.subr.mxu0 0.0
    %2465 = vmatpush2.msra.mxu0 0.0
    %2466 = vmatprep.subr.mxu0 0.0
    %2467 = vmatpush2.msra.mxu0 0.0
    %2468 = vmatprep.subr.mxu0 0.0
    %2469 = vmatpush2.msra.mxu0 0.0
    %2470 = vmatprep.subr.mxu0 0.0
    %2471 = vmatpush2.msra.mxu0 0.0
    %2472 = vmatprep.subr.mxu0 0.0
    %2473 = vmatpush2.msra.mxu0 0.0
    %2474 = vmatprep.subr.mxu0 0.0
    %2475 = vmatpush2.msra.mxu0 0.0
    %2476 = vmatprep.subr.mxu0 0.0
    %2477 = vmatpush2.msra.mxu0 0.0
    %2478 = vmatprep.subr.mxu0 0.0
    %2479 = vmatpush2.msra.mxu0 0.0
    %2480 = vmatprep.subr.mxu0 0.0
    %2481 = vmatpush2.msra.mxu0 0.0
    %2482 = vmatprep.mubr.f32.mxu0 0.0
    %2483 = vmatmul.mubr.f32.gmra.mxu0 %v2416
    %v2484 = vpop.f32.mrf.mxu0
    %v2485 = vadd.f32 0.0, %v2484
    %v2486 = vpop.f32.mrf.mxu0
    %v2487 = vadd.f32 0.0, %v2486
    %2488 = vdwg.mxu0
    %2489 = vmatprep.subr.mxu0 0.0
    %2490 = vmatpush1.msra.mxu0 %v2068
    %2491 = vmatprep.subr.mxu0 0.0
    %2492 = vmatpush1.msra.mxu0 %v2065
    %2493 = vmatprep.subr.mxu0 0.0
    %2494 = vmatpush1.msra.mxu0 %v2062
    %2495 = vmatprep.subr.mxu0 0.0
    %2496 = vmatpush1.msra.mxu0 %v2059
    %2497 = vmatprep.subr.mxu0 0.0
    %2498 = vmatpush1.msra.mxu0 %v2056
    %2499 = vmatprep.subr.mxu0 0.0
    %2500 = vmatpush1.msra.mxu0 %v2053
    %2501 = vmatprep.subr.mxu0 0.0
    %2502 = vmatpush1.msra.mxu0 %v2050
    %2503 = vmatprep.subr.mxu0 0.0
    %2504 = vmatpush1.msra.mxu0 %v2047
    %2505 = vmatprep.subr.mxu0 0.0
    %2506 = vmatpush1.msra.mxu0 %v2044
    %2507 = vmatprep.subr.mxu0 0.0
    %2508 = vmatpush1.msra.mxu0 %v2041
    %2509 = vmatprep.subr.mxu0 0.0
    %2510 = vmatpush1.msra.mxu0 %v2038
    %2511 = vmatprep.subr.mxu0 0.0
    %2512 = vmatpush1.msra.mxu0 %v2035
    %2513 = vmatprep.subr.mxu0 0.0
    %2514 = vmatpush1.msra.mxu0 %v2032
    %2515 = vmatprep.subr.mxu0 0.0
    %2516 = vmatpush1.msra.mxu0 %v2029
    %2517 = vmatprep.subr.mxu0 0.0
    %2518 = vmatpush1.msra.mxu0 %v2026
    %2519 = vmatprep.subr.mxu0 0.0
    %2520 = vmatpush1.msra.mxu0 %v2023
    %2521 = vmatprep.subr.mxu0 0.0
    %2522 = vmatpush2.msra.mxu0 0.0
    %2523 = vmatprep.subr.mxu0 0.0
    %2524 = vmatpush2.msra.mxu0 0.0
    %2525 = vmatprep.subr.mxu0 0.0
    %2526 = vmatpush2.msra.mxu0 0.0
    %2527 = vmatprep.subr.mxu0 0.0
    %2528 = vmatpush2.msra.mxu0 0.0
    %2529 = vmatprep.subr.mxu0 0.0
    %2530 = vmatpush2.msra.mxu0 0.0
    %2531 = vmatprep.subr.mxu0 0.0
    %2532 = vmatpush2.msra.mxu0 0.0
    %2533 = vmatprep.subr.mxu0 0.0
    %2534 = vmatpush2.msra.mxu0 0.0
    %2535 = vmatprep.subr.mxu0 0.0
    %2536 = vmatpush2.msra.mxu0 0.0
    %2537 = vmatprep.subr.mxu0 0.0
    %2538 = vmatpush2.msra.mxu0 0.0
    %2539 = vmatprep.subr.mxu0 0.0
    %2540 = vmatpush2.msra.mxu0 0.0
    %2541 = vmatprep.subr.mxu0 0.0
    %2542 = vmatpush2.msra.mxu0 0.0
    %2543 = vmatprep.subr.mxu0 0.0
    %2544 = vmatpush2.msra.mxu0 0.0
    %2545 = vmatprep.subr.mxu0 0.0
    %2546 = vmatpush2.msra.mxu0 0.0
    %2547 = vmatprep.subr.mxu0 0.0
    %2548 = vmatpush2.msra.mxu0 0.0
    %2549 = vmatprep.subr.mxu0 0.0
    %2550 = vmatpush2.msra.mxu0 0.0
    %2551 = vmatprep.subr.mxu0 0.0
    %2552 = vmatpush2.msra.mxu0 0.0
    %2553 = vmatprep.mubr.f32.mxu0 0.0
    %2554 = vmatmul.mubr.f32.gmra.mxu0 %v2416
    %v2555 = vpop.f32.mrf.mxu0
    %v2556 = vadd.f32 0.0, %v2555
    %v2557 = vpop.f32.mrf.mxu0
    %2558 = vdwg.mxu0
    %v2560 = vrot.slane %v2485, 4
    %v2562 = vadd.f32 %v1935, %v2560
    %v2563 = vxor.u32 %v2562, 2147483648
    %v2564 = vmul.f32 %v2563, 1.442695
    %v2565 = vpow.pop %v2564
    %v2566 = vadd.f32 %v2565, 1.0
    %v2567 = vrcp.pop %v2566
    %v2568 = vmul.f32 1.0, %v2567
    %v2570 = vrot.slane %v2487, 4
    %v2572 = vadd.f32 %v1937, %v2570
    %v2573 = vxor.u32 %v2572, 2147483648
    %v2574 = vmul.f32 %v2573, 1.442695
    %v2575 = vpow.pop %v2574
    %v2576 = vadd.f32 %v2575, 1.0
    %v2577 = vrcp.pop %v2576
    %v2578 = vmul.f32 1.0, %v2577
    %v2579 = vadd.f32 %v2556, %v2230
    %v2581 = vrot.slane %v2579, 4
    %v2583 = vmul.f32 %v2568, %v2581
    %v2584 = vadd.f32 %v2012, %v2583
    %v2585 = vtanh.pop %v2584
    %v2586 = vsub.f32 1.0, %v2578
    %v2587 = vmul.f32 %v2586, %v2585
    %v2588 = vrot.slane %v2414, 6
    %v2590 = vmul.f32 %v2578, %v2588
    %v2591 = vadd.f32 %v2587, %v2590
    %v2593 = vrot.slane %v2591, 4
    %2595 = vmatprep.subr.mxu0 %v2067
    %2596 = vmatpush1.msra.mxu0 %v2066
    %2597 = vmatprep.subr.mxu0 %v2064
    %2598 = vmatpush1.msra.mxu0 %v2063
    %2599 = vmatprep.subr.mxu0 %v2061
    %2600 = vmatpush1.msra.mxu0 %v2060
    %2601 = vmatprep.subr.mxu0 %v2058
    %2602 = vmatpush1.msra.mxu0 %v2057
    %2603 = vmatprep.subr.mxu0 %v2055
    %2604 = vmatpush1.msra.mxu0 %v2054
    %2605 = vmatprep.subr.mxu0 %v2052
    %2606 = vmatpush1.msra.mxu0 %v2051
    %2607 = vmatprep.subr.mxu0 %v2049
    %2608 = vmatpush1.msra.mxu0 %v2048
    %2609 = vmatprep.subr.mxu0 %v2046
    %2610 = vmatpush1.msra.mxu0 %v2045
    %2611 = vmatprep.subr.mxu0 %v2043
    %2612 = vmatpush1.msra.mxu0 %v2042
    %2613 = vmatprep.subr.mxu0 %v2040
    %2614 = vmatpush1.msra.mxu0 %v2039
    %2615 = vmatprep.subr.mxu0 %v2037
    %2616 = vmatpush1.msra.mxu0 %v2036
    %2617 = vmatprep.subr.mxu0 %v2034
    %2618 = vmatpush1.msra.mxu0 %v2033
    %2619 = vmatprep.subr.mxu0 %v2031
    %2620 = vmatpush1.msra.mxu0 %v2030
    %2621 = vmatprep.subr.mxu0 %v2028
    %2622 = vmatpush1.msra.mxu0 %v2027
    %2623 = vmatprep.subr.mxu0 %v2025
    %2624 = vmatpush1.msra.mxu0 %v2024
    %2625 = vmatprep.subr.mxu0 %v2022
    %2626 = vmatpush1.msra.mxu0 %v2021
    %2627 = vmatprep.subr.mxu0 0.0
    %2628 = vmatpush2.msra.mxu0 0.0
    %2629 = vmatprep.subr.mxu0 0.0
    %2630 = vmatpush2.msra.mxu0 0.0
    %2631 = vmatprep.subr.mxu0 0.0
    %2632 = vmatpush2.msra.mxu0 0.0
    %2633 = vmatprep.subr.mxu0 0.0
    %2634 = vmatpush2.msra.mxu0 0.0
    %2635 = vmatprep.subr.mxu0 0.0
    %2636 = vmatpush2.msra.mxu0 0.0
    %2637 = vmatprep.subr.mxu0 0.0
    %2638 = vmatpush2.msra.mxu0 0.0
    %2639 = vmatprep.subr.mxu0 0.0
    %2640 = vmatpush2.msra.mxu0 0.0
    %2641 = vmatprep.subr.mxu0 0.0
    %2642 = vmatpush2.msra.mxu0 0.0
    %2643 = vmatprep.subr.mxu0 0.0
    %2644 = vmatpush2.msra.mxu0 0.0
    %2645 = vmatprep.subr.mxu0 0.0
    %2646 = vmatpush2.msra.mxu0 0.0
    %2647 = vmatprep.subr.mxu0 0.0
    %2648 = vmatpush2.msra.mxu0 0.0
    %2649 = vmatprep.subr.mxu0 0.0
    %2650 = vmatpush2.msra.mxu0 0.0
    %2651 = vmatprep.subr.mxu0 0.0
    %2652 = vmatpush2.msra.mxu0 0.0
    %2653 = vmatprep.subr.mxu0 0.0
    %2654 = vmatpush2.msra.mxu0 0.0
    %2655 = vmatprep.subr.mxu0 0.0
    %2656 = vmatpush2.msra.mxu0 0.0
    %2657 = vmatprep.subr.mxu0 0.0
    %2658 = vmatpush2.msra.mxu0 0.0
    %2659 = vmatprep.mubr.f32.mxu0 0.0
    %2660 = vmatmul.mubr.f32.gmra.mxu0 %v2593
    %v2661 = vpop.f32.mrf.mxu0
    %v2662 = vadd.f32 0.0, %v2661
    %v2663 = vpop.f32.mrf.mxu0
    %v2664 = vadd.f32 0.0, %v2663
    %2665 = vdwg.mxu0
    %2666 = vmatprep.subr.mxu0 0.0
    %2667 = vmatpush1.msra.mxu0 %v2068
    %2668 = vmatprep.subr.mxu0 0.0
    %2669 = vmatpush1.msra.mxu0 %v2065
    %2670 = vmatprep.subr.mxu0 0.0
    %2671 = vmatpush1.msra.mxu0 %v2062
    %2672 = vmatprep.subr.mxu0 0.0
    %2673 = vmatpush1.msra.mxu0 %v2059
    %2674 = vmatprep.subr.mxu0 0.0
    %2675 = vmatpush1.msra.mxu0 %v2056
    %2676 = vmatprep.subr.mxu0 0.0
    %2677 = vmatpush1.msra.mxu0 %v2053
    %2678 = vmatprep.subr.mxu0 0.0
    %2679 = vmatpush1.msra.mxu0 %v2050
    %2680 = vmatprep.subr.mxu0 0.0
    %2681 = vmatpush1.msra.mxu0 %v2047
    %2682 = vmatprep.subr.mxu0 0.0
    %2683 = vmatpush1.msra.mxu0 %v2044
    %2684 = vmatprep.subr.mxu0 0.0
    %2685 = vmatpush1.msra.mxu0 %v2041
    %2686 = vmatprep.subr.mxu0 0.0
    %2687 = vmatpush1.msra.mxu0 %v2038
    %2688 = vmatprep.subr.mxu0 0.0
    %2689 = vmatpush1.msra.mxu0 %v2035
    %2690 = vmatprep.subr.mxu0 0.0
    %2691 = vmatpush1.msra.mxu0 %v2032
    %2692 = vmatprep.subr.mxu0 0.0
    %2693 = vmatpush1.msra.mxu0 %v2029
    %2694 = vmatprep.subr.mxu0 0.0
    %2695 = vmatpush1.msra.mxu0 %v2026
    %2696 = vmatprep.subr.mxu0 0.0
    %2697 = vmatpush1.msra.mxu0 %v2023
    %2698 = vmatprep.subr.mxu0 0.0
    %2699 = vmatpush2.msra.mxu0 0.0
    %2700 = vmatprep.subr.mxu0 0.0
    %2701 = vmatpush2.msra.mxu0 0.0
    %2702 = vmatprep.subr.mxu0 0.0
    %2703 = vmatpush2.msra.mxu0 0.0
    %2704 = vmatprep.subr.mxu0 0.0
    %2705 = vmatpush2.msra.mxu0 0.0
    %2706 = vmatprep.subr.mxu0 0.0
    %2707 = vmatpush2.msra.mxu0 0.0
    %2708 = vmatprep.subr.mxu0 0.0
    %2709 = vmatpush2.msra.mxu0 0.0
    %2710 = vmatprep.subr.mxu0 0.0
    %2711 = vmatpush2.msra.mxu0 0.0
    %2712 = vmatprep.subr.mxu0 0.0
    %2713 = vmatpush2.msra.mxu0 0.0
    %2714 = vmatprep.subr.mxu0 0.0
    %2715 = vmatpush2.msra.mxu0 0.0
    %2716 = vmatprep.subr.mxu0 0.0
    %2717 = vmatpush2.msra.mxu0 0.0
    %2718 = vmatprep.subr.mxu0 0.0
    %2719 = vmatpush2.msra.mxu0 0.0
    %2720 = vmatprep.subr.mxu0 0.0
    %2721 = vmatpush2.msra.mxu0 0.0
    %2722 = vmatprep.subr.mxu0 0.0
    %2723 = vmatpush2.msra.mxu0 0.0
    %2724 = vmatprep.subr.mxu0 0.0
    %2725 = vmatpush2.msra.mxu0 0.0
    %2726 = vmatprep.subr.mxu0 0.0
    %2727 = vmatpush2.msra.mxu0 0.0
    %2728 = vmatprep.subr.mxu0 0.0
    %2729 = vmatpush2.msra.mxu0 0.0
    %2730 = vmatprep.mubr.f32.mxu0 0.0
    %2731 = vmatmul.mubr.f32.gmra.mxu0 %v2593
    %v2732 = vpop.f32.mrf.mxu0
    %v2733 = vadd.f32 0.0, %v2732
    %v2734 = vpop.f32.mrf.mxu0
    %2735 = vdwg.mxu0
    %v2737 = vrot.slane %v2662, 2
    %v2739 = vadd.f32 %v1935, %v2737
    %v2740 = vxor.u32 %v2739, 2147483648
    %v2741 = vmul.f32 %v2740, 1.442695
    %v2742 = vpow.pop %v2741
    %v2743 = vadd.f32 %v2742, 1.0
    %v2744 = vrcp.pop %v2743
    %v2745 = vmul.f32 1.0, %v2744
    %v2747 = vrot.slane %v2664, 2
    %v2749 = vadd.f32 %v1937, %v2747
    %v2750 = vxor.u32 %v2749, 2147483648
    %v2751 = vmul.f32 %v2750, 1.442695
    %v2752 = vpow.pop %v2751
    %v2753 = vadd.f32 %v2752, 1.0
    %v2754 = vrcp.pop %v2753
    %v2755 = vmul.f32 1.0, %v2754
    %v2756 = vadd.f32 %v2733, %v2230
    %v2758 = vrot.slane %v2756, 2
    %v2760 = vmul.f32 %v2745, %v2758
    %v2761 = vadd.f32 %v2012, %v2760
    %v2762 = vtanh.pop %v2761
    %v2763 = vsub.f32 1.0, %v2755
    %v2764 = vmul.f32 %v2763, %v2762
    %v2765 = vrot.slane %v2591, 6
    %v2767 = vmul.f32 %v2755, %v2765
    %v2768 = vadd.f32 %v2764, %v2767
    %v2770 = vrot.slane %v2768, 6
    %2772 = vmatprep.subr.mxu0 %v2067
    %2773 = vmatpush1.msra.mxu0 %v2066
    %2774 = vmatprep.subr.mxu0 %v2064
    %2775 = vmatpush1.msra.mxu0 %v2063
    %2776 = vmatprep.subr.mxu0 %v2061
    %2777 = vmatpush1.msra.mxu0 %v2060
    %2778 = vmatprep.subr.mxu0 %v2058
    %2779 = vmatpush1.msra.mxu0 %v2057
    %2780 = vmatprep.subr.mxu0 %v2055
    %2781 = vmatpush1.msra.mxu0 %v2054
    %2782 = vmatprep.subr.mxu0 %v2052
    %2783 = vmatpush1.msra.mxu0 %v2051
    %2784 = vmatprep.subr.mxu0 %v2049
    %2785 = vmatpush1.msra.mxu0 %v2048
    %2786 = vmatprep.subr.mxu0 %v2046
    %2787 = vmatpush1.msra.mxu0 %v2045
    %2788 = vmatprep.subr.mxu0 %v2043
    %2789 = vmatpush1.msra.mxu0 %v2042
    %2790 = vmatprep.subr.mxu0 %v2040
    %2791 = vmatpush1.msra.mxu0 %v2039
    %2792 = vmatprep.subr.mxu0 %v2037
    %2793 = vmatpush1.msra.mxu0 %v2036
    %2794 = vmatprep.subr.mxu0 %v2034
    %2795 = vmatpush1.msra.mxu0 %v2033
    %2796 = vmatprep.subr.mxu0 %v2031
    %2797 = vmatpush1.msra.mxu0 %v2030
    %2798 = vmatprep.subr.mxu0 %v2028
    %2799 = vmatpush1.msra.mxu0 %v2027
    %2800 = vmatprep.subr.mxu0 %v2025
    %2801 = vmatpush1.msra.mxu0 %v2024
    %2802 = vmatprep.subr.mxu0 %v2022
    %2803 = vmatpush1.msra.mxu0 %v2021
    %2804 = vmatprep.subr.mxu0 0.0
    %2805 = vmatpush2.msra.mxu0 0.0
    %2806 = vmatprep.subr.mxu0 0.0
    %2807 = vmatpush2.msra.mxu0 0.0
    %2808 = vmatprep.subr.mxu0 0.0
    %2809 = vmatpush2.msra.mxu0 0.0
    %2810 = vmatprep.subr.mxu0 0.0
    %2811 = vmatpush2.msra.mxu0 0.0
    %2812 = vmatprep.subr.mxu0 0.0
    %2813 = vmatpush2.msra.mxu0 0.0
    %2814 = vmatprep.subr.mxu0 0.0
    %2815 = vmatpush2.msra.mxu0 0.0
    %2816 = vmatprep.subr.mxu0 0.0
    %2817 = vmatpush2.msra.mxu0 0.0
    %2818 = vmatprep.subr.mxu0 0.0
    %2819 = vmatpush2.msra.mxu0 0.0
    %2820 = vmatprep.subr.mxu0 0.0
    %2821 = vmatpush2.msra.mxu0 0.0
    %2822 = vmatprep.subr.mxu0 0.0
    %2823 = vmatpush2.msra.mxu0 0.0
    %2824 = vmatprep.subr.mxu0 0.0
    %2825 = vmatpush2.msra.mxu0 0.0
    %2826 = vmatprep.subr.mxu0 0.0
    %2827 = vmatpush2.msra.mxu0 0.0
    %2828 = vmatprep.subr.mxu0 0.0
    %2829 = vmatpush2.msra.mxu0 0.0
    %2830 = vmatprep.subr.mxu0 0.0
    %2831 = vmatpush2.msra.mxu0 0.0
    %2832 = vmatprep.subr.mxu0 0.0
    %2833 = vmatpush2.msra.mxu0 0.0
    %2834 = vmatprep.subr.mxu0 0.0
    %2835 = vmatpush2.msra.mxu0 0.0
    %2836 = vmatprep.mubr.f32.mxu0 0.0
    %2837 = vmatmul.mubr.f32.gmra.mxu0 %v2770
    %v2838 = vpop.f32.mrf.mxu0
    %v2839 = vadd.f32 0.0, %v2838
    %v2840 = vpop.f32.mrf.mxu0
    %v2841 = vadd.f32 0.0, %v2840
    %2842 = vdwg.mxu0
    %2843 = vmatprep.subr.mxu0 0.0
    %2844 = vmatpush1.msra.mxu0 %v2068
    %2845 = vmatprep.subr.mxu0 0.0
    %2846 = vmatpush1.msra.mxu0 %v2065
    %2847 = vmatprep.subr.mxu0 0.0
    %2848 = vmatpush1.msra.mxu0 %v2062
    %2849 = vmatprep.subr.mxu0 0.0
    %2850 = vmatpush1.msra.mxu0 %v2059
    %2851 = vmatprep.subr.mxu0 0.0
    %2852 = vmatpush1.msra.mxu0 %v2056
    %2853 = vmatprep.subr.mxu0 0.0
    %2854 = vmatpush1.msra.mxu0 %v2053
    %2855 = vmatprep.subr.mxu0 0.0
    %2856 = vmatpush1.msra.mxu0 %v2050
    %2857 = vmatprep.subr.mxu0 0.0
    %2858 = vmatpush1.msra.mxu0 %v2047
    %2859 = vmatprep.subr.mxu0 0.0
    %2860 = vmatpush1.msra.mxu0 %v2044
    %2861 = vmatprep.subr.mxu0 0.0
    %2862 = vmatpush1.msra.mxu0 %v2041
    %2863 = vmatprep.subr.mxu0 0.0
    %2864 = vmatpush1.msra.mxu0 %v2038
    %2865 = vmatprep.subr.mxu0 0.0
    %2866 = vmatpush1.msra.mxu0 %v2035
    %2867 = vmatprep.subr.mxu0 0.0
    %2868 = vmatpush1.msra.mxu0 %v2032
    %2869 = vmatprep.subr.mxu0 0.0
    %2870 = vmatpush1.msra.mxu0 %v2029
    %2871 = vmatprep.subr.mxu0 0.0
    %2872 = vmatpush1.msra.mxu0 %v2026
    %2873 = vmatprep.subr.mxu0 0.0
    %2874 = vmatpush1.msra.mxu0 %v2023
    %2875 = vmatprep.subr.mxu0 0.0
    %2876 = vmatpush2.msra.mxu0 0.0
    %2877 = vmatprep.subr.mxu0 0.0
    %2878 = vmatpush2.msra.mxu0 0.0
    %2879 = vmatprep.subr.mxu0 0.0
    %2880 = vmatpush2.msra.mxu0 0.0
    %2881 = vmatprep.subr.mxu0 0.0
    %2882 = vmatpush2.msra.mxu0 0.0
    %2883 = vmatprep.subr.mxu0 0.0
    %2884 = vmatpush2.msra.mxu0 0.0
    %2885 = vmatprep.subr.mxu0 0.0
    %2886 = vmatpush2.msra.mxu0 0.0
    %2887 = vmatprep.subr.mxu0 0.0
    %2888 = vmatpush2.msra.mxu0 0.0
    %2889 = vmatprep.subr.mxu0 0.0
    %2890 = vmatpush2.msra.mxu0 0.0
    %2891 = vmatprep.subr.mxu0 0.0
    %2892 = vmatpush2.msra.mxu0 0.0
    %2893 = vmatprep.subr.mxu0 0.0
    %2894 = vmatpush2.msra.mxu0 0.0
    %2895 = vmatprep.subr.mxu0 0.0
    %2896 = vmatpush2.msra.mxu0 0.0
    %2897 = vmatprep.subr.mxu0 0.0
    %2898 = vmatpush2.msra.mxu0 0.0
    %2899 = vmatprep.subr.mxu0 0.0
    %2900 = vmatpush2.msra.mxu0 0.0
    %2901 = vmatprep.subr.mxu0 0.0
    %2902 = vmatpush2.msra.mxu0 0.0
    %2903 = vmatprep.subr.mxu0 0.0
    %2904 = vmatpush2.msra.mxu0 0.0
    %2905 = vmatprep.subr.mxu0 0.0
    %2906 = vmatpush2.msra.mxu0 0.0
    %2907 = vmatprep.mubr.f32.mxu0 0.0
    %2908 = vmatmul.mubr.f32.gmra.mxu0 %v2770
    %v2909 = vpop.f32.mrf.mxu0
    %v2910 = vadd.f32 0.0, %v2909
    %v2911 = vpop.f32.mrf.mxu0
    %2912 = vdwg.mxu0
    %v2913 = vadd.f32 %v1941, %v2839
    %v2914 = vxor.u32 %v2913, 2147483648
    %v2915 = vmul.f32 %v2914, 1.442695
    %v2916 = vpow.pop %v2915
    %v2917 = vadd.f32 %v2916, 1.0
    %v2918 = vrcp.pop %v2917
    %v2919 = vmul.f32 1.0, %v2918
    %v2920 = vadd.f32 %v1943, %v2841
    %v2921 = vxor.u32 %v2920, 2147483648
    %v2922 = vmul.f32 %v2921, 1.442695
    %v2923 = vpow.pop %v2922
    %v2924 = vadd.f32 %v2923, 1.0
    %v2925 = vrcp.pop %v2924
    %v2926 = vmul.f32 1.0, %v2925
    %v2927 = vadd.f32 %v2910, %v2230
    %v2928 = vmul.f32 %v2919, %v2927
    %v2929 = vadd.f32 %v2017, %v2928
    %v2930 = vtanh.pop %v2929
    %v2931 = vsub.f32 1.0, %v2926
    %v2932 = vmul.f32 %v2931, %v2930
    %v2933 = vmul.f32 %v2926, %v2770
    %v2934 = vadd.f32 %v2932, %v2933
    %2935 = vmatprep.subr.mxu0 %v2067
    %2936 = vmatpush1.msra.mxu0 %v2066
    %2937 = vmatprep.subr.mxu0 %v2064
    %2938 = vmatpush1.msra.mxu0 %v2063
    %2939 = vmatprep.subr.mxu0 %v2061
    %2940 = vmatpush1.msra.mxu0 %v2060
    %2941 = vmatprep.subr.mxu0 %v2058
    %2942 = vmatpush1.msra.mxu0 %v2057
    %2943 = vmatprep.subr.mxu0 %v2055
    %2944 = vmatpush1.msra.mxu0 %v2054
    %2945 = vmatprep.subr.mxu0 %v2052
    %2946 = vmatpush1.msra.mxu0 %v2051
    %2947 = vmatprep.subr.mxu0 %v2049
    %2948 = vmatpush1.msra.mxu0 %v2048
    %2949 = vmatprep.subr.mxu0 %v2046
    %2950 = vmatpush1.msra.mxu0 %v2045
    %2951 = vmatprep.subr.mxu0 %v2043
    %2952 = vmatpush1.msra.mxu0 %v2042
    %2953 = vmatprep.subr.mxu0 %v2040
    %2954 = vmatpush1.msra.mxu0 %v2039
    %2955 = vmatprep.subr.mxu0 %v2037
    %2956 = vmatpush1.msra.mxu0 %v2036
    %2957 = vmatprep.subr.mxu0 %v2034
    %2958 = vmatpush1.msra.mxu0 %v2033
    %2959 = vmatprep.subr.mxu0 %v2031
    %2960 = vmatpush1.msra.mxu0 %v2030
    %2961 = vmatprep.subr.mxu0 %v2028
    %2962 = vmatpush1.msra.mxu0 %v2027
    %2963 = vmatprep.subr.mxu0 %v2025
    %2964 = vmatpush1.msra.mxu0 %v2024
    %2965 = vmatprep.subr.mxu0 %v2022
    %2966 = vmatpush1.msra.mxu0 %v2021
    %2967 = vmatprep.subr.mxu0 0.0
    %2968 = vmatpush2.msra.mxu0 0.0
    %2969 = vmatprep.subr.mxu0 0.0
    %2970 = vmatpush2.msra.mxu0 0.0
    %2971 = vmatprep.subr.mxu0 0.0
    %2972 = vmatpush2.msra.mxu0 0.0
    %2973 = vmatprep.subr.mxu0 0.0
    %2974 = vmatpush2.msra.mxu0 0.0
    %2975 = vmatprep.subr.mxu0 0.0
    %2976 = vmatpush2.msra.mxu0 0.0
    %2977 = vmatprep.subr.mxu0 0.0
    %2978 = vmatpush2.msra.mxu0 0.0
    %2979 = vmatprep.subr.mxu0 0.0
    %2980 = vmatpush2.msra.mxu0 0.0
    %2981 = vmatprep.subr.mxu0 0.0
    %2982 = vmatpush2.msra.mxu0 0.0
    %2983 = vmatprep.subr.mxu0 0.0
    %2984 = vmatpush2.msra.mxu0 0.0
    %2985 = vmatprep.subr.mxu0 0.0
    %2986 = vmatpush2.msra.mxu0 0.0
    %2987 = vmatprep.subr.mxu0 0.0
    %2988 = vmatpush2.msra.mxu0 0.0
    %2989 = vmatprep.subr.mxu0 0.0
    %2990 = vmatpush2.msra.mxu0 0.0
    %2991 = vmatprep.subr.mxu0 0.0
    %2992 = vmatpush2.msra.mxu0 0.0
    %2993 = vmatprep.subr.mxu0 0.0
    %2994 = vmatpush2.msra.mxu0 0.0
    %2995 = vmatprep.subr.mxu0 0.0
    %2996 = vmatpush2.msra.mxu0 0.0
    %2997 = vmatprep.subr.mxu0 0.0
    %2998 = vmatpush2.msra.mxu0 0.0
    %2999 = vmatprep.mubr.f32.mxu0 0.0
    %3000 = vmatmul.mubr.f32.gmra.mxu0 %v2934
    %v3001 = vpop.f32.mrf.mxu0
    %v3002 = vadd.f32 0.0, %v3001
    %v3003 = vpop.f32.mrf.mxu0
    %v3004 = vadd.f32 0.0, %v3003
    %3005 = vdwg.mxu0
    %3006 = vmatprep.subr.mxu0 0.0
    %3007 = vmatpush1.msra.mxu0 %v2068
    %3008 = vmatprep.subr.mxu0 0.0
    %3009 = vmatpush1.msra.mxu0 %v2065
    %3010 = vmatprep.subr.mxu0 0.0
    %3011 = vmatpush1.msra.mxu0 %v2062
    %3012 = vmatprep.subr.mxu0 0.0
    %3013 = vmatpush1.msra.mxu0 %v2059
    %3014 = vmatprep.subr.mxu0 0.0
    %3015 = vmatpush1.msra.mxu0 %v2056
    %3016 = vmatprep.subr.mxu0 0.0
    %3017 = vmatpush1.msra.mxu0 %v2053
    %3018 = vmatprep.subr.mxu0 0.0
    %3019 = vmatpush1.msra.mxu0 %v2050
    %3020 = vmatprep.subr.mxu0 0.0
    %3021 = vmatpush1.msra.mxu0 %v2047
    %3022 = vmatprep.subr.mxu0 0.0
    %3023 = vmatpush1.msra.mxu0 %v2044
    %3024 = vmatprep.subr.mxu0 0.0
    %3025 = vmatpush1.msra.mxu0 %v2041
    %3026 = vmatprep.subr.mxu0 0.0
    %3027 = vmatpush1.msra.mxu0 %v2038
    %3028 = vmatprep.subr.mxu0 0.0
    %3029 = vmatpush1.msra.mxu0 %v2035
    %3030 = vmatprep.subr.mxu0 0.0
    %3031 = vmatpush1.msra.mxu0 %v2032
    %3032 = vmatprep.subr.mxu0 0.0
    %3033 = vmatpush1.msra.mxu0 %v2029
    %3034 = vmatprep.subr.mxu0 0.0
    %3035 = vmatpush1.msra.mxu0 %v2026
    %3036 = vmatprep.subr.mxu0 0.0
    %3037 = vmatpush1.msra.mxu0 %v2023
    %3038 = vmatprep.subr.mxu0 0.0
    %3039 = vmatpush2.msra.mxu0 0.0
    %3040 = vmatprep.subr.mxu0 0.0
    %3041 = vmatpush2.msra.mxu0 0.0
    %3042 = vmatprep.subr.mxu0 0.0
    %3043 = vmatpush2.msra.mxu0 0.0
    %3044 = vmatprep.subr.mxu0 0.0
    %3045 = vmatpush2.msra.mxu0 0.0
    %3046 = vmatprep.subr.mxu0 0.0
    %3047 = vmatpush2.msra.mxu0 0.0
    %3048 = vmatprep.subr.mxu0 0.0
    %3049 = vmatpush2.msra.mxu0 0.0
    %3050 = vmatprep.subr.mxu0 0.0
    %3051 = vmatpush2.msra.mxu0 0.0
    %3052 = vmatprep.subr.mxu0 0.0
    %3053 = vmatpush2.msra.mxu0 0.0
    %3054 = vmatprep.subr.mxu0 0.0
    %3055 = vmatpush2.msra.mxu0 0.0
    %3056 = vmatprep.subr.mxu0 0.0
    %3057 = vmatpush2.msra.mxu0 0.0
    %3058 = vmatprep.subr.mxu0 0.0
    %3059 = vmatpush2.msra.mxu0 0.0
    %3060 = vmatprep.subr.mxu0 0.0
    %3061 = vmatpush2.msra.mxu0 0.0
    %3062 = vmatprep.subr.mxu0 0.0
    %3063 = vmatpush2.msra.mxu0 0.0
    %3064 = vmatprep.subr.mxu0 0.0
    %3065 = vmatpush2.msra.mxu0 0.0
    %3066 = vmatprep.subr.mxu0 0.0
    %3067 = vmatpush2.msra.mxu0 0.0
    %3068 = vmatprep.subr.mxu0 0.0
    %3069 = vmatpush2.msra.mxu0 0.0
    %3070 = vmatprep.mubr.f32.mxu0 0.0
    %3071 = vmatmul.mubr.f32.gmra.mxu0 %v2934
    %v3072 = vpop.f32.mrf.mxu0
    %v3073 = vadd.f32 0.0, %v3072
    %v3074 = vpop.f32.mrf.mxu0
    %3075 = vdwg.mxu0
    %v3077 = vrot.slane %v3002, 6
    %v3079 = vadd.f32 %v1941, %v3077
    %v3080 = vxor.u32 %v3079, 2147483648
    %v3081 = vmul.f32 %v3080, 1.442695
    %v3082 = vpow.pop %v3081
    %v3083 = vadd.f32 %v3082, 1.0
    %v3084 = vrcp.pop %v3083
    %v3085 = vmul.f32 1.0, %v3084
    %v3087 = vrot.slane %v3004, 6
    %v3089 = vadd.f32 %v1943, %v3087
    %v3090 = vxor.u32 %v3089, 2147483648
    %v3091 = vmul.f32 %v3090, 1.442695
    %v3092 = vpow.pop %v3091
    %v3093 = vadd.f32 %v3092, 1.0
    %v3094 = vrcp.pop %v3093
    %v3095 = vmul.f32 1.0, %v3094
    %v3096 = vadd.f32 %v3073, %v2230
    %v3098 = vrot.slane %v3096, 6
    %v3100 = vmul.f32 %v3085, %v3098
    %v3101 = vadd.f32 %v2017, %v3100
    %v3102 = vtanh.pop %v3101
    %v3103 = vsub.f32 1.0, %v3095
    %v3104 = vmul.f32 %v3103, %v3102
    %v3106 = vrot.slane %v2934, 6
    %v3108 = vmul.f32 %v3095, %v3106
    %v3109 = vadd.f32 %v3104, %v3108
    %v3111 = vrot.slane %v3109, 2
    %3113 = vmatprep.subr.mxu0 %v2067
    %3114 = vmatpush1.msra.mxu0 %v2066
    %3115 = vmatprep.subr.mxu0 %v2064
    %3116 = vmatpush1.msra.mxu0 %v2063
    %3117 = vmatprep.subr.mxu0 %v2061
    %3118 = vmatpush1.msra.mxu0 %v2060
    %3119 = vmatprep.subr.mxu0 %v2058
    %3120 = vmatpush1.msra.mxu0 %v2057
    %3121 = vmatprep.subr.mxu0 %v2055
    %3122 = vmatpush1.msra.mxu0 %v2054
    %3123 = vmatprep.subr.mxu0 %v2052
    %3124 = vmatpush1.msra.mxu0 %v2051
    %3125 = vmatprep.subr.mxu0 %v2049
    %3126 = vmatpush1.msra.mxu0 %v2048
    %3127 = vmatprep.subr.mxu0 %v2046
    %3128 = vmatpush1.msra.mxu0 %v2045
    %3129 = vmatprep.subr.mxu0 %v2043
    %3130 = vmatpush1.msra.mxu0 %v2042
    %3131 = vmatprep.subr.mxu0 %v2040
    %3132 = vmatpush1.msra.mxu0 %v2039
    %3133 = vmatprep.subr.mxu0 %v2037
    %3134 = vmatpush1.msra.mxu0 %v2036
    %3135 = vmatprep.subr.mxu0 %v2034
    %3136 = vmatpush1.msra.mxu0 %v2033
    %3137 = vmatprep.subr.mxu0 %v2031
    %3138 = vmatpush1.msra.mxu0 %v2030
    %3139 = vmatprep.subr.mxu0 %v2028
    %3140 = vmatpush1.msra.mxu0 %v2027
    %3141 = vmatprep.subr.mxu0 %v2025
    %3142 = vmatpush1.msra.mxu0 %v2024
    %3143 = vmatprep.subr.mxu0 %v2022
    %3144 = vmatpush1.msra.mxu0 %v2021
    %3145 = vmatprep.subr.mxu0 0.0
    %3146 = vmatpush2.msra.mxu0 0.0
    %3147 = vmatprep.subr.mxu0 0.0
    %3148 = vmatpush2.msra.mxu0 0.0
    %3149 = vmatprep.subr.mxu0 0.0
    %3150 = vmatpush2.msra.mxu0 0.0
    %3151 = vmatprep.subr.mxu0 0.0
    %3152 = vmatpush2.msra.mxu0 0.0
    %3153 = vmatprep.subr.mxu0 0.0
    %3154 = vmatpush2.msra.mxu0 0.0
    %3155 = vmatprep.subr.mxu0 0.0
    %3156 = vmatpush2.msra.mxu0 0.0
    %3157 = vmatprep.subr.mxu0 0.0
    %3158 = vmatpush2.msra.mxu0 0.0
    %3159 = vmatprep.subr.mxu0 0.0
    %3160 = vmatpush2.msra.mxu0 0.0
    %3161 = vmatprep.subr.mxu0 0.0
    %3162 = vmatpush2.msra.mxu0 0.0
    %3163 = vmatprep.subr.mxu0 0.0
    %3164 = vmatpush2.msra.mxu0 0.0
    %3165 = vmatprep.subr.mxu0 0.0
    %3166 = vmatpush2.msra.mxu0 0.0
    %3167 = vmatprep.subr.mxu0 0.0
    %3168 = vmatpush2.msra.mxu0 0.0
    %3169 = vmatprep.subr.mxu0 0.0
    %3170 = vmatpush2.msra.mxu0 0.0
    %3171 = vmatprep.subr.mxu0 0.0
    %3172 = vmatpush2.msra.mxu0 0.0
    %3173 = vmatprep.subr.mxu0 0.0
    %3174 = vmatpush2.msra.mxu0 0.0
    %3175 = vmatprep.subr.mxu0 0.0
    %3176 = vmatpush2.msra.mxu0 0.0
    %3177 = vmatprep.mubr.f32.mxu0 0.0
    %3178 = vmatmul.mubr.f32.gmra.mxu0 %v3111
    %v3179 = vpop.f32.mrf.mxu0
    %v3180 = vadd.f32 0.0, %v3179
    %v3181 = vpop.f32.mrf.mxu0
    %v3182 = vadd.f32 0.0, %v3181
    %3183 = vdwg.mxu0
    %3184 = vmatprep.subr.mxu0 0.0
    %3185 = vmatpush1.msra.mxu0 %v2068
    %3186 = vmatprep.subr.mxu0 0.0
    %3187 = vmatpush1.msra.mxu0 %v2065
    %3188 = vmatprep.subr.mxu0 0.0
    %3189 = vmatpush1.msra.mxu0 %v2062
    %3190 = vmatprep.subr.mxu0 0.0
    %3191 = vmatpush1.msra.mxu0 %v2059
    %3192 = vmatprep.subr.mxu0 0.0
    %3193 = vmatpush1.msra.mxu0 %v2056
    %3194 = vmatprep.subr.mxu0 0.0
    %3195 = vmatpush1.msra.mxu0 %v2053
    %3196 = vmatprep.subr.mxu0 0.0
    %3197 = vmatpush1.msra.mxu0 %v2050
    %3198 = vmatprep.subr.mxu0 0.0
    %3199 = vmatpush1.msra.mxu0 %v2047
    %3200 = vmatprep.subr.mxu0 0.0
    %3201 = vmatpush1.msra.mxu0 %v2044
    %3202 = vmatprep.subr.mxu0 0.0
    %3203 = vmatpush1.msra.mxu0 %v2041
    %3204 = vmatprep.subr.mxu0 0.0
    %3205 = vmatpush1.msra.mxu0 %v2038
    %3206 = vmatprep.subr.mxu0 0.0
    %3207 = vmatpush1.msra.mxu0 %v2035
    %3208 = vmatprep.subr.mxu0 0.0
    %3209 = vmatpush1.msra.mxu0 %v2032
    %3210 = vmatprep.subr.mxu0 0.0
    %3211 = vmatpush1.msra.mxu0 %v2029
    %3212 = vmatprep.subr.mxu0 0.0
    %3213 = vmatpush1.msra.mxu0 %v2026
    %3214 = vmatprep.subr.mxu0 0.0
    %3215 = vmatpush1.msra.mxu0 %v2023
    %3216 = vmatprep.subr.mxu0 0.0
    %3217 = vmatpush2.msra.mxu0 0.0
    %3218 = vmatprep.subr.mxu0 0.0
    %3219 = vmatpush2.msra.mxu0 0.0
    %3220 = vmatprep.subr.mxu0 0.0
    %3221 = vmatpush2.msra.mxu0 0.0
    %3222 = vmatprep.subr.mxu0 0.0
    %3223 = vmatpush2.msra.mxu0 0.0
    %3224 = vmatprep.subr.mxu0 0.0
    %3225 = vmatpush2.msra.mxu0 0.0
    %3226 = vmatprep.subr.mxu0 0.0
    %3227 = vmatpush2.msra.mxu0 0.0
    %3228 = vmatprep.subr.mxu0 0.0
    %3229 = vmatpush2.msra.mxu0 0.0
    %3230 = vmatprep.subr.mxu0 0.0
    %3231 = vmatpush2.msra.mxu0 0.0
    %3232 = vmatprep.subr.mxu0 0.0
    %3233 = vmatpush2.msra.mxu0 0.0
    %3234 = vmatprep.subr.mxu0 0.0
    %3235 = vmatpush2.msra.mxu0 0.0
    %3236 = vmatprep.subr.mxu0 0.0
    %3237 = vmatpush2.msra.mxu0 0.0
    %3238 = vmatprep.subr.mxu0 0.0
    %3239 = vmatpush2.msra.mxu0 0.0
    %3240 = vmatprep.subr.mxu0 0.0
    %3241 = vmatpush2.msra.mxu0 0.0
    %3242 = vmatprep.subr.mxu0 0.0
    %3243 = vmatpush2.msra.mxu0 0.0
    %3244 = vmatprep.subr.mxu0 0.0
    %3245 = vmatpush2.msra.mxu0 0.0
    %3246 = vmatprep.subr.mxu0 0.0
    %3247 = vmatpush2.msra.mxu0 0.0
    %3248 = vmatprep.mubr.f32.mxu0 0.0
    %3249 = vmatmul.mubr.f32.gmra.mxu0 %v3111
    %v3250 = vpop.f32.mrf.mxu0
    %v3251 = vadd.f32 0.0, %v3250
    %v3252 = vpop.f32.mrf.mxu0
    %3253 = vdwg.mxu0
    %v3255 = vrot.slane %v3180, 4
    %v3257 = vadd.f32 %v1941, %v3255
    %v3258 = vxor.u32 %v3257, 2147483648
    %v3259 = vmul.f32 %v3258, 1.442695
    %v3260 = vpow.pop %v3259
    %v3261 = vadd.f32 %v3260, 1.0
    %v3262 = vrcp.pop %v3261
    %v3263 = vmul.f32 1.0, %v3262
    %v3265 = vrot.slane %v3182, 4
    %v3267 = vadd.f32 %v1943, %v3265
    %v3268 = vxor.u32 %v3267, 2147483648
    %v3269 = vmul.f32 %v3268, 1.442695
    %v3270 = vpow.pop %v3269
    %v3271 = vadd.f32 %v3270, 1.0
    %v3272 = vrcp.pop %v3271
    %v3273 = vmul.f32 1.0, %v3272
    %v3274 = vadd.f32 %v3251, %v2230
    %v3276 = vrot.slane %v3274, 4
    %v3278 = vmul.f32 %v3263, %v3276
    %v3279 = vadd.f32 %v2017, %v3278
    %v3280 = vtanh.pop %v3279
    %v3281 = vsub.f32 1.0, %v3273
    %v3282 = vmul.f32 %v3281, %v3280
    %v3283 = vrot.slane %v3109, 6
    %v3285 = vmul.f32 %v3273, %v3283
    %v3286 = vadd.f32 %v3282, %v3285
    %v3288 = vrot.slane %v3286, 4
    %3290 = vmatprep.subr.mxu0 %v2067
    %3291 = vmatpush1.msra.mxu0 %v2066
    %3292 = vmatprep.subr.mxu0 %v2064
    %3293 = vmatpush1.msra.mxu0 %v2063
    %3294 = vmatprep.subr.mxu0 %v2061
    %3295 = vmatpush1.msra.mxu0 %v2060
    %3296 = vmatprep.subr.mxu0 %v2058
    %3297 = vmatpush1.msra.mxu0 %v2057
    %3298 = vmatprep.subr.mxu0 %v2055
    %3299 = vmatpush1.msra.mxu0 %v2054
    %3300 = vmatprep.subr.mxu0 %v2052
    %3301 = vmatpush1.msra.mxu0 %v2051
    %3302 = vmatprep.subr.mxu0 %v2049
    %3303 = vmatpush1.msra.mxu0 %v2048
    %3304 = vmatprep.subr.mxu0 %v2046
    %3305 = vmatpush1.msra.mxu0 %v2045
    %3306 = vmatprep.subr.mxu0 %v2043
    %3307 = vmatpush1.msra.mxu0 %v2042
    %3308 = vmatprep.subr.mxu0 %v2040
    %3309 = vmatpush1.msra.mxu0 %v2039
    %3310 = vmatprep.subr.mxu0 %v2037
    %3311 = vmatpush1.msra.mxu0 %v2036
    %3312 = vmatprep.subr.mxu0 %v2034
    %3313 = vmatpush1.msra.mxu0 %v2033
    %3314 = vmatprep.subr.mxu0 %v2031
    %3315 = vmatpush1.msra.mxu0 %v2030
    %3316 = vmatprep.subr.mxu0 %v2028
    %3317 = vmatpush1.msra.mxu0 %v2027
    %3318 = vmatprep.subr.mxu0 %v2025
    %3319 = vmatpush1.msra.mxu0 %v2024
    %3320 = vmatprep.subr.mxu0 %v2022
    %3321 = vmatpush1.msra.mxu0 %v2021
    %3322 = vmatprep.subr.mxu0 0.0
    %3323 = vmatpush2.msra.mxu0 0.0
    %3324 = vmatprep.subr.mxu0 0.0
    %3325 = vmatpush2.msra.mxu0 0.0
    %3326 = vmatprep.subr.mxu0 0.0
    %3327 = vmatpush2.msra.mxu0 0.0
    %3328 = vmatprep.subr.mxu0 0.0
    %3329 = vmatpush2.msra.mxu0 0.0
    %3330 = vmatprep.subr.mxu0 0.0
    %3331 = vmatpush2.msra.mxu0 0.0
    %3332 = vmatprep.subr.mxu0 0.0
    %3333 = vmatpush2.msra.mxu0 0.0
    %3334 = vmatprep.subr.mxu0 0.0
    %3335 = vmatpush2.msra.mxu0 0.0
    %3336 = vmatprep.subr.mxu0 0.0
    %3337 = vmatpush2.msra.mxu0 0.0
    %3338 = vmatprep.subr.mxu0 0.0
    %3339 = vmatpush2.msra.mxu0 0.0
    %3340 = vmatprep.subr.mxu0 0.0
    %3341 = vmatpush2.msra.mxu0 0.0
    %3342 = vmatprep.subr.mxu0 0.0
    %3343 = vmatpush2.msra.mxu0 0.0
    %3344 = vmatprep.subr.mxu0 0.0
    %3345 = vmatpush2.msra.mxu0 0.0
    %3346 = vmatprep.subr.mxu0 0.0
    %3347 = vmatpush2.msra.mxu0 0.0
    %3348 = vmatprep.subr.mxu0 0.0
    %3349 = vmatpush2.msra.mxu0 0.0
    %3350 = vmatprep.subr.mxu0 0.0
    %3351 = vmatpush2.msra.mxu0 0.0
    %3352 = vmatprep.subr.mxu0 0.0
    %3353 = vmatpush2.msra.mxu0 0.0
    %3354 = vmatprep.mubr.f32.mxu0 0.0
    %3355 = vmatmul.mubr.f32.gmra.mxu0 %v3288
    %v3356 = vpop.f32.mrf.mxu0
    %v3357 = vadd.f32 0.0, %v3356
    %v3358 = vpop.f32.mrf.mxu0
    %v3359 = vadd.f32 0.0, %v3358
    %3360 = vdwg.mxu0
    %3361 = vmatprep.subr.mxu0 0.0
    %3362 = vmatpush1.msra.mxu0 %v2068
    %3363 = vmatprep.subr.mxu0 0.0
    %3364 = vmatpush1.msra.mxu0 %v2065
    %3365 = vmatprep.subr.mxu0 0.0
    %3366 = vmatpush1.msra.mxu0 %v2062
    %3367 = vmatprep.subr.mxu0 0.0
    %3368 = vmatpush1.msra.mxu0 %v2059
    %3369 = vmatprep.subr.mxu0 0.0
    %3370 = vmatpush1.msra.mxu0 %v2056
    %3371 = vmatprep.subr.mxu0 0.0
    %3372 = vmatpush1.msra.mxu0 %v2053
    %3373 = vmatprep.subr.mxu0 0.0
    %3374 = vmatpush1.msra.mxu0 %v2050
    %3375 = vmatprep.subr.mxu0 0.0
    %3376 = vmatpush1.msra.mxu0 %v2047
    %3377 = vmatprep.subr.mxu0 0.0
    %3378 = vmatpush1.msra.mxu0 %v2044
    %3379 = vmatprep.subr.mxu0 0.0
    %3380 = vmatpush1.msra.mxu0 %v2041
    %3381 = vmatprep.subr.mxu0 0.0
    %3382 = vmatpush1.msra.mxu0 %v2038
    %3383 = vmatprep.subr.mxu0 0.0
    %3384 = vmatpush1.msra.mxu0 %v2035
    %3385 = vmatprep.subr.mxu0 0.0
    %3386 = vmatpush1.msra.mxu0 %v2032
    %3387 = vmatprep.subr.mxu0 0.0
    %3388 = vmatpush1.msra.mxu0 %v2029
    %3389 = vmatprep.subr.mxu0 0.0
    %3390 = vmatpush1.msra.mxu0 %v2026
    %3391 = vmatprep.subr.mxu0 0.0
    %3392 = vmatpush1.msra.mxu0 %v2023
    %3393 = vmatprep.subr.mxu0 0.0
    %3394 = vmatpush2.msra.mxu0 0.0
    %3395 = vmatprep.subr.mxu0 0.0
    %3396 = vmatpush2.msra.mxu0 0.0
    %3397 = vmatprep.subr.mxu0 0.0
    %3398 = vmatpush2.msra.mxu0 0.0
    %3399 = vmatprep.subr.mxu0 0.0
    %3400 = vmatpush2.msra.mxu0 0.0
    %3401 = vmatprep.subr.mxu0 0.0
    %3402 = vmatpush2.msra.mxu0 0.0
    %3403 = vmatprep.subr.mxu0 0.0
    %3404 = vmatpush2.msra.mxu0 0.0
    %3405 = vmatprep.subr.mxu0 0.0
    %3406 = vmatpush2.msra.mxu0 0.0
    %3407 = vmatprep.subr.mxu0 0.0
    %3408 = vmatpush2.msra.mxu0 0.0
    %3409 = vmatprep.subr.mxu0 0.0
    %3410 = vmatpush2.msra.mxu0 0.0
    %3411 = vmatprep.subr.mxu0 0.0
    %3412 = vmatpush2.msra.mxu0 0.0
    %3413 = vmatprep.subr.mxu0 0.0
    %3414 = vmatpush2.msra.mxu0 0.0
    %3415 = vmatprep.subr.mxu0 0.0
    %3416 = vmatpush2.msra.mxu0 0.0
    %3417 = vmatprep.subr.mxu0 0.0
    %3418 = vmatpush2.msra.mxu0 0.0
    %3419 = vmatprep.subr.mxu0 0.0
    %3420 = vmatpush2.msra.mxu0 0.0
    %3421 = vmatprep.subr.mxu0 0.0
    %3422 = vmatpush2.msra.mxu0 0.0
    %3423 = vmatprep.subr.mxu0 0.0
    %3424 = vmatpush2.msra.mxu0 0.0
    %3425 = vmatprep.mubr.f32.mxu0 0.0
    %3426 = vmatmul.mubr.f32.gmra.mxu0 %v3288
    %v3427 = vpop.f32.mrf.mxu0
    %v3428 = vadd.f32 0.0, %v3427
    %v3429 = vpop.f32.mrf.mxu0
    %3430 = vdwg.mxu0
    %v3432 = vrot.slane %v3357, 2
    %v3434 = vadd.f32 %v1941, %v3432
    %v3435 = vxor.u32 %v3434, 2147483648
    %v3436 = vmul.f32 %v3435, 1.442695
    %v3437 = vpow.pop %v3436
    %v3438 = vadd.f32 %v3437, 1.0
    %v3439 = vrcp.pop %v3438
    %v3440 = vmul.f32 1.0, %v3439
    %v3442 = vrot.slane %v3359, 2
    %v3444 = vadd.f32 %v1943, %v3442
    %v3445 = vxor.u32 %v3444, 2147483648
    %v3446 = vmul.f32 %v3445, 1.442695
    %v3447 = vpow.pop %v3446
    %v3448 = vadd.f32 %v3447, 1.0
    %v3449 = vrcp.pop %v3448
    %v3450 = vmul.f32 1.0, %v3449
    %v3451 = vadd.f32 %v3428, %v2230
    %v3453 = vrot.slane %v3451, 2
    %v3455 = vmul.f32 %v3440, %v3453
    %v3456 = vadd.f32 %v2017, %v3455
    %v3457 = vtanh.pop %v3456
    %v3458 = vsub.f32 1.0, %v3450
    %v3459 = vmul.f32 %v3458, %v3457
    %v3460 = vrot.slane %v3286, 6
    %v3462 = vmul.f32 %v3450, %v3460
    %v3463 = vadd.f32 %v3459, %v3462
    %v3465 = vunpack.c.l.s4 1966171168
    %v3466 = vunpack.c.0.s8 %v3465
    %v3467 = vlaneseq
    %v3468 = vshrl.u32 %v3467, 7
    %v3469 = vsub.s32 %v3466, %v3468
    %v3470 = vrot.slane %v2239, %v3469
    %v3471 = vcombine.high %v3470, %v3470
    %v3473 = vunpack.c.l.s4 1966171168
    %v3474 = vunpack.c.0.s8 %v3473
    %v3475 = vlaneseq
    %v3476 = vshrl.u32 %v3475, 7
    %v3477 = vsub.s32 %v3474, %v3476
    %v3478 = vrot.slane %v3470, %v3477
    %v3480 = vunpack.c.l.s4 1966171168
    %v3481 = vunpack.c.0.s8 %v3480
    %v3482 = vlaneseq
    %v3483 = vshrl.u32 %v3482, 7
    %v3484 = vsub.s32 %v3481, %v3483
    %v3485 = vrot.slane %v3471, %v3484
    %v3489 = vunpack.c.l.s4 1966171168
    %v3490 = vunpack.c.0.s8 %v3489
    %v3491 = vlaneseq
    %v3492 = vshrl.u32 %v3491, 7
    %v3493 = vsub.s32 %v3490, %v3492
    %v3494 = vrot.slane %v2414, %v3493
    %v3495 = vcombine.high %v3494, %v3494
    %v3497 = vunpack.c.l.s4 1966171168
    %v3498 = vunpack.c.0.s8 %v3497
    %v3499 = vlaneseq
    %v3500 = vshrl.u32 %v3499, 7
    %v3501 = vsub.s32 %v3498, %v3500
    %v3502 = vrot.slane %v3494, %v3501
    %v3504 = vunpack.c.l.s4 1966171168
    %v3505 = vunpack.c.0.s8 %v3504
    %v3506 = vlaneseq
    %v3507 = vshrl.u32 %v3506, 7
    %v3508 = vsub.s32 %v3505, %v3507
    %v3509 = vrot.slane %v3495, %v3508
    %v3510 = vcombine.high %v3502, %v3502
    %v3511 = vcombine.high %v3509, %v3509
    %v3512 = vcombine.high %v2591, %v2591
    %v3514 = vunpack.c.l.s4 1966171168
    %v3515 = vunpack.c.0.s8 %v3514
    %v3516 = vlaneseq
    %v3517 = vshrl.u32 %v3516, 7
    %v3518 = vsub.s32 %v3515, %v3517
    %v3519 = vrot.slane %v3512, %v3518
    %v3520 = vcombine.high %v3519, %v3519
    %v3522 = vunpack.c.l.s4 1966171168
    %v3523 = vunpack.c.0.s8 %v3522
    %v3524 = vlaneseq
    %v3525 = vshrl.u32 %v3524, 7
    %v3526 = vsub.s32 %v3523, %v3525
    %v3527 = vrot.slane %v3519, %v3526
    %v3529 = vunpack.c.l.s4 1966171168
    %v3530 = vunpack.c.0.s8 %v3529
    %v3531 = vlaneseq
    %v3532 = vshrl.u32 %v3531, 7
    %v3533 = vsub.s32 %v3530, %v3532
    %v3534 = vrot.slane %v3520, %v3533
    %v3535 = vcombine.high %v2768, %v2768
    %v3537 = vunpack.c.l.s4 1966171168
    %v3538 = vunpack.c.0.s8 %v3537
    %v3539 = vlaneseq
    %v3540 = vshrl.u32 %v3539, 7
    %v3541 = vsub.s32 %v3538, %v3540
    %v3542 = vrot.slane %v3535, %v3541
    %v3543 = vcombine.high %v3542, %v3542
    %v3545 = vunpack.c.l.s4 1966171168
    %v3546 = vunpack.c.0.s8 %v3545
    %v3547 = vlaneseq
    %v3548 = vshrl.u32 %v3547, 7
    %v3549 = vsub.s32 %v3546, %v3548
    %v3550 = vrot.slane %v3542, %v3549
    %v3552 = vunpack.c.l.s4 1966171168
    %v3553 = vunpack.c.0.s8 %v3552
    %v3554 = vlaneseq
    %v3555 = vshrl.u32 %v3554, 7
    %v3556 = vsub.s32 %v3553, %v3555
    %v3557 = vrot.slane %v3543, %v3556
    %v3558 = vcombine.high %v3550, %v3550
    %v3559 = vcombine.high %v3557, %v3557
    %v3561 = vunpack.c.l.s4 1966171168
    %v3562 = vunpack.c.0.s8 %v3561
    %v3563 = vlaneseq
    %v3564 = vshrl.u32 %v3563, 7
    %v3565 = vsub.s32 %v3562, %v3564
    %v3566 = vrot.slane %v2934, %v3565
    %v3567 = vcombine.high %v3566, %v3566
    %v3569 = vunpack.c.l.s4 1966171168
    %v3570 = vunpack.c.0.s8 %v3569
    %v3571 = vlaneseq
    %v3572 = vshrl.u32 %v3571, 7
    %v3573 = vsub.s32 %v3570, %v3572
    %v3574 = vrot.slane %v3566, %v3573
    %v3576 = vunpack.c.l.s4 1966171168
    %v3577 = vunpack.c.0.s8 %v3576
    %v3578 = vlaneseq
    %v3579 = vshrl.u32 %v3578, 7
    %v3580 = vsub.s32 %v3577, %v3579
    %v3581 = vrot.slane %v3567, %v3580
    %v3583 = vunpack.c.l.s4 1966171168
    %v3584 = vunpack.c.0.s8 %v3583
    %v3585 = vlaneseq
    %v3586 = vshrl.u32 %v3585, 7
    %v3587 = vsub.s32 %v3584, %v3586
    %v3588 = vrot.slane %v3109, %v3587
    %v3589 = vcombine.high %v3588, %v3588
    %v3591 = vunpack.c.l.s4 1966171168
    %v3592 = vunpack.c.0.s8 %v3591
    %v3593 = vlaneseq
    %v3594 = vshrl.u32 %v3593, 7
    %v3595 = vsub.s32 %v3592, %v3594
    %v3596 = vrot.slane %v3588, %v3595
    %v3598 = vunpack.c.l.s4 1966171168
    %v3599 = vunpack.c.0.s8 %v3598
    %v3600 = vlaneseq
    %v3601 = vshrl.u32 %v3600, 7
    %v3602 = vsub.s32 %v3599, %v3601
    %v3603 = vrot.slane %v3589, %v3602
    %v3604 = vcombine.high %v3596, %v3596
    %v3605 = vcombine.high %v3603, %v3603
    %v3606 = vcombine.high %v3286, %v3286
    %v3608 = vunpack.c.l.s4 1966171168
    %v3609 = vunpack.c.0.s8 %v3608
    %v3610 = vlaneseq
    %v3611 = vshrl.u32 %v3610, 7
    %v3612 = vsub.s32 %v3609, %v3611
    %v3613 = vrot.slane %v3606, %v3612
    %v3614 = vcombine.high %v3613, %v3613
    %v3616 = vunpack.c.l.s4 1966171168
    %v3617 = vunpack.c.0.s8 %v3616
    %v3618 = vlaneseq
    %v3619 = vshrl.u32 %v3618, 7
    %v3620 = vsub.s32 %v3617, %v3619
    %v3621 = vrot.slane %v3613, %v3620
    %v3623 = vunpack.c.l.s4 1966171168
    %v3624 = vunpack.c.0.s8 %v3623
    %v3625 = vlaneseq
    %v3626 = vshrl.u32 %v3625, 7
    %v3627 = vsub.s32 %v3624, %v3626
    %v3628 = vrot.slane %v3614, %v3627
    %v3630 = vcombine.high %v3463, %v3463
    %v3632 = vunpack.c.l.s4 1966171168
    %v3633 = vunpack.c.0.s8 %v3632
    %v3634 = vlaneseq
    %v3635 = vshrl.u32 %v3634, 7
    %v3636 = vsub.s32 %v3633, %v3635
    %v3637 = vrot.slane %v3630, %v3636
    %v3638 = vcombine.high %v3637, %v3637
    %v3640 = vunpack.c.l.s4 1966171168
    %v3641 = vunpack.c.0.s8 %v3640
    %v3642 = vlaneseq
    %v3643 = vshrl.u32 %v3642, 7
    %v3644 = vsub.s32 %v3641, %v3643
    %v3645 = vrot.slane %v3637, %v3644
    %v3647 = vunpack.c.l.s4 1966171168
    %v3648 = vunpack.c.0.s8 %v3647
    %v3649 = vlaneseq
    %v3650 = vshrl.u32 %v3649, 7
    %v3651 = vsub.s32 %v3648, %v3650
    %v3652 = vrot.slane %v3638, %v3651
    %v3653 = vcombine.high %v3645, %v3645
    %v3654 = vcombine.high %v3652, %v3652
    %v3655 = vlaneseq
    %v3656 = vshrl.u32 %v3655, 7
    %v3657 = vsub.s32 0, %v3656
    %v3658 = vrot.slane %v3510, %v3657
    %v3659 = vlaneseq
    %v3660 = vshrl.u32 %v3659, 7
    %v3661 = vsub.s32 0, %v3660
    %v3662 = vrot.slane %v3511, %v3661
    %v3665 = vlaneseq
    %v3666 = vshrl.u32 %v3665, 7
    %v3667 = vsub.s32 0, %v3666
    %v3668 = vrot.slane %v3527, %v3667
    %v3669 = vlaneseq
    %v3670 = vshrl.u32 %v3669, 7
    %v3671 = vsub.s32 0, %v3670
    %v3672 = vrot.slane %v3534, %v3671
    %v3675 = vlaneseq
    %v3676 = vshrl.u32 %v3675, 7
    %v3677 = vsub.s32 0, %v3676
    %v3678 = vrot.slane %v3558, %v3677
    %v3679 = vlaneseq
    %v3680 = vshrl.u32 %v3679, 7
    %v3681 = vsub.s32 0, %v3680
    %v3682 = vrot.slane %v3559, %v3681
    %v3685 = vlaneseq
    %v3686 = vshrl.u32 %v3685, 7
    %v3687 = vsub.s32 0, %v3686
    %v3688 = vrot.slane %v3574, %v3687
    %v3689 = vlaneseq
    %v3690 = vshrl.u32 %v3689, 7
    %v3691 = vsub.s32 0, %v3690
    %v3692 = vrot.slane %v3581, %v3691
    %v3695 = vlaneseq
    %v3696 = vshrl.u32 %v3695, 7
    %v3697 = vsub.s32 0, %v3696
    %v3698 = vrot.slane %v3604, %v3697
    %v3699 = vlaneseq
    %v3700 = vshrl.u32 %v3699, 7
    %v3701 = vsub.s32 0, %v3700
    %v3702 = vrot.slane %v3605, %v3701
    %v3705 = vlaneseq
    %v3706 = vshrl.u32 %v3705, 7
    %v3707 = vsub.s32 0, %v3706
    %v3708 = vrot.slane %v3621, %v3707
    %v3709 = vlaneseq
    %v3710 = vshrl.u32 %v3709, 7
    %v3711 = vsub.s32 0, %v3710
    %v3712 = vrot.slane %v3628, %v3711
    %v3715 = vlaneseq
    %v3716 = vshrl.u32 %v3715, 7
    %v3717 = vsub.s32 0, %v3716
    %v3718 = vrot.slane %v3653, %v3717
    %v3719 = vlaneseq
    %v3720 = vshrl.u32 %v3719, 7
    %v3721 = vsub.s32 0, %v3720
    %v3722 = vrot.slane %v3654, %v3721
    %vm3725 = vcmask 1040384
    %v3726 = vsel %vm3725, %v3478, %v3658
    %v3727 = vsel %vm3725, %v3485, %v3662
    %v3728 = vsel %vm1792, %v3726, %v3668
    %v3729 = vsel %vm1792, %v3727, %v3672
    %vm3730 = vcmask 1042432
    %v3731 = vsel %vm3730, %v3728, %v3678
    %v3732 = vsel %vm3730, %v3729, %v3682
    %v3733 = vsel %vm1794, %v3731, %v3688
    %v3734 = vsel %vm1794, %v3732, %v3692
    %vm3735 = vcmask 1044480
    %v3736 = vsel %vm3735, %v3733, %v3698
    %v3737 = vsel %vm3735, %v3734, %v3702
    %v3738 = vsel %vm1796, %v3736, %v3708
    %v3739 = vsel %vm1796, %v3737, %v3712
    %vm3740 = vcmask 1046528
    %v3741 = vsel %vm3740, %v3738, %v3718
    %v3742 = vsel %vm3740, %v3739, %v3722
    %v3743 = vld [vmem:[#allocation6] sm:$0xff]
    %v3744 = vld [vmem:[#allocation6 + $0x8] sm:$0xff]
    %v3745 = vld [vmem:[#allocation6 + $0x10] sm:$0xff]
    %v3746 = vld [vmem:[#allocation6 + $0x18] sm:$0xff]
    %v3747 = vld [vmem:[#allocation6 + $0x20] sm:$0xff]
    %v3748 = vld [vmem:[#allocation6 + $0x28] sm:$0xff]
    %v3749 = vld [vmem:[#allocation6 + $0x30] sm:$0xff]
    %v3750 = vld [vmem:[#allocation6 + $0x38] sm:$0xff]
    %v3751 = vld [vmem:[#allocation6 + $0x40] sm:$0xff]
    %v3752 = vld [vmem:[#allocation6 + $0x48] sm:$0xff]
    %v3753 = vld [vmem:[#allocation6 + $0x50] sm:$0xff]
    %v3754 = vld [vmem:[#allocation6 + $0x58] sm:$0xff]
    %v3755 = vld [vmem:[#allocation6 + $0x60] sm:$0xff]
    %v3756 = vld [vmem:[#allocation6 + $0x68] sm:$0xff]
    %v3757 = vld [vmem:[#allocation6 + $0x70] sm:$0xff]
    %v3758 = vld [vmem:[#allocation6 + $0x78] sm:$0xff]
    %v3759 = vld [vmem:[#allocation6 + $0x80] sm:$0xff]
    %v3760 = vld [vmem:[#allocation6 + $0x88] sm:$0xff]
    %v3761 = vld [vmem:[#allocation6 + $0x90] sm:$0xff]
    %v3762 = vld [vmem:[#allocation6 + $0x98] sm:$0xff]
    %v3763 = vld [vmem:[#allocation6 + $0xa0] sm:$0xff]
    %v3764 = vld [vmem:[#allocation6 + $0xa8] sm:$0xff]
    %v3765 = vld [vmem:[#allocation6 + $0xb0] sm:$0xff]
    %v3766 = vld [vmem:[#allocation6 + $0xb8] sm:$0xff]
    %v3767 = vld [vmem:[#allocation6 + $0xc0] sm:$0xff]
    %v3768 = vld [vmem:[#allocation6 + $0xc8] sm:$0xff]
    %v3769 = vld [vmem:[#allocation6 + $0xd0] sm:$0xff]
    %v3770 = vld [vmem:[#allocation6 + $0xd8] sm:$0xff]
    %v3771 = vld [vmem:[#allocation6 + $0xe0] sm:$0xff]
    %v3772 = vld [vmem:[#allocation6 + $0xe8] sm:$0xff]
    %v3773 = vld [vmem:[#allocation6 + $0xf0] sm:$0xff]
    %v3774 = vld [vmem:[#allocation6 + $0xf8] sm:$0xff]
    %v3775 = vld [vmem:[#allocation6 + $0x100] sm:$0xff]
    %v3776 = vld [vmem:[#allocation6 + $0x108] sm:$0xff]
    %v3777 = vld [vmem:[#allocation6 + $0x110] sm:$0xff]
    %v3778 = vld [vmem:[#allocation6 + $0x118] sm:$0xff]
    %v3779 = vld [vmem:[#allocation6 + $0x120] sm:$0xff]
    %v3780 = vld [vmem:[#allocation6 + $0x128] sm:$0xff]
    %v3781 = vld [vmem:[#allocation6 + $0x130] sm:$0xff]
    %v3782 = vld [vmem:[#allocation6 + $0x138] sm:$0xff]
    %v3783 = vld [vmem:[#allocation6 + $0x140] sm:$0xff]
    %v3784 = vld [vmem:[#allocation6 + $0x148] sm:$0xff]
    %v3785 = vld [vmem:[#allocation6 + $0x150] sm:$0xff]
    %v3786 = vld [vmem:[#allocation6 + $0x158] sm:$0xff]
    %v3787 = vld [vmem:[#allocation6 + $0x160] sm:$0xff]
    %v3788 = vld [vmem:[#allocation6 + $0x168] sm:$0xff]
    %v3789 = vld [vmem:[#allocation6 + $0x170] sm:$0xff]
    %v3790 = vld [vmem:[#allocation6 + $0x178] sm:$0xff]
    %3791 = vmatprep.subr.mxu0 %v3789
    %3792 = vmatpush1.msra.mxu0 %v3788
    %3793 = vmatprep.subr.mxu0 %v3786
    %3794 = vmatpush1.msra.mxu0 %v3785
    %3795 = vmatprep.subr.mxu0 %v3783
    %3796 = vmatpush1.msra.mxu0 %v3782
    %3797 = vmatprep.subr.mxu0 %v3780
    %3798 = vmatpush1.msra.mxu0 %v3779
    %3799 = vmatprep.subr.mxu0 %v3777
    %3800 = vmatpush1.msra.mxu0 %v3776
    %3801 = vmatprep.subr.mxu0 %v3774
    %3802 = vmatpush1.msra.mxu0 %v3773
    %3803 = vmatprep.subr.mxu0 %v3771
    %3804 = vmatpush1.msra.mxu0 %v3770
    %3805 = vmatprep.subr.mxu0 %v3768
    %3806 = vmatpush1.msra.mxu0 %v3767
    %3807 = vmatprep.subr.mxu0 %v3765
    %3808 = vmatpush1.msra.mxu0 %v3764
    %3809 = vmatprep.subr.mxu0 %v3762
    %3810 = vmatpush1.msra.mxu0 %v3761
    %3811 = vmatprep.subr.mxu0 %v3759
    %3812 = vmatpush1.msra.mxu0 %v3758
    %3813 = vmatprep.subr.mxu0 %v3756
    %3814 = vmatpush1.msra.mxu0 %v3755
    %3815 = vmatprep.subr.mxu0 %v3753
    %3816 = vmatpush1.msra.mxu0 %v3752
    %3817 = vmatprep.subr.mxu0 %v3750
    %3818 = vmatpush1.msra.mxu0 %v3749
    %3819 = vmatprep.subr.mxu0 %v3747
    %3820 = vmatpush1.msra.mxu0 %v3746
    %3821 = vmatprep.subr.mxu0 %v3744
    %3822 = vmatpush1.msra.mxu0 %v3743
    %3823 = vmatprep.subr.mxu0 0.0
    %3824 = vmatpush2.msra.mxu0 0.0
    %3825 = vmatprep.subr.mxu0 0.0
    %3826 = vmatpush2.msra.mxu0 0.0
    %3827 = vmatprep.subr.mxu0 0.0
    %3828 = vmatpush2.msra.mxu0 0.0
    %3829 = vmatprep.subr.mxu0 0.0
    %3830 = vmatpush2.msra.mxu0 0.0
    %3831 = vmatprep.subr.mxu0 0.0
    %3832 = vmatpush2.msra.mxu0 0.0
    %3833 = vmatprep.subr.mxu0 0.0
    %3834 = vmatpush2.msra.mxu0 0.0
    %3835 = vmatprep.subr.mxu0 0.0
    %3836 = vmatpush2.msra.mxu0 0.0
    %3837 = vmatprep.subr.mxu0 0.0
    %3838 = vmatpush2.msra.mxu0 0.0
    %3839 = vmatprep.subr.mxu0 0.0
    %3840 = vmatpush2.msra.mxu0 0.0
    %3841 = vmatprep.subr.mxu0 0.0
    %3842 = vmatpush2.msra.mxu0 0.0
    %3843 = vmatprep.subr.mxu0 0.0
    %3844 = vmatpush2.msra.mxu0 0.0
    %3845 = vmatprep.subr.mxu0 0.0
    %3846 = vmatpush2.msra.mxu0 0.0
    %3847 = vmatprep.subr.mxu0 0.0
    %3848 = vmatpush2.msra.mxu0 0.0
    %3849 = vmatprep.subr.mxu0 0.0
    %3850 = vmatpush2.msra.mxu0 0.0
    %3851 = vmatprep.subr.mxu0 0.0
    %3852 = vmatpush2.msra.mxu0 0.0
    %3853 = vmatprep.subr.mxu0 0.0
    %3854 = vmatpush2.msra.mxu0 0.0
    %3855 = vmatprep.mubr.f32.mxu0 0.0
    %3856 = vmatmul.mubr.f32.gmra.mxu0 %v3741
    %v3857 = vpop.f32.mrf.mxu0
    %v3858 = vadd.f32 0.0, %v3857
    %v3859 = vpop.f32.mrf.mxu0
    %v3860 = vadd.f32 0.0, %v3859
    %3861 = vmatprep.mubr.f32.mxu0 0.0
    %3862 = vmatmul.mubr.f32.gmra.mxu0 %v3742
    %v3863 = vpop.f32.mrf.mxu0
    %v3864 = vadd.f32 0.0, %v3863
    %v3865 = vpop.f32.mrf.mxu0
    %v3866 = vadd.f32 0.0, %v3865
    %3867 = vdwg.mxu0
    %3868 = vmatprep.subr.mxu0 0.0
    %3869 = vmatpush1.msra.mxu0 %v3790
    %3870 = vmatprep.subr.mxu0 0.0
    %3871 = vmatpush1.msra.mxu0 %v3787
    %3872 = vmatprep.subr.mxu0 0.0
    %3873 = vmatpush1.msra.mxu0 %v3784
    %3874 = vmatprep.subr.mxu0 0.0
    %3875 = vmatpush1.msra.mxu0 %v3781
    %3876 = vmatprep.subr.mxu0 0.0
    %3877 = vmatpush1.msra.mxu0 %v3778
    %3878 = vmatprep.subr.mxu0 0.0
    %3879 = vmatpush1.msra.mxu0 %v3775
    %3880 = vmatprep.subr.mxu0 0.0
    %3881 = vmatpush1.msra.mxu0 %v3772
    %3882 = vmatprep.subr.mxu0 0.0
    %3883 = vmatpush1.msra.mxu0 %v3769
    %3884 = vmatprep.subr.mxu0 0.0
    %3885 = vmatpush1.msra.mxu0 %v3766
    %3886 = vmatprep.subr.mxu0 0.0
    %3887 = vmatpush1.msra.mxu0 %v3763
    %3888 = vmatprep.subr.mxu0 0.0
    %3889 = vmatpush1.msra.mxu0 %v3760
    %3890 = vmatprep.subr.mxu0 0.0
    %3891 = vmatpush1.msra.mxu0 %v3757
    %3892 = vmatprep.subr.mxu0 0.0
    %3893 = vmatpush1.msra.mxu0 %v3754
    %3894 = vmatprep.subr.mxu0 0.0
    %3895 = vmatpush1.msra.mxu0 %v3751
    %3896 = vmatprep.subr.mxu0 0.0
    %3897 = vmatpush1.msra.mxu0 %v3748
    %3898 = vmatprep.subr.mxu0 0.0
    %3899 = vmatpush1.msra.mxu0 %v3745
    %3900 = vmatprep.subr.mxu0 0.0
    %3901 = vmatpush2.msra.mxu0 0.0
    %3902 = vmatprep.subr.mxu0 0.0
    %3903 = vmatpush2.msra.mxu0 0.0
    %3904 = vmatprep.subr.mxu0 0.0
    %3905 = vmatpush2.msra.mxu0 0.0
    %3906 = vmatprep.subr.mxu0 0.0
    %3907 = vmatpush2.msra.mxu0 0.0
    %3908 = vmatprep.subr.mxu0 0.0
    %3909 = vmatpush2.msra.mxu0 0.0
    %3910 = vmatprep.subr.mxu0 0.0
    %3911 = vmatpush2.msra.mxu0 0.0
    %3912 = vmatprep.subr.mxu0 0.0
    %3913 = vmatpush2.msra.mxu0 0.0
    %3914 = vmatprep.subr.mxu0 0.0
    %3915 = vmatpush2.msra.mxu0 0.0
    %3916 = vmatprep.subr.mxu0 0.0
    %3917 = vmatpush2.msra.mxu0 0.0
    %3918 = vmatprep.subr.mxu0 0.0
    %3919 = vmatpush2.msra.mxu0 0.0
    %3920 = vmatprep.subr.mxu0 0.0
    %3921 = vmatpush2.msra.mxu0 0.0
    %3922 = vmatprep.subr.mxu0 0.0
    %3923 = vmatpush2.msra.mxu0 0.0
    %3924 = vmatprep.subr.mxu0 0.0
    %3925 = vmatpush2.msra.mxu0 0.0
    %3926 = vmatprep.subr.mxu0 0.0
    %3927 = vmatpush2.msra.mxu0 0.0
    %3928 = vmatprep.subr.mxu0 0.0
    %3929 = vmatpush2.msra.mxu0 0.0
    %3930 = vmatprep.subr.mxu0 0.0
    %3931 = vmatpush2.msra.mxu0 0.0
    %3932 = vmatprep.mubr.f32.mxu0 0.0
    %3933 = vmatmul.mubr.f32.gmra.mxu0 %v3741
    %v3934 = vpop.f32.mrf.mxu0
    %v3935 = vadd.f32 0.0, %v3934
    %v3936 = vpop.f32.mrf.mxu0
    %3937 = vmatprep.mubr.f32.mxu0 0.0
    %3938 = vmatmul.mubr.f32.gmra.mxu0 %v3742
    %v3939 = vpop.f32.mrf.mxu0
    %v3940 = vadd.f32 0.0, %v3939
    %v3941 = vpop.f32.mrf.mxu0
    %3942 = vdwg.mxu0
    %3943 = vmatprep.subr.mxu0 0.0
    %3944 = vmatpush1.xpose.msra.mxu0 0.0
    %3945 = vmatprep.subr.mxu0 0.0
    %3946 = vmatpush1.xpose.msra.mxu0 0.0
    %3947 = vmatprep.subr.mxu0 0.0
    %3948 = vmatpush1.xpose.msra.mxu0 0.0
    %3949 = vmatprep.subr.mxu0 0.0
    %3950 = vmatpush1.xpose.msra.mxu0 0.0
    %3951 = vmatprep.subr.mxu0 0.0
    %3952 = vmatpush1.xpose.msra.mxu0 0.0
    %3953 = vmatprep.subr.mxu0 0.0
    %3954 = vmatpush1.xpose.msra.mxu0 0.0
    %3955 = vmatprep.subr.mxu0 0.0
    %3956 = vmatpush1.xpose.msra.mxu0 0.0
    %3957 = vmatprep.subr.mxu0 0.0
    %3958 = vmatpush1.xpose.msra.mxu0 0.0
    %3959 = vmatprep.subr.mxu0 0.0
    %3960 = vmatpush1.xpose.msra.mxu0 0.0
    %3961 = vmatprep.subr.mxu0 0.0
    %3962 = vmatpush1.xpose.msra.mxu0 0.0
    %3963 = vmatprep.subr.mxu0 0.0
    %3964 = vmatpush1.xpose.msra.mxu0 0.0
    %3965 = vmatprep.subr.mxu0 0.0
    %3966 = vmatpush1.xpose.msra.mxu0 0.0
    %3967 = vmatprep.subr.mxu0 0.0
    %3968 = vmatpush1.xpose.msra.mxu0 0.0
    %3969 = vmatprep.subr.mxu0 0.0
    %3970 = vmatpush1.xpose.msra.mxu0 0.0
    %3971 = vmatprep.subr.mxu0 0.0
    %3972 = vmatpush1.xpose.msra.mxu0 0.0
    %3973 = vmatprep.subr.mxu0 0.0
    %3974 = vmatpush1.xpose.msra.mxu0 %v3860
    %3975 = vmatprep.subr.mxu0 0.0
    %3976 = vmatpush2.xpose.msra.mxu0 0.0
    %3977 = vmatprep.subr.mxu0 0.0
    %3978 = vmatpush2.xpose.msra.mxu0 0.0
    %3979 = vmatprep.subr.mxu0 0.0
    %3980 = vmatpush2.xpose.msra.mxu0 0.0
    %3981 = vmatprep.subr.mxu0 0.0
    %3982 = vmatpush2.xpose.msra.mxu0 0.0
    %3983 = vmatprep.subr.mxu0 0.0
    %3984 = vmatpush2.xpose.msra.mxu0 0.0
    %3985 = vmatprep.subr.mxu0 0.0
    %3986 = vmatpush2.xpose.msra.mxu0 0.0
    %3987 = vmatprep.subr.mxu0 0.0
    %3988 = vmatpush2.xpose.msra.mxu0 0.0
    %3989 = vmatprep.subr.mxu0 0.0
    %3990 = vmatpush2.xpose.msra.mxu0 0.0
    %3991 = vmatprep.subr.mxu0 0.0
    %3992 = vmatpush2.xpose.msra.mxu0 0.0
    %3993 = vmatprep.subr.mxu0 0.0
    %3994 = vmatpush2.xpose.msra.mxu0 0.0
    %3995 = vmatprep.subr.mxu0 0.0
    %3996 = vmatpush2.xpose.msra.mxu0 0.0
    %3997 = vmatprep.subr.mxu0 0.0
    %3998 = vmatpush2.xpose.msra.mxu0 0.0
    %3999 = vmatprep.subr.mxu0 0.0
    %4000 = vmatpush2.xpose.msra.mxu0 0.0
    %4001 = vmatprep.subr.mxu0 0.0
    %4002 = vmatpush2.xpose.msra.mxu0 0.0
    %4003 = vmatprep.subr.mxu0 0.0
    %4004 = vmatpush2.xpose.msra.mxu0 0.0
    %4005 = vmatprep.subr.mxu0 0.0
    %4006 = vmatpush2.xpose.msra.mxu0 0.0
    %4007 = vmatprep.mubr.f32.mxu0 0.0
    %4008 = vmatmul.mubr.f32.gmra.mxu0 %v3858
    %v4009 = vpop.f32.mrf.mxu0
    %v4010 = vadd.f32 0.0, %v4009
    %v4011 = vpop.f32.mrf.mxu0
    %4012 = vdwg.mxu0
    %4013 = vmatprep.subr.mxu0 0.0
    %4014 = vmatpush1.xpose.msra.mxu0 0.0
    %4015 = vmatprep.subr.mxu0 0.0
    %4016 = vmatpush1.xpose.msra.mxu0 0.0
    %4017 = vmatprep.subr.mxu0 0.0
    %4018 = vmatpush1.xpose.msra.mxu0 0.0
    %4019 = vmatprep.subr.mxu0 0.0
    %4020 = vmatpush1.xpose.msra.mxu0 0.0
    %4021 = vmatprep.subr.mxu0 0.0
    %4022 = vmatpush1.xpose.msra.mxu0 0.0
    %4023 = vmatprep.subr.mxu0 0.0
    %4024 = vmatpush1.xpose.msra.mxu0 0.0
    %4025 = vmatprep.subr.mxu0 0.0
    %4026 = vmatpush1.xpose.msra.mxu0 0.0
    %4027 = vmatprep.subr.mxu0 0.0
    %4028 = vmatpush1.xpose.msra.mxu0 0.0
    %4029 = vmatprep.subr.mxu0 0.0
    %4030 = vmatpush1.xpose.msra.mxu0 0.0
    %4031 = vmatprep.subr.mxu0 0.0
    %4032 = vmatpush1.xpose.msra.mxu0 0.0
    %4033 = vmatprep.subr.mxu0 0.0
    %4034 = vmatpush1.xpose.msra.mxu0 0.0
    %4035 = vmatprep.subr.mxu0 0.0
    %4036 = vmatpush1.xpose.msra.mxu0 0.0
    %4037 = vmatprep.subr.mxu0 0.0
    %4038 = vmatpush1.xpose.msra.mxu0 0.0
    %4039 = vmatprep.subr.mxu0 0.0
    %4040 = vmatpush1.xpose.msra.mxu0 0.0
    %4041 = vmatprep.subr.mxu0 0.0
    %4042 = vmatpush1.xpose.msra.mxu0 0.0
    %4043 = vmatprep.subr.mxu0 0.0
    %4044 = vmatpush1.xpose.msra.mxu0 %v3866
    %4045 = vmatprep.subr.mxu0 0.0
    %4046 = vmatpush2.xpose.msra.mxu0 0.0
    %4047 = vmatprep.subr.mxu0 0.0
    %4048 = vmatpush2.xpose.msra.mxu0 0.0
    %4049 = vmatprep.subr.mxu0 0.0
    %4050 = vmatpush2.xpose.msra.mxu0 0.0
    %4051 = vmatprep.subr.mxu0 0.0
    %4052 = vmatpush2.xpose.msra.mxu0 0.0
    %4053 = vmatprep.subr.mxu0 0.0
    %4054 = vmatpush2.xpose.msra.mxu0 0.0
    %4055 = vmatprep.subr.mxu0 0.0
    %4056 = vmatpush2.xpose.msra.mxu0 0.0
    %4057 = vmatprep.subr.mxu0 0.0
    %4058 = vmatpush2.xpose.msra.mxu0 0.0
    %4059 = vmatprep.subr.mxu0 0.0
    %4060 = vmatpush2.xpose.msra.mxu0 0.0
    %4061 = vmatprep.subr.mxu0 0.0
    %4062 = vmatpush2.xpose.msra.mxu0 0.0
    %4063 = vmatprep.subr.mxu0 0.0
    %4064 = vmatpush2.xpose.msra.mxu0 0.0
    %4065 = vmatprep.subr.mxu0 0.0
    %4066 = vmatpush2.xpose.msra.mxu0 0.0
    %4067 = vmatprep.subr.mxu0 0.0
    %4068 = vmatpush2.xpose.msra.mxu0 0.0
    %4069 = vmatprep.subr.mxu0 0.0
    %4070 = vmatpush2.xpose.msra.mxu0 0.0
    %4071 = vmatprep.subr.mxu0 0.0
    %4072 = vmatpush2.xpose.msra.mxu0 0.0
    %4073 = vmatprep.subr.mxu0 0.0
    %4074 = vmatpush2.xpose.msra.mxu0 0.0
    %4075 = vmatprep.subr.mxu0 0.0
    %4076 = vmatpush2.xpose.msra.mxu0 0.0
    %4077 = vmatprep.mubr.f32.mxu0 0.0
    %4078 = vmatmul.mubr.f32.gmra.mxu0 %v3864
    %v4079 = vpop.f32.mrf.mxu0
    %v4080 = vadd.f32 0.0, %v4079
    %v4081 = vpop.f32.mrf.mxu0
    %4082 = vdwg.mxu0
    %vm4083 = vcmask 64512
    %v4084 = vsel %vm4083, %v4010, -inf
    %4085 = vmax.xlane.f32.xlu0 %v4084
    %v4086 = vpop.xlane.xlu0 %4085
    %v4087 = vsel %vm4083, %v4080, -inf
    %4088 = vmax.xlane.f32.xlu0 %v4087
    %v4089 = vpop.xlane.xlu0 %4088
    %v4090 = vsub.f32 %v4010, %v4086
    %v4091 = vsub.f32 %v4080, %v4089
    %v4092 = vmul.f32 %v4090, 1.442695
    %v4093 = vpow.pop %v4092
    %v4094 = vmul.f32 %v4091, 1.442695
    %v4095 = vpow.pop %v4094
    %v4096 = vsel %vm4083, %v4093, 0.0
    %4097 = vadd.xlane.f32.xlu0 %v4096
    %v4098 = vpop.xlane.xlu0 %4097
    %v4099 = vsel %vm4083, %v4095, 0.0
    %4100 = vadd.xlane.f32.xlu0 %v4099
    %v4101 = vpop.xlane.xlu0 %4100
    %v4102 = vrcp.pop %v4098
    %v4103 = vrcp.pop %v4101
    %v4104 = vmul.f32 %v4093, %v4102
    %v4105 = vmul.f32 %v4095, %v4103
    %v4107 = vsel %vm4083, %v4104, 0
    %4109 = vmatprep.subr.mxu0 0.0
    %4110 = vmatpush1.msra.mxu0 0.0
    %4111 = vmatprep.subr.mxu0 0.0
    %4112 = vmatpush1.msra.mxu0 0.0
    %4113 = vmatprep.subr.mxu0 0.0
    %4114 = vmatpush1.msra.mxu0 0.0
    %4115 = vmatprep.subr.mxu0 0.0
    %4116 = vmatpush1.msra.mxu0 0.0
    %4117 = vmatprep.subr.mxu0 0.0
    %4118 = vmatpush1.msra.mxu0 0.0
    %4119 = vmatprep.subr.mxu0 0.0
    %4120 = vmatpush1.msra.mxu0 0.0
    %4121 = vmatprep.subr.mxu0 0.0
    %4122 = vmatpush1.msra.mxu0 0.0
    %4123 = vmatprep.subr.mxu0 0.0
    %4124 = vmatpush1.msra.mxu0 0.0
    %4125 = vmatprep.subr.mxu0 0.0
    %4126 = vmatpush1.msra.mxu0 0.0
    %4127 = vmatprep.subr.mxu0 0.0
    %4128 = vmatpush1.msra.mxu0 0.0
    %4129 = vmatprep.subr.mxu0 0.0
    %4130 = vmatpush1.msra.mxu0 0.0
    %4131 = vmatprep.subr.mxu0 0.0
    %4132 = vmatpush1.msra.mxu0 0.0
    %4133 = vmatprep.subr.mxu0 0.0
    %4134 = vmatpush1.msra.mxu0 0.0
    %4135 = vmatprep.subr.mxu0 0.0
    %4136 = vmatpush1.msra.mxu0 0.0
    %4137 = vmatprep.subr.mxu0 0.0
    %4138 = vmatpush1.msra.mxu0 0.0
    %4139 = vmatprep.subr.mxu0 0.0
    %4140 = vmatpush1.msra.mxu0 %v3935
    %4141 = vmatprep.subr.mxu0 0.0
    %4142 = vmatpush2.msra.mxu0 0.0
    %4143 = vmatprep.subr.mxu0 0.0
    %4144 = vmatpush2.msra.mxu0 0.0
    %4145 = vmatprep.subr.mxu0 0.0
    %4146 = vmatpush2.msra.mxu0 0.0
    %4147 = vmatprep.subr.mxu0 0.0
    %4148 = vmatpush2.msra.mxu0 0.0
    %4149 = vmatprep.subr.mxu0 0.0
    %4150 = vmatpush2.msra.mxu0 0.0
    %4151 = vmatprep.subr.mxu0 0.0
    %4152 = vmatpush2.msra.mxu0 0.0
    %4153 = vmatprep.subr.mxu0 0.0
    %4154 = vmatpush2.msra.mxu0 0.0
    %4155 = vmatprep.subr.mxu0 0.0
    %4156 = vmatpush2.msra.mxu0 0.0
    %4157 = vmatprep.subr.mxu0 0.0
    %4158 = vmatpush2.msra.mxu0 0.0
    %4159 = vmatprep.subr.mxu0 0.0
    %4160 = vmatpush2.msra.mxu0 0.0
    %4161 = vmatprep.subr.mxu0 0.0
    %4162 = vmatpush2.msra.mxu0 0.0
    %4163 = vmatprep.subr.mxu0 0.0
    %4164 = vmatpush2.msra.mxu0 0.0
    %4165 = vmatprep.subr.mxu0 0.0
    %4166 = vmatpush2.msra.mxu0 0.0
    %4167 = vmatprep.subr.mxu0 0.0
    %4168 = vmatpush2.msra.mxu0 0.0
    %4169 = vmatprep.subr.mxu0 0.0
    %4170 = vmatpush2.msra.mxu0 0.0
    %4171 = vmatprep.subr.mxu0 0.0
    %4172 = vmatpush2.msra.mxu0 0.0
    %4173 = vmatprep.mubr.f32.mxu0 0.0
    %4174 = vmatmul.mubr.f32.gmra.mxu0 %v4107
    %v4175 = vpop.f32.mrf.mxu0
    %v4176 = vadd.f32 0.0, %v4175
    %v4177 = vpop.f32.mrf.mxu0
    %4178 = vdwg.mxu0
    %v4180 = vsel %vm4083, %v4105, 0
    %4182 = vmatprep.subr.mxu0 0.0
    %4183 = vmatpush1.msra.mxu0 0.0
    %4184 = vmatprep.subr.mxu0 0.0
    %4185 = vmatpush1.msra.mxu0 0.0
    %4186 = vmatprep.subr.mxu0 0.0
    %4187 = vmatpush1.msra.mxu0 0.0
    %4188 = vmatprep.subr.mxu0 0.0
    %4189 = vmatpush1.msra.mxu0 0.0
    %4190 = vmatprep.subr.mxu0 0.0
    %4191 = vmatpush1.msra.mxu0 0.0
    %4192 = vmatprep.subr.mxu0 0.0
    %4193 = vmatpush1.msra.mxu0 0.0
    %4194 = vmatprep.subr.mxu0 0.0
    %4195 = vmatpush1.msra.mxu0 0.0
    %4196 = vmatprep.subr.mxu0 0.0
    %4197 = vmatpush1.msra.mxu0 0.0
    %4198 = vmatprep.subr.mxu0 0.0
    %4199 = vmatpush1.msra.mxu0 0.0
    %4200 = vmatprep.subr.mxu0 0.0
    %4201 = vmatpush1.msra.mxu0 0.0
    %4202 = vmatprep.subr.mxu0 0.0
    %4203 = vmatpush1.msra.mxu0 0.0
    %4204 = vmatprep.subr.mxu0 0.0
    %4205 = vmatpush1.msra.mxu0 0.0
    %4206 = vmatprep.subr.mxu0 0.0
    %4207 = vmatpush1.msra.mxu0 0.0
    %4208 = vmatprep.subr.mxu0 0.0
    %4209 = vmatpush1.msra.mxu0 0.0
    %4210 = vmatprep.subr.mxu0 0.0
    %4211 = vmatpush1.msra.mxu0 0.0
    %4212 = vmatprep.subr.mxu0 0.0
    %4213 = vmatpush1.msra.mxu0 %v3940
    %4214 = vmatprep.subr.mxu0 0.0
    %4215 = vmatpush2.msra.mxu0 0.0
    %4216 = vmatprep.subr.mxu0 0.0
    %4217 = vmatpush2.msra.mxu0 0.0
    %4218 = vmatprep.subr.mxu0 0.0
    %4219 = vmatpush2.msra.mxu0 0.0
    %4220 = vmatprep.subr.mxu0 0.0
    %4221 = vmatpush2.msra.mxu0 0.0
    %4222 = vmatprep.subr.mxu0 0.0
    %4223 = vmatpush2.msra.mxu0 0.0
    %4224 = vmatprep.subr.mxu0 0.0
    %4225 = vmatpush2.msra.mxu0 0.0
    %4226 = vmatprep.subr.mxu0 0.0
    %4227 = vmatpush2.msra.mxu0 0.0
    %4228 = vmatprep.subr.mxu0 0.0
    %4229 = vmatpush2.msra.mxu0 0.0
    %4230 = vmatprep.subr.mxu0 0.0
    %4231 = vmatpush2.msra.mxu0 0.0
    %4232 = vmatprep.subr.mxu0 0.0
    %4233 = vmatpush2.msra.mxu0 0.0
    %4234 = vmatprep.subr.mxu0 0.0
    %4235 = vmatpush2.msra.mxu0 0.0
    %4236 = vmatprep.subr.mxu0 0.0
    %4237 = vmatpush2.msra.mxu0 0.0
    %4238 = vmatprep.subr.mxu0 0.0
    %4239 = vmatpush2.msra.mxu0 0.0
    %4240 = vmatprep.subr.mxu0 0.0
    %4241 = vmatpush2.msra.mxu0 0.0
    %4242 = vmatprep.subr.mxu0 0.0
    %4243 = vmatpush2.msra.mxu0 0.0
    %4244 = vmatprep.subr.mxu0 0.0
    %4245 = vmatpush2.msra.mxu0 0.0
    %4246 = vmatprep.mubr.f32.mxu0 0.0
    %4247 = vmatmul.mubr.f32.gmra.mxu0 %v4180
    %v4248 = vpop.f32.mrf.mxu0
    %v4249 = vadd.f32 0.0, %v4248
    %v4250 = vpop.f32.mrf.mxu0
    %4251 = vdwg.mxu0
    %v4252 = vld [vmem:[#allocation7] sm:$0xff]
    %v4253 = vld [vmem:[#allocation7 + $0x8] sm:$0xff]
    %v4254 = vld [vmem:[#allocation7 + $0x10] sm:$0xff]
    %v4255 = vld [vmem:[#allocation7 + $0x18] sm:$0xff]
    %v4256 = vld [vmem:[#allocation7 + $0x20] sm:$0xff]
    %v4257 = vld [vmem:[#allocation7 + $0x28] sm:$0xff]
    %v4258 = vld [vmem:[#allocation7 + $0x30] sm:$0xff]
    %v4259 = vld [vmem:[#allocation7 + $0x38] sm:$0xff]
    %v4260 = vld [vmem:[#allocation7 + $0x40] sm:$0xff]
    %v4261 = vld [vmem:[#allocation7 + $0x48] sm:$0xff]
    %v4262 = vld [vmem:[#allocation7 + $0x50] sm:$0xff]
    %v4263 = vld [vmem:[#allocation7 + $0x58] sm:$0xff]
    %v4264 = vld [vmem:[#allocation7 + $0x60] sm:$0xff]
    %v4265 = vld [vmem:[#allocation7 + $0x68] sm:$0xff]
    %v4266 = vld [vmem:[#allocation7 + $0x70] sm:$0xff]
    %v4267 = vld [vmem:[#allocation7 + $0x78] sm:$0xff]
    %v4268 = vld [vmem:[%s7] sm:$0x1]
    %v4270 = vlaneseq
    %v4271 = vshrl.u32 %v4270, 7
    %v4272 = vsub.s32 0, %v4271
    %v4273 = vrot.slane %v4268, %v4272
    %4275 = vmatprep.subr.mxu0 0.0
    %4276 = vmatpush1.msra.mxu0 %v4267
    %4277 = vmatprep.subr.mxu0 0.0
    %4278 = vmatpush1.msra.mxu0 %v4266
    %4279 = vmatprep.subr.mxu0 0.0
    %4280 = vmatpush1.msra.mxu0 %v4265
    %4281 = vmatprep.subr.mxu0 0.0
    %4282 = vmatpush1.msra.mxu0 %v4264
    %4283 = vmatprep.subr.mxu0 0.0
    %4284 = vmatpush1.msra.mxu0 %v4263
    %4285 = vmatprep.subr.mxu0 0.0
    %4286 = vmatpush1.msra.mxu0 %v4262
    %4287 = vmatprep.subr.mxu0 0.0
    %4288 = vmatpush1.msra.mxu0 %v4261
    %4289 = vmatprep.subr.mxu0 0.0
    %4290 = vmatpush1.msra.mxu0 %v4260
    %4291 = vmatprep.subr.mxu0 0.0
    %4292 = vmatpush1.msra.mxu0 %v4259
    %4293 = vmatprep.subr.mxu0 0.0
    %4294 = vmatpush1.msra.mxu0 %v4258
    %4295 = vmatprep.subr.mxu0 0.0
    %4296 = vmatpush1.msra.mxu0 %v4257
    %4297 = vmatprep.subr.mxu0 0.0
    %4298 = vmatpush1.msra.mxu0 %v4256
    %4299 = vmatprep.subr.mxu0 0.0
    %4300 = vmatpush1.msra.mxu0 %v4255
    %4301 = vmatprep.subr.mxu0 0.0
    %4302 = vmatpush1.msra.mxu0 %v4254
    %4303 = vmatprep.subr.mxu0 0.0
    %4304 = vmatpush1.msra.mxu0 %v4253
    %4305 = vmatprep.subr.mxu0 0.0
    %4306 = vmatpush1.msra.mxu0 %v4252
    %4307 = vmatprep.subr.mxu0 0.0
    %4308 = vmatpush2.msra.mxu0 0.0
    %4309 = vmatprep.subr.mxu0 0.0
    %4310 = vmatpush2.msra.mxu0 0.0
    %4311 = vmatprep.subr.mxu0 0.0
    %4312 = vmatpush2.msra.mxu0 0.0
    %4313 = vmatprep.subr.mxu0 0.0
    %4314 = vmatpush2.msra.mxu0 0.0
    %4315 = vmatprep.subr.mxu0 0.0
    %4316 = vmatpush2.msra.mxu0 0.0
    %4317 = vmatprep.subr.mxu0 0.0
    %4318 = vmatpush2.msra.mxu0 0.0
    %4319 = vmatprep.subr.mxu0 0.0
    %4320 = vmatpush2.msra.mxu0 0.0
    %4321 = vmatprep.subr.mxu0 0.0
    %4322 = vmatpush2.msra.mxu0 0.0
    %4323 = vmatprep.subr.mxu0 0.0
    %4324 = vmatpush2.msra.mxu0 0.0
    %4325 = vmatprep.subr.mxu0 0.0
    %4326 = vmatpush2.msra.mxu0 0.0
    %4327 = vmatprep.subr.mxu0 0.0
    %4328 = vmatpush2.msra.mxu0 0.0
    %4329 = vmatprep.subr.mxu0 0.0
    %4330 = vmatpush2.msra.mxu0 0.0
    %4331 = vmatprep.subr.mxu0 0.0
    %4332 = vmatpush2.msra.mxu0 0.0
    %4333 = vmatprep.subr.mxu0 0.0
    %4334 = vmatpush2.msra.mxu0 0.0
    %4335 = vmatprep.subr.mxu0 0.0
    %4336 = vmatpush2.msra.mxu0 0.0
    %4337 = vmatprep.subr.mxu0 0.0
    %4338 = vmatpush2.msra.mxu0 0.0
    %4339 = vmatprep.mubr.f32.mxu0 0.0
    %4340 = vmatmul.mubr.f32.gmra.mxu0 %v4176
    %v4341 = vpop.f32.mrf.mxu0
    %v4342 = vadd.f32 %v4273, %v4341
    %v4343 = vpop.f32.mrf.mxu0
    %4344 = vmatprep.mubr.f32.mxu0 0.0
    %4345 = vmatmul.mubr.f32.gmra.mxu0 %v4249
    %v4346 = vpop.f32.mrf.mxu0
    %v4347 = vadd.f32 %v4273, %v4346
    %v4348 = vpop.f32.mrf.mxu0
    %4349 = vdwg.mxu0
    %v4350 = vadd.f32 %v3741, %v4342
    %v4351 = vadd.f32 %v3742, %v4347
    %4352 = vadd.xlane.f32.xlu0 %v4350
    %v4353 = vpop.xlane.xlu0 %4352
    %4354 = vadd.xlane.f32.xlu0 %v4351
    %v4355 = vpop.xlane.xlu0 %4354
    %v4356 = vmul.f32 %v4353, 0.03125
    %v4357 = vmul.f32 %v4355, 0.03125
    %v4358 = vmul.f32 %v4350, %v4350
    %v4359 = vmul.f32 %v4351, %v4351
    %4360 = vadd.xlane.f32.xlu0 %v4358
    %v4361 = vpop.xlane.xlu0 %4360
    %4362 = vadd.xlane.f32.xlu0 %v4359
    %v4363 = vpop.xlane.xlu0 %4362
    %v4364 = vmul.f32 %v4361, 0.03125
    %v4365 = vmul.f32 %v4363, 0.03125
    %v4366 = vmul.f32 %v4356, %v4356
    %v4367 = vmul.f32 %v4357, %v4357
    %v4368 = vsub.f32 %v4364, %v4366
    %v4369 = vsub.f32 %v4365, %v4367
    %v4370 = vsub.f32 %v4350, %v4356
    %v4371 = vsub.f32 %v4351, %v4357
    %v4372 = vadd.f32 %v4368, 1e-06
    %v4373 = vadd.f32 %v4369, 1e-06
    %v4374 = vrsqrt.pop %v4372
    %v4375 = vrsqrt.pop %v4373
    %v4376 = vmul.f32 %v4370, %v4374
    %v4377 = vmul.f32 %v4371, %v4375
    %v4379 = vlaneseq
    %v4380 = vshrl.u32 %v4379, 7
    %v4381 = vsub.s32 0, %v4380
    %v4382 = vrot.slane %v129, %v4381
    %v4384 = vmul.f32 %v4376, %v4382
    %v4385 = vmul.f32 %v4377, %v4382
    %v4387 = vlaneseq
    %v4388 = vshrl.u32 %v4387, 7
    %v4389 = vsub.s32 0, %v4388
    %v4390 = vrot.slane %v130, %v4389
    %v4392 = vadd.f32 %v4384, %v4390
    %v4393 = vadd.f32 %v4385, %v4390
    %v4394 = vld [vmem:[#allocation9] sm:$0xff]
    %v4395 = vld [vmem:[#allocation9 + $0x8] sm:$0xff]
    %v4396 = vld [vmem:[#allocation9 + $0x10] sm:$0xff]
    %v4397 = vld [vmem:[#allocation9 + $0x18] sm:$0xff]
    %v4398 = vld [vmem:[#allocation9 + $0x20] sm:$0xff]
    %v4399 = vld [vmem:[#allocation9 + $0x28] sm:$0xff]
    %v4400 = vld [vmem:[#allocation9 + $0x30] sm:$0xff]
    %v4401 = vld [vmem:[#allocation9 + $0x38] sm:$0xff]
    %v4402 = vld [vmem:[#allocation9 + $0x40] sm:$0xff]
    %v4403 = vld [vmem:[#allocation9 + $0x48] sm:$0xff]
    %v4404 = vld [vmem:[#allocation9 + $0x50] sm:$0xff]
    %v4405 = vld [vmem:[#allocation9 + $0x58] sm:$0xff]
    %v4406 = vld [vmem:[#allocation9 + $0x60] sm:$0xff]
    %v4407 = vld [vmem:[#allocation9 + $0x68] sm:$0xff]
    %v4408 = vld [vmem:[#allocation9 + $0x70] sm:$0xff]
    %v4409 = vld [vmem:[#allocation9 + $0x78] sm:$0xff]
    %v4410 = vld [vmem:[%s9] sm:$0x1]
    %v4412 = vlaneseq
    %v4413 = vshrl.u32 %v4412, 7
    %v4414 = vsub.s32 0, %v4413
    %v4415 = vrot.slane %v4410, %v4414
    %4417 = vmatprep.subr.mxu0 0.0
    %4418 = vmatpush1.msra.mxu0 %v4409
    %4419 = vmatprep.subr.mxu0 0.0
    %4420 = vmatpush1.msra.mxu0 %v4408
    %4421 = vmatprep.subr.mxu0 0.0
    %4422 = vmatpush1.msra.mxu0 %v4407
    %4423 = vmatprep.subr.mxu0 0.0
    %4424 = vmatpush1.msra.mxu0 %v4406
    %4425 = vmatprep.subr.mxu0 0.0
    %4426 = vmatpush1.msra.mxu0 %v4405
    %4427 = vmatprep.subr.mxu0 0.0
    %4428 = vmatpush1.msra.mxu0 %v4404
    %4429 = vmatprep.subr.mxu0 0.0
    %4430 = vmatpush1.msra.mxu0 %v4403
    %4431 = vmatprep.subr.mxu0 0.0
    %4432 = vmatpush1.msra.mxu0 %v4402
    %4433 = vmatprep.subr.mxu0 0.0
    %4434 = vmatpush1.msra.mxu0 %v4401
    %4435 = vmatprep.subr.mxu0 0.0
    %4436 = vmatpush1.msra.mxu0 %v4400
    %4437 = vmatprep.subr.mxu0 0.0
    %4438 = vmatpush1.msra.mxu0 %v4399
    %4439 = vmatprep.subr.mxu0 0.0
    %4440 = vmatpush1.msra.mxu0 %v4398
    %4441 = vmatprep.subr.mxu0 0.0
    %4442 = vmatpush1.msra.mxu0 %v4397
    %4443 = vmatprep.subr.mxu0 0.0
    %4444 = vmatpush1.msra.mxu0 %v4396
    %4445 = vmatprep.subr.mxu0 0.0
    %4446 = vmatpush1.msra.mxu0 %v4395
    %4447 = vmatprep.subr.mxu0 0.0
    %4448 = vmatpush1.msra.mxu0 %v4394
    %4449 = vmatprep.subr.mxu0 0.0
    %4450 = vmatpush2.msra.mxu0 0.0
    %4451 = vmatprep.subr.mxu0 0.0
    %4452 = vmatpush2.msra.mxu0 0.0
    %4453 = vmatprep.subr.mxu0 0.0
    %4454 = vmatpush2.msra.mxu0 0.0
    %4455 = vmatprep.subr.mxu0 0.0
    %4456 = vmatpush2.msra.mxu0 0.0
    %4457 = vmatprep.subr.mxu0 0.0
    %4458 = vmatpush2.msra.mxu0 0.0
    %4459 = vmatprep.subr.mxu0 0.0
    %4460 = vmatpush2.msra.mxu0 0.0
    %4461 = vmatprep.subr.mxu0 0.0
    %4462 = vmatpush2.msra.mxu0 0.0
    %4463 = vmatprep.subr.mxu0 0.0
    %4464 = vmatpush2.msra.mxu0 0.0
    %4465 = vmatprep.subr.mxu0 0.0
    %4466 = vmatpush2.msra.mxu0 0.0
    %4467 = vmatprep.subr.mxu0 0.0
    %4468 = vmatpush2.msra.mxu0 0.0
    %4469 = vmatprep.subr.mxu0 0.0
    %4470 = vmatpush2.msra.mxu0 0.0
    %4471 = vmatprep.subr.mxu0 0.0
    %4472 = vmatpush2.msra.mxu0 0.0
    %4473 = vmatprep.subr.mxu0 0.0
    %4474 = vmatpush2.msra.mxu0 0.0
    %4475 = vmatprep.subr.mxu0 0.0
    %4476 = vmatpush2.msra.mxu0 0.0
    %4477 = vmatprep.subr.mxu0 0.0
    %4478 = vmatpush2.msra.mxu0 0.0
    %4479 = vmatprep.subr.mxu0 0.0
    %4480 = vmatpush2.msra.mxu0 0.0
    %4481 = vmatprep.mubr.f32.mxu0 0.0
    %4482 = vmatmul.mubr.f32.gmra.mxu0 %v4392
    %v4483 = vpop.f32.mrf.mxu0
    %v4484 = vadd.f32 %v4415, %v4483
    %v4485 = vpop.f32.mrf.mxu0
    %4486 = vmatprep.mubr.f32.mxu0 0.0
    %4487 = vmatmul.mubr.f32.gmra.mxu0 %v4393
    %v4488 = vpop.f32.mrf.mxu0
    %v4489 = vadd.f32 %v4415, %v4488
    %v4490 = vpop.f32.mrf.mxu0
    %4491 = vdwg.mxu0
    %v4492 = vmax.f32 %v4484, 0.0
    %v4493 = vmax.f32 %v4489, 0.0
    %v4494 = vld [vmem:[#allocation10] sm:$0xff]
    %v4495 = vld [vmem:[#allocation10 + $0x8] sm:$0xff]
    %v4496 = vld [vmem:[#allocation10 + $0x10] sm:$0xff]
    %v4497 = vld [vmem:[#allocation10 + $0x18] sm:$0xff]
    %v4498 = vld [vmem:[#allocation10 + $0x20] sm:$0xff]
    %v4499 = vld [vmem:[#allocation10 + $0x28] sm:$0xff]
    %v4500 = vld [vmem:[#allocation10 + $0x30] sm:$0xff]
    %v4501 = vld [vmem:[#allocation10 + $0x38] sm:$0xff]
    %v4502 = vld [vmem:[#allocation10 + $0x40] sm:$0xff]
    %v4503 = vld [vmem:[#allocation10 + $0x48] sm:$0xff]
    %v4504 = vld [vmem:[#allocation10 + $0x50] sm:$0xff]
    %v4505 = vld [vmem:[#allocation10 + $0x58] sm:$0xff]
    %v4506 = vld [vmem:[#allocation10 + $0x60] sm:$0xff]
    %v4507 = vld [vmem:[#allocation10 + $0x68] sm:$0xff]
    %v4508 = vld [vmem:[#allocation10 + $0x70] sm:$0xff]
    %v4509 = vld [vmem:[#allocation10 + $0x78] sm:$0xff]
    %v4510 = vld [vmem:[%s11] sm:$0x1]
    %v4512 = vlaneseq
    %v4513 = vshrl.u32 %v4512, 7
    %v4514 = vsub.s32 0, %v4513
    %v4515 = vrot.slane %v4510, %v4514
    %4517 = vmatprep.subr.mxu0 0.0
    %4518 = vmatpush1.msra.mxu0 %v4509
    %4519 = vmatprep.subr.mxu0 0.0
    %4520 = vmatpush1.msra.mxu0 %v4508
    %4521 = vmatprep.subr.mxu0 0.0
    %4522 = vmatpush1.msra.mxu0 %v4507
    %4523 = vmatprep.subr.mxu0 0.0
    %4524 = vmatpush1.msra.mxu0 %v4506
    %4525 = vmatprep.subr.mxu0 0.0
    %4526 = vmatpush1.msra.mxu0 %v4505
    %4527 = vmatprep.subr.mxu0 0.0
    %4528 = vmatpush1.msra.mxu0 %v4504
    %4529 = vmatprep.subr.mxu0 0.0
    %4530 = vmatpush1.msra.mxu0 %v4503
    %4531 = vmatprep.subr.mxu0 0.0
    %4532 = vmatpush1.msra.mxu0 %v4502
    %4533 = vmatprep.subr.mxu0 0.0
    %4534 = vmatpush1.msra.mxu0 %v4501
    %4535 = vmatprep.subr.mxu0 0.0
    %4536 = vmatpush1.msra.mxu0 %v4500
    %4537 = vmatprep.subr.mxu0 0.0
    %4538 = vmatpush1.msra.mxu0 %v4499
    %4539 = vmatprep.subr.mxu0 0.0
    %4540 = vmatpush1.msra.mxu0 %v4498
    %4541 = vmatprep.subr.mxu0 0.0
    %4542 = vmatpush1.msra.mxu0 %v4497
    %4543 = vmatprep.subr.mxu0 0.0
    %4544 = vmatpush1.msra.mxu0 %v4496
    %4545 = vmatprep.subr.mxu0 0.0
    %4546 = vmatpush1.msra.mxu0 %v4495
    %4547 = vmatprep.subr.mxu0 0.0
    %4548 = vmatpush1.msra.mxu0 %v4494
    %4549 = vmatprep.subr.mxu0 0.0
    %4550 = vmatpush2.msra.mxu0 0.0
    %4551 = vmatprep.subr.mxu0 0.0
    %4552 = vmatpush2.msra.mxu0 0.0
    %4553 = vmatprep.subr.mxu0 0.0
    %4554 = vmatpush2.msra.mxu0 0.0
    %4555 = vmatprep.subr.mxu0 0.0
    %4556 = vmatpush2.msra.mxu0 0.0
    %4557 = vmatprep.subr.mxu0 0.0
    %4558 = vmatpush2.msra.mxu0 0.0
    %4559 = vmatprep.subr.mxu0 0.0
    %4560 = vmatpush2.msra.mxu0 0.0
    %4561 = vmatprep.subr.mxu0 0.0
    %4562 = vmatpush2.msra.mxu0 0.0
    %4563 = vmatprep.subr.mxu0 0.0
    %4564 = vmatpush2.msra.mxu0 0.0
    %4565 = vmatprep.subr.mxu0 0.0
    %4566 = vmatpush2.msra.mxu0 0.0
    %4567 = vmatprep.subr.mxu0 0.0
    %4568 = vmatpush2.msra.mxu0 0.0
    %4569 = vmatprep.subr.mxu0 0.0
    %4570 = vmatpush2.msra.mxu0 0.0
    %4571 = vmatprep.subr.mxu0 0.0
    %4572 = vmatpush2.msra.mxu0 0.0
    %4573 = vmatprep.subr.mxu0 0.0
    %4574 = vmatpush2.msra.mxu0 0.0
    %4575 = vmatprep.subr.mxu0 0.0
    %4576 = vmatpush2.msra.mxu0 0.0
    %4577 = vmatprep.subr.mxu0 0.0
    %4578 = vmatpush2.msra.mxu0 0.0
    %4579 = vmatprep.subr.mxu0 0.0
    %4580 = vmatpush2.msra.mxu0 0.0
    %4581 = vmatprep.mubr.f32.mxu0 0.0
    %4582 = vmatmul.mubr.f32.gmra.mxu0 %v4492
    %v4583 = vpop.f32.mrf.mxu0
    %v4584 = vadd.f32 %v4515, %v4583
    %v4585 = vpop.f32.mrf.mxu0
    %4586 = vmatprep.mubr.f32.mxu0 0.0
    %4587 = vmatmul.mubr.f32.gmra.mxu0 %v4493
    %v4588 = vpop.f32.mrf.mxu0
    %v4589 = vadd.f32 %v4515, %v4588
    %v4590 = vpop.f32.mrf.mxu0
    %4591 = vdwg.mxu0
    %v4592 = vadd.f32 %v4392, %v4584
    %v4593 = vadd.f32 %v4393, %v4589
    %4594 = vadd.xlane.f32.xlu0 %v4592
    %v4595 = vpop.xlane.xlu0 %4594
    %4596 = vadd.xlane.f32.xlu0 %v4593
    %v4597 = vpop.xlane.xlu0 %4596
    %v4598 = vmul.f32 %v4595, 0.03125
    %v4599 = vmul.f32 %v4597, 0.03125
    %v4600 = vmul.f32 %v4592, %v4592
    %v4601 = vmul.f32 %v4593, %v4593
    %4602 = vadd.xlane.f32.xlu0 %v4600
    %v4603 = vpop.xlane.xlu0 %4602
    %4604 = vadd.xlane.f32.xlu0 %v4601
    %v4605 = vpop.xlane.xlu0 %4604
    %v4606 = vmul.f32 %v4603, 0.03125
    %v4607 = vmul.f32 %v4605, 0.03125
    %v4608 = vmul.f32 %v4598, %v4598
    %v4609 = vmul.f32 %v4599, %v4599
    %v4610 = vsub.f32 %v4606, %v4608
    %v4611 = vsub.f32 %v4607, %v4609
    %v4612 = vsub.f32 %v4592, %v4598
    %v4613 = vsub.f32 %v4593, %v4599
    %v4614 = vadd.f32 %v4610, 1e-06
    %v4615 = vadd.f32 %v4611, 1e-06
    %v4616 = vrsqrt.pop %v4614
    %v4617 = vrsqrt.pop %v4615
    %v4618 = vmul.f32 %v4612, %v4616
    %v4619 = vmul.f32 %v4613, %v4617
    %v4620 = vmul.f32 %v4618, %v4382
    %v4621 = vmul.f32 %v4619, %v4382
    %v4622 = vadd.f32 %v4620, %v4390
    %v4623 = vadd.f32 %v4621, %v4390
    %4624 = vst [vmem:[%s14] sm:$0xff] %v4622
    %4625 = vst [vmem:[%s14 + $0x8] sm:$0xff] %v4623
    // Predicated region
    $region82: #{gru_with_graph_attention.1} parent=1 // pred_check
      _
    $region83: #{gru_with_graph_attention.1} parent=1 // pred_check_branch
      %4627 = sbr.rel (0) target = $region85
    $region84: #{gru_with_graph_attention.1} parent=1 // pred_region
      _
    $region85: #{gru_with_graph_attention.1} parent=1 // pred_fallthru
      _
    // Predicated region
    $region86: #{gru_with_graph_attention.1} parent=1 // pred_check
      _
    $region87: #{gru_with_graph_attention.1} parent=1 // pred_check_branch
      %4629 = sbr.rel (0) target = $region89
    $region88: #{gru_with_graph_attention.1} parent=1 // pred_region
      _
    $region89: #{gru_with_graph_attention.1} parent=1 // pred_fallthru
      _
    %4630 = vsyncpa [#allocation3], 1
    %4631 = vsyncpa [#allocation5], 1
    %4632 = vsyncpa [#allocation8], 1
    %4633 = vsyncpa [#allocation11], 1

</llo_original>
